<compile_context>
chip_gen: v7x
topology: tpu7x:2x2x1
jax: 0.10.0
libtpu: 0.0.40
codegen_flags: <defaults>
</compile_context>

<pallas_src>
import math

import jax
import jax.numpy as jnp
from jax.experimental import pallas as pl
from jax.experimental.pallas import tpu as pltpu

LANE = 128


def _round_up(n, m):
    return ((n + m - 1) // m) * m


# -----------------------------------------------------------------------------
# Pallas kernel: one invocation, T chained GRU steps, weights VMEM-resident,
# hidden state carried as a fori_loop value (vregs), outputs written once.
# -----------------------------------------------------------------------------
def _seqmodel_kernel(x_ref, h0_ref, wi_ref, wh_ref, b_ref,
                     scores_ref, h_ref, gi_ref):
    T = x_ref.shape[0]
    HP = h0_ref.shape[1]          # hidden padded to a 128-lane boundary

    # ---- hoisted input projection (+ score v-term + b_ih): one MXU matmul ----
    gi_ref[...] = (jnp.dot(x_ref[...], wi_ref[...],
                           preferred_element_type=jnp.float32)
                   + b_ref[0:1, :])

    w_h = wh_ref[...]             # (HP, W) resident for the whole loop
    b_hh = b_ref[1:2, :]          # (1, W)

    def sigmoid(v):
        # 0.5*(tanh(v/2)+1): EUP transcendental, no VPU divide; == logistic.
        return 0.5 * (jnp.tanh(0.5 * v) + 1.0)

    def step(t, h_prev):
        gi = gi_ref[pl.ds(t, 1), :]                                   # (1, W)
        gh = jnp.dot(h_prev, w_h,
                     preferred_element_type=jnp.float32) + b_hh       # (1, W)
        # Score head (uses incoming hidden h_{t-1}); column block 3HP is the
        # folded Linear.  Single dynamic-sublane store, O(1) per step.
        scores_ref[pl.ds(t, 1), :] = gi[:, 3 * HP:] + gh[:, 3 * HP:]
        # Fused GRU cell, PyTorch gate order r|z|n, each on a 128-lane boundary.
        r = sigmoid(gi[:, 0:HP] + gh[:, 0:HP])
        z = sigmoid(gi[:, HP:2 * HP] + gh[:, HP:2 * HP])
        n = jnp.tanh(gi[:, 2 * HP:3 * HP] + r * gh[:, 2 * HP:3 * HP])
        return (1.0 - z) * n + z * h_prev

    unroll = True if T <= 32 else 8
    h_ref[...] = jax.lax.fori_loop(0, T, step, h0_ref[...], unroll=unroll)


def seqmodel_sequence_pallas(x_seq, h0p, w_i, w_h, b):
    T = x_seq.shape[0]
    HP = h0p.shape[1]
    W = w_i.shape[1]
    vspec = lambda: pl.BlockSpec(memory_space=pltpu.MemorySpace.VMEM)
    scores_pad, h_pad = pl.pallas_call(
        _seqmodel_kernel,
        out_shape=(jax.ShapeDtypeStruct((T, LANE), jnp.float32),  # per-step scores
                   jax.ShapeDtypeStruct((1, HP), jnp.float32)),   # final hidden
        in_specs=[vspec() for _ in range(5)],
        out_specs=(vspec(), vspec()),
        scratch_shapes=[pltpu.VMEM((T, W), jnp.float32)],         # gi_all
    )(x_seq, h0p, w_i, w_h, b)
    return scores_pad[:, 0], h_pad


# -----------------------------------------------------------------------------
# Parameters (deterministic synthetic init mirroring nn.GRU / nn.Linear defaults)
# -----------------------------------------------------------------------------
def init_params(key, topic_size, seq_hidden_size, score_mode='concat'):
    H = seq_hidden_size
    in_dim = topic_size + 1 if score_mode == 'concat' else 2 * topic_size + 1
    ks = jax.random.split(key, 6)

    def u(k, shape, a):
        return jax.random.uniform(k, shape, jnp.float32, -a, a)

    gru_a = 1.0 / math.sqrt(H)
    lin_a = 1.0 / math.sqrt(seq_hidden_size + topic_size)
    return {
        'w_ih': u(ks[0], (3 * H, in_dim), gru_a),   # PyTorch gate order r, z, n
        'w_hh': u(ks[1], (3 * H, H), gru_a),
        'b_ih': u(ks[2], (3 * H,), gru_a),
        'b_hh': u(ks[3], (3 * H,), gru_a),
        'score_w': u(ks[4], (1, topic_size + H), lin_a),
        'score_b': u(ks[5], (1,), lin_a),
    }


def prepare_kernel_params(params, score_mode='concat'):
    """One-time hoist: fuse + transpose + lane-pad GRU weights, fold score head.

    Fused layout (width W = 3*HP + 128, HP = round_up(H, 128)):
      cols [g*HP : g*HP+H]  -> gate g in (r, z, n)      (vreg-aligned per gate)
      col  [3*HP]           -> folded score Linear column
      all other cols / pad rows are zero.
    """
    w_ih = jnp.asarray(params['w_ih'], jnp.float32)
    w_hh = jnp.asarray(params['w_hh'], jnp.float32)
    b_ih = jnp.asarray(params['b_ih'], jnp.float32)
    b_hh = jnp.asarray(params['b_hh'], jnp.float32)
    score_w = jnp.asarray(params['score_w'], jnp.float32)
    score_b = jnp.asarray(params['score_b'], jnp.float32)

    H = w_hh.shape[1]
    in_dim = w_ih.shape[1]
    HP = _round_up(H, LANE)
    W = 3 * HP + LANE
    topic = score_w.shape[1] - H
    sw_v = score_w[:, :topic]
    sw_h = score_w[:, topic:]
    zero = jnp.zeros((1, 1), jnp.float32)
    if score_mode == 'concat':
        sw_x = jnp.concatenate([sw_v, zero], axis=1)           # x = [v, s]
    else:
        # x = [v*(s>=.5), v*(s<.5), s]; masks complementary => [sw_v,sw_v,0].x == sw_v.v
        sw_x = jnp.concatenate([sw_v, sw_v, zero], axis=1)

    w_i = jnp.zeros((in_dim, W), jnp.float32)
    w_h = jnp.zeros((HP, W), jnp.float32)
    b = jnp.zeros((2, W), jnp.float32)
    for g in range(3):                                          # r, z, n
        w_i = w_i.at[:, g * HP:g * HP + H].set(w_ih[g * H:(g + 1) * H, :].T)
        w_h = w_h.at[:H, g * HP:g * HP + H].set(w_hh[g * H:(g + 1) * H, :].T)
        b = b.at[0, g * HP:g * HP + H].set(b_ih[g * H:(g + 1) * H])
        b = b.at[1, g * HP:g * HP + H].set(b_hh[g * H:(g + 1) * H])
    # folded score head column
    w_i = w_i.at[:, 3 * HP].set(sw_x[0])
    w_h = w_h.at[:H, 3 * HP].set(sw_h[0])
    b = b.at[0, 3 * HP].set(score_b[0])

    return {
        'score_mode': score_mode,
        'hidden': H,
        'hidden_pad': HP,
        'in_dim': in_dim,
        'w_i': w_i,
        'w_h': w_h,
        'b': b,
    }


# -----------------------------------------------------------------------------
# Forward wrappers
# -----------------------------------------------------------------------------
def seqmodel_forward_sequence(prep, v_seq, s_seq, h=None):
    """Run T chained SeqModel.forward steps in one Pallas call.

    Returns (scores (T,), h (1, 1, H)) -- same per-step semantics as the module.
    """
    T = v_seq.shape[0]
    H = prep['hidden']
    HP = prep['hidden_pad']
    s_col = s_seq.reshape(T, 1).astype(jnp.float32)
    v_seq = v_seq.astype(jnp.float32)
    if prep['score_mode'] == 'concat':
        x_seq = jnp.concatenate([v_seq, s_col], axis=1)
    else:
        pos = (s_col >= 0.5).astype(jnp.float32)
        x_seq = jnp.concatenate([v_seq * pos, v_seq * (1.0 - pos), s_col], axis=1)

    # TODO(synk): the original default_hidden() uses the swapped attribute
    # (topic_size written into self.seq_hidden_size); it only type-checks when
    # topic_size == seq_hidden_size, in which case zeros((1,1,H)) is identical.
    # num_layers > 1 is not supported (module's score layer is incompatible).
    h0p = jnp.zeros((1, HP), jnp.float32)
    if h is not None:
        h0p = h0p.at[:, :H].set(h.reshape(1, H).astype(jnp.float32))

    scores, h_pad = seqmodel_sequence_pallas(
        x_seq, h0p, prep['w_i'], prep['w_h'], prep['b'])
    return scores, h_pad[:, :H].reshape(1, 1, H)


def seqmodel_forward(prep, v, s, h=None):
    """Single step with the exact nn.Module.forward signature: (v, s, h)."""
    scores, h_new = seqmodel_forward_sequence(prep, v.reshape(1, -1),
                                              s.reshape(1), h)
    return scores.reshape(1), h_new


# -----------------------------------------------------------------------------
# Pure-JAX per-step reference mirroring the PyTorch math (raw param layout).
# -----------------------------------------------------------------------------
def seqmodel_step_ref(params, v, s, h, *, score_mode='concat'):
    H = params['w_hh'].shape[1]
    if h is None:
        h = jnp.zeros((1, 1, H), jnp.float32)
    pred_v = jnp.concatenate([v, h.reshape(-1)])
    score = pred_v @ params['score_w'][0] + params['score_b'][0]
    if score_mode == 'concat':
        x = v
    else:
        x = jnp.concatenate([v * (s >= 0.5).astype(v.dtype),
                             v * (s < 0.5).astype(v.dtype)])
    x = jnp.concatenate([x, s])
    h_prev = h.reshape(H)
    gi = params['w_ih'] @ x + params['b_ih']
    gh = params['w_hh'] @ h_prev + params['b_hh']
    r = jax.nn.sigmoid(gi[:H] + gh[:H])
    z = jax.nn.sigmoid(gi[H:2 * H] + gh[H:2 * H])
    n = jnp.tanh(gi[2 * H:] + r * gh[2 * H:])
    h_new = (1.0 - z) * n + z * h_prev
    return score.reshape(1), h_new.reshape(1, 1, H)


if __name__ == "__main__":
    TOPIC, HIDDEN, T, T2 = 32, 32, 16, 4
    SCORE_MODE = 'concat'

    key = jax.random.PRNGKey(0)
    pkey, dkey = jax.random.split(key)
    params = init_params(pkey, TOPIC, HIDDEN, score_mode=SCORE_MODE)
    prep = prepare_kernel_params(params, score_mode=SCORE_MODE)

    dk = jax.random.split(dkey, 3)
    v_seq = jax.random.normal(dk[0], (T, TOPIC), jnp.float32)
    s_seq = (jax.random.uniform(dk[1], (T,)) >= 0.5).astype(jnp.float32)
    v_seq2 = jax.random.normal(dk[2], (T2, TOPIC), jnp.float32)
    s_seq2 = jnp.ones((T2,), jnp.float32)

    # sequence 1: hidden starts at None (default zeros)
    scores1, h1 = seqmodel_forward_sequence(prep, v_seq, s_seq, None)
    # sequence 2: continuation, reusing the returned hidden state
    scores2, h2 = seqmodel_forward_sequence(prep, v_seq2, s_seq2, h1)
    # single step with the exact module signature
    sc_single, h_single = seqmodel_forward(prep, v_seq[0], s_seq[0:1], None)
    jax.block_until_ready((scores1, h1, scores2, h2, sc_single, h_single))

    # ---- verify against the pure-JAX, PyTorch-faithful per-step reference ----
    def run_ref(vs, ss, h):
        outs = []
        for i in range(vs.shape[0]):
            sc, h = seqmodel_step_ref(params, vs[i], ss[i:i + 1], h,
                                      score_mode=SCORE_MODE)
            outs.append(sc)
        return jnp.concatenate(outs), h

    ref_scores1, ref_h1 = run_ref(v_seq, s_seq, None)
    ref_scores2, ref_h2 = run_ref(v_seq2, s_seq2, ref_h1)
    ref_sc_single, ref_h_single = seqmodel_step_ref(
        params, v_seq[0], s_seq[0:1], None, score_mode=SCORE_MODE)

    assert jnp.allclose(scores1, ref_scores1, atol=1e-4), (scores1, ref_scores1)
    assert jnp.allclose(h1, ref_h1, atol=1e-4)
    assert jnp.allclose(scores2, ref_scores2, atol=1e-4), (scores2, ref_scores2)
    assert jnp.allclose(h2, ref_h2, atol=1e-4)
    assert jnp.allclose(sc_single, ref_sc_single, atol=1e-4)
    assert jnp.allclose(h_single, ref_h_single, atol=1e-4)

    print("KERNEL_OK")
</pallas_src>

<mosaic_0001>
module attributes {stable_mosaic.version = 11 : i64} {
  func.func @_seqmodel_kernel(%arg0: memref<16x33xf32, #tpu.memory_space<vmem>>, %arg1: memref<1x128xf32, #tpu.memory_space<vmem>>, %arg2: memref<33x512xf32, #tpu.memory_space<vmem>>, %arg3: memref<128x512xf32, #tpu.memory_space<vmem>>, %arg4: memref<2x512xf32, #tpu.memory_space<vmem>>, %arg5: memref<16x128xf32, #tpu.memory_space<vmem>>, %arg6: memref<1x128xf32, #tpu.memory_space<vmem>>, %arg7: memref<16x512xf32, #tpu.memory_space<vmem>>) attributes {dimension_semantics = [], scalar_prefetch = 0 : i64, scratch_operands = 1 : i64, tpu.core_type = #tpu.core_type<tc>} {
    %c0 = arith.constant 0 : index
    %c0_0 = arith.constant 0 : index
    %0 = vector.load %arg0[%c0, %c0_0] : memref<16x33xf32, #tpu.memory_space<vmem>>, vector<16x33xf32>
    %c0_1 = arith.constant 0 : index
    %c0_2 = arith.constant 0 : index
    %1 = vector.load %arg2[%c0_1, %c0_2] : memref<33x512xf32, #tpu.memory_space<vmem>>, vector<33x512xf32>
    %cst = arith.constant dense<0.000000e+00> : vector<16x512xf32>
    %2 = tpu.matmul %0, %1, %cst {dimension_numbers = #tpu.dot_dimension_numbers<[1], [0], [0], [1], [0, 0, 1, 1], [], []>} : vector<16x33xf32>, vector<33x512xf32>, vector<16x512xf32> -> vector<16x512xf32>
    %c0_3 = arith.constant 0 : index
    %c0_4 = arith.constant 0 : index
    %3 = vector.load %arg4[%c0_3, %c0_4] : memref<2x512xf32, #tpu.memory_space<vmem>>, vector<1x512xf32>
    %4 = vector.broadcast %3 : vector<1x512xf32> to vector<16x512xf32>
    %5 = arith.addf %2, %4 : vector<16x512xf32>
    %c0_5 = arith.constant 0 : index
    %c0_6 = arith.constant 0 : index
    %6 = vector.load %arg7[%c0_5, %c0_6] : memref<16x512xf32, #tpu.memory_space<vmem>>, vector<16x512xf32>
    tpu.vector_store %arg7[%c0_5, %c0_6], %5 {strides = array<i32>} : memref<16x512xf32, #tpu.memory_space<vmem>>, vector<16x512xf32>,
    %c0_7 = arith.constant 0 : index
    %c0_8 = arith.constant 0 : index
    %7 = vector.load %arg3[%c0_7, %c0_8] : memref<128x512xf32, #tpu.memory_space<vmem>>, vector<128x512xf32>
    %c1 = arith.constant 1 : index
    %c0_9 = arith.constant 0 : index
    %8 = vector.load %arg4[%c1, %c0_9] : memref<2x512xf32, #tpu.memory_space<vmem>>, vector<1x512xf32>
    %c0_10 = arith.constant 0 : index
    %c0_11 = arith.constant 0 : index
    %9 = vector.load %arg1[%c0_10, %c0_11] : memref<1x128xf32, #tpu.memory_space<vmem>>, vector<1x128xf32>
    %c0_i32 = arith.constant 0 : i32
    %10 = arith.index_cast %c0_i32 : i32 to index
    %c0_12 = arith.constant 0 : index
    %11 = vector.load %arg7[%10, %c0_12] : memref<16x512xf32, #tpu.memory_space<vmem>>, vector<1x512xf32>
    %cst_13 = arith.constant dense<0.000000e+00> : vector<1x512xf32>
    %12 = tpu.matmul %9, %7, %cst_13 {dimension_numbers = #tpu.dot_dimension_numbers<[1], [0], [0], [1], [0, 0, 1, 1], [], []>} : vector<1x128xf32>, vector<128x512xf32>, vector<1x512xf32> -> vector<1x512xf32>
    %13 = arith.addf %12, %8 : vector<1x512xf32>
    %14 = vector.extract_strided_slice %11 {offsets = [0, 384], sizes = [1, 128], strides = [1, 1]} : vector<1x512xf32> to vector<1x128xf32>
    %15 = vector.extract_strided_slice %13 {offsets = [0, 384], sizes = [1, 128], strides = [1, 1]} : vector<1x512xf32> to vector<1x128xf32>
    %16 = arith.addf %14, %15 : vector<1x128xf32>
    %17 = arith.index_cast %c0_i32 : i32 to index
    %c0_14 = arith.constant 0 : index
    %18 = vector.load %arg5[%17, %c0_14] : memref<16x128xf32, #tpu.memory_space<vmem>>, vector<1x128xf32>
    tpu.vector_store %arg5[%17, %c0_14], %16 {strides = array<i32>} : memref<16x128xf32, #tpu.memory_space<vmem>>, vector<1x128xf32>,
    %19 = vector.extract_strided_slice %11 {offsets = [0, 0], sizes = [1, 128], strides = [1, 1]} : vector<1x512xf32> to vector<1x128xf32>
    %20 = vector.extract_strided_slice %13 {offsets = [0, 0], sizes = [1, 128], strides = [1, 1]} : vector<1x512xf32> to vector<1x128xf32>
    %21 = arith.addf %19, %20 : vector<1x128xf32>
    %cst_15 = arith.constant 5.000000e-01 : f32
    %22 = vector.broadcast %cst_15 : f32 to vector<1x128xf32>
    %23 = arith.mulf %22, %21 : vector<1x128xf32>
    %24 = math.tanh %23 : vector<1x128xf32>
    %cst_16 = arith.constant 1.000000e+00 : f32
    %25 = vector.broadcast %cst_16 : f32 to vector<1x128xf32>
    %26 = arith.addf %24, %25 : vector<1x128xf32>
    %cst_17 = arith.constant 5.000000e-01 : f32
    %27 = vector.broadcast %cst_17 : f32 to vector<1x128xf32>
    %28 = arith.mulf %27, %26 : vector<1x128xf32>
    %29 = vector.extract_strided_slice %11 {offsets = [0, 128], sizes = [1, 128], strides = [1, 1]} : vector<1x512xf32> to vector<1x128xf32>
    %30 = vector.extract_strided_slice %13 {offsets = [0, 128], sizes = [1, 128], strides = [1, 1]} : vector<1x512xf32> to vector<1x128xf32>
    %31 = arith.addf %29, %30 : vector<1x128xf32>
    %cst_18 = arith.constant 5.000000e-01 : f32
    %32 = vector.broadcast %cst_18 : f32 to vector<1x128xf32>
    %33 = arith.mulf %32, %31 : vector<1x128xf32>
    %34 = math.tanh %33 : vector<1x128xf32>
    %cst_19 = arith.constant 1.000000e+00 : f32
    %35 = vector.broadcast %cst_19 : f32 to vector<1x128xf32>
    %36 = arith.addf %34, %35 : vector<1x128xf32>
    %cst_20 = arith.constant 5.000000e-01 : f32
    %37 = vector.broadcast %cst_20 : f32 to vector<1x128xf32>
    %38 = arith.mulf %37, %36 : vector<1x128xf32>
    %39 = vector.extract_strided_slice %11 {offsets = [0, 256], sizes = [1, 128], strides = [1, 1]} : vector<1x512xf32> to vector<1x128xf32>
    %40 = vector.extract_strided_slice %13 {offsets = [0, 256], sizes = [1, 128], strides = [1, 1]} : vector<1x512xf32> to vector<1x128xf32>
    %41 = arith.mulf %28, %40 : vector<1x128xf32>
    %42 = arith.addf %39, %41 : vector<1x128xf32>
    %43 = math.tanh %42 : vector<1x128xf32>
    %cst_21 = arith.constant 1.000000e+00 : f32
    %44 = vector.broadcast %cst_21 : f32 to vector<1x128xf32>
    %45 = arith.subf %44, %38 : vector<1x128xf32>
    %46 = arith.mulf %45, %43 : vector<1x128xf32>
    %47 = arith.mulf %38, %9 : vector<1x128xf32>
    %48 = arith.addf %46, %47 : vector<1x128xf32>
    %c1_i32 = arith.constant 1 : i32
    %49 = arith.index_cast %c1_i32 : i32 to index
    %c0_22 = arith.constant 0 : index
    %50 = vector.load %arg7[%49, %c0_22] : memref<16x512xf32, #tpu.memory_space<vmem>>, vector<1x512xf32>
    %cst_23 = arith.constant dense<0.000000e+00> : vector<1x512xf32>
    %51 = tpu.matmul %48, %7, %cst_23 {dimension_numbers = #tpu.dot_dimension_numbers<[1], [0], [0], [1], [0, 0, 1, 1], [], []>} : vector<1x128xf32>, vector<128x512xf32>, vector<1x512xf32> -> vector<1x512xf32>
    %52 = arith.addf %51, %8 : vector<1x512xf32>
    %53 = vector.extract_strided_slice %50 {offsets = [0, 384], sizes = [1, 128], strides = [1, 1]} : vector<1x512xf32> to vector<1x128xf32>
    %54 = vector.extract_strided_slice %52 {offsets = [0, 384], sizes = [1, 128], strides = [1, 1]} : vector<1x512xf32> to vector<1x128xf32>
    %55 = arith.addf %53, %54 : vector<1x128xf32>
    %56 = arith.index_cast %c1_i32 : i32 to index
    %c0_24 = arith.constant 0 : index
    %57 = vector.load %arg5[%56, %c0_24] : memref<16x128xf32, #tpu.memory_space<vmem>>, vector<1x128xf32>
    tpu.vector_store %arg5[%56, %c0_24], %55 {strides = array<i32>} : memref<16x128xf32, #tpu.memory_space<vmem>>, vector<1x128xf32>,
    %58 = vector.extract_strided_slice %50 {offsets = [0, 0], sizes = [1, 128], strides = [1, 1]} : vector<1x512xf32> to vector<1x128xf32>
    %59 = vector.extract_strided_slice %52 {offsets = [0, 0], sizes = [1, 128], strides = [1, 1]} : vector<1x512xf32> to vector<1x128xf32>
    %60 = arith.addf %58, %59 : vector<1x128xf32>
    %cst_25 = arith.constant 5.000000e-01 : f32
    %61 = vector.broadcast %cst_25 : f32 to vector<1x128xf32>
    %62 = arith.mulf %61, %60 : vector<1x128xf32>
    %63 = math.tanh %62 : vector<1x128xf32>
    %cst_26 = arith.constant 1.000000e+00 : f32
    %64 = vector.broadcast %cst_26 : f32 to vector<1x128xf32>
    %65 = arith.addf %63, %64 : vector<1x128xf32>
    %cst_27 = arith.constant 5.000000e-01 : f32
    %66 = vector.broadcast %cst_27 : f32 to vector<1x128xf32>
    %67 = arith.mulf %66, %65 : vector<1x128xf32>
    %68 = vector.extract_strided_slice %50 {offsets = [0, 128], sizes = [1, 128], strides = [1, 1]} : vector<1x512xf32> to vector<1x128xf32>
    %69 = vector.extract_strided_slice %52 {offsets = [0, 128], sizes = [1, 128], strides = [1, 1]} : vector<1x512xf32> to vector<1x128xf32>
    %70 = arith.addf %68, %69 : vector<1x128xf32>
    %cst_28 = arith.constant 5.000000e-01 : f32
    %71 = vector.broadcast %cst_28 : f32 to vector<1x128xf32>
    %72 = arith.mulf %71, %70 : vector<1x128xf32>
    %73 = math.tanh %72 : vector<1x128xf32>
    %cst_29 = arith.constant 1.000000e+00 : f32
    %74 = vector.broadcast %cst_29 : f32 to vector<1x128xf32>
    %75 = arith.addf %73, %74 : vector<1x128xf32>
    %cst_30 = arith.constant 5.000000e-01 : f32
    %76 = vector.broadcast %cst_30 : f32 to vector<1x128xf32>
    %77 = arith.mulf %76, %75 : vector<1x128xf32>
    %78 = vector.extract_strided_slice %50 {offsets = [0, 256], sizes = [1, 128], strides = [1, 1]} : vector<1x512xf32> to vector<1x128xf32>
    %79 = vector.extract_strided_slice %52 {offsets = [0, 256], sizes = [1, 128], strides = [1, 1]} : vector<1x512xf32> to vector<1x128xf32>
    %80 = arith.mulf %67, %79 : vector<1x128xf32>
    %81 = arith.addf %78, %80 : vector<1x128xf32>
    %82 = math.tanh %81 : vector<1x128xf32>
    %cst_31 = arith.constant 1.000000e+00 : f32
    %83 = vector.broadcast %cst_31 : f32 to vector<1x128xf32>
    %84 = arith.subf %83, %77 : vector<1x128xf32>
    %85 = arith.mulf %84, %82 : vector<1x128xf32>
    %86 = arith.mulf %77, %48 : vector<1x128xf32>
    %87 = arith.addf %85, %86 : vector<1x128xf32>
    %c2_i32 = arith.constant 2 : i32
    %88 = arith.index_cast %c2_i32 : i32 to index
    %c0_32 = arith.constant 0 : index
    %89 = vector.load %arg7[%88, %c0_32] : memref<16x512xf32, #tpu.memory_space<vmem>>, vector<1x512xf32>
    %cst_33 = arith.constant dense<0.000000e+00> : vector<1x512xf32>
    %90 = tpu.matmul %87, %7, %cst_33 {dimension_numbers = #tpu.dot_dimension_numbers<[1], [0], [0], [1], [0, 0, 1, 1], [], []>} : vector<1x128xf32>, vector<128x512xf32>, vector<1x512xf32> -> vector<1x512xf32>
    %91 = arith.addf %90, %8 : vector<1x512xf32>
    %92 = vector.extract_strided_slice %89 {offsets = [0, 384], sizes = [1, 128], strides = [1, 1]} : vector<1x512xf32> to vector<1x128xf32>
    %93 = vector.extract_strided_slice %91 {offsets = [0, 384], sizes = [1, 128], strides = [1, 1]} : vector<1x512xf32> to vector<1x128xf32>
    %94 = arith.addf %92, %93 : vector<1x128xf32>
    %95 = arith.index_cast %c2_i32 : i32 to index
    %c0_34 = arith.constant 0 : index
    %96 = vector.load %arg5[%95, %c0_34] : memref<16x128xf32, #tpu.memory_space<vmem>>, vector<1x128xf32>
    tpu.vector_store %arg5[%95, %c0_34], %94 {strides = array<i32>} : memref<16x128xf32, #tpu.memory_space<vmem>>, vector<1x128xf32>,
    %97 = vector.extract_strided_slice %89 {offsets = [0, 0], sizes = [1, 128], strides = [1, 1]} : vector<1x512xf32> to vector<1x128xf32>
    %98 = vector.extract_strided_slice %91 {offsets = [0, 0], sizes = [1, 128], strides = [1, 1]} : vector<1x512xf32> to vector<1x128xf32>
    %99 = arith.addf %97, %98 : vector<1x128xf32>
    %cst_35 = arith.constant 5.000000e-01 : f32
    %100 = vector.broadcast %cst_35 : f32 to vector<1x128xf32>
    %101 = arith.mulf %100, %99 : vector<1x128xf32>
    %102 = math.tanh %101 : vector<1x128xf32>
    %cst_36 = arith.constant 1.000000e+00 : f32
    %103 = vector.broadcast %cst_36 : f32 to vector<1x128xf32>
    %104 = arith.addf %102, %103 : vector<1x128xf32>
    %cst_37 = arith.constant 5.000000e-01 : f32
    %105 = vector.broadcast %cst_37 : f32 to vector<1x128xf32>
    %106 = arith.mulf %105, %104 : vector<1x128xf32>
    %107 = vector.extract_strided_slice %89 {offsets = [0, 128], sizes = [1, 128], strides = [1, 1]} : vector<1x512xf32> to vector<1x128xf32>
    %108 = vector.extract_strided_slice %91 {offsets = [0, 128], sizes = [1, 128], strides = [1, 1]} : vector<1x512xf32> to vector<1x128xf32>
    %109 = arith.addf %107, %108 : vector<1x128xf32>
    %cst_38 = arith.constant 5.000000e-01 : f32
    %110 = vector.broadcast %cst_38 : f32 to vector<1x128xf32>
    %111 = arith.mulf %110, %109 : vector<1x128xf32>
    %112 = math.tanh %111 : vector<1x128xf32>
    %cst_39 = arith.constant 1.000000e+00 : f32
    %113 = vector.broadcast %cst_39 : f32 to vector<1x128xf32>
    %114 = arith.addf %112, %113 : vector<1x128xf32>
    %cst_40 = arith.constant 5.000000e-01 : f32
    %115 = vector.broadcast %cst_40 : f32 to vector<1x128xf32>
    %116 = arith.mulf %115, %114 : vector<1x128xf32>
    %117 = vector.extract_strided_slice %89 {offsets = [0, 256], sizes = [1, 128], strides = [1, 1]} : vector<1x512xf32> to vector<1x128xf32>
    %118 = vector.extract_strided_slice %91 {offsets = [0, 256], sizes = [1, 128], strides = [1, 1]} : vector<1x512xf32> to vector<1x128xf32>
    %119 = arith.mulf %106, %118 : vector<1x128xf32>
    %120 = arith.addf %117, %119 : vector<1x128xf32>
    %121 = math.tanh %120 : vector<1x128xf32>
    %cst_41 = arith.constant 1.000000e+00 : f32
    %122 = vector.broadcast %cst_41 : f32 to vector<1x128xf32>
    %123 = arith.subf %122, %116 : vector<1x128xf32>
    %124 = arith.mulf %123, %121 : vector<1x128xf32>
    %125 = arith.mulf %116, %87 : vector<1x128xf32>
    %126 = arith.addf %124, %125 : vector<1x128xf32>
    %c3_i32 = arith.constant 3 : i32
    %127 = arith.index_cast %c3_i32 : i32 to index
    %c0_42 = arith.constant 0 : index
    %128 = vector.load %arg7[%127, %c0_42] : memref<16x512xf32, #tpu.memory_space<vmem>>, vector<1x512xf32>
    %cst_43 = arith.constant dense<0.000000e+00> : vector<1x512xf32>
    %129 = tpu.matmul %126, %7, %cst_43 {dimension_numbers = #tpu.dot_dimension_numbers<[1], [0], [0], [1], [0, 0, 1, 1], [], []>} : vector<1x128xf32>, vector<128x512xf32>, vector<1x512xf32> -> vector<1x512xf32>
    %130 = arith.addf %129, %8 : vector<1x512xf32>
    %131 = vector.extract_strided_slice %128 {offsets = [0, 384], sizes = [1, 128], strides = [1, 1]} : vector<1x512xf32> to vector<1x128xf32>
    %132 = vector.extract_strided_slice %130 {offsets = [0, 384], sizes = [1, 128], strides = [1, 1]} : vector<1x512xf32> to vector<1x128xf32>
    %133 = arith.addf %131, %132 : vector<1x128xf32>
    %134 = arith.index_cast %c3_i32 : i32 to index
    %c0_44 = arith.constant 0 : index
    %135 = vector.load %arg5[%134, %c0_44] : memref<16x128xf32, #tpu.memory_space<vmem>>, vector<1x128xf32>
    tpu.vector_store %arg5[%134, %c0_44], %133 {strides = array<i32>} : memref<16x128xf32, #tpu.memory_space<vmem>>, vector<1x128xf32>,
    %136 = vector.extract_strided_slice %128 {offsets = [0, 0], sizes = [1, 128], strides = [1, 1]} : vector<1x512xf32> to vector<1x128xf32>
    %137 = vector.extract_strided_slice %130 {offsets = [0, 0], sizes = [1, 128], strides = [1, 1]} : vector<1x512xf32> to vector<1x128xf32>
    %138 = arith.addf %136, %137 : vector<1x128xf32>
    %cst_45 = arith.constant 5.000000e-01 : f32
    %139 = vector.broadcast %cst_45 : f32 to vector<1x128xf32>
    %140 = arith.mulf %139, %138 : vector<1x128xf32>
    %141 = math.tanh %140 : vector<1x128xf32>
    %cst_46 = arith.constant 1.000000e+00 : f32
    %142 = vector.broadcast %cst_46 : f32 to vector<1x128xf32>
    %143 = arith.addf %141, %142 : vector<1x128xf32>
    %cst_47 = arith.constant 5.000000e-01 : f32
    %144 = vector.broadcast %cst_47 : f32 to vector<1x128xf32>
    %145 = arith.mulf %144, %143 : vector<1x128xf32>
    %146 = vector.extract_strided_slice %128 {offsets = [0, 128], sizes = [1, 128], strides = [1, 1]} : vector<1x512xf32> to vector<1x128xf32>
    %147 = vector.extract_strided_slice %130 {offsets = [0, 128], sizes = [1, 128], strides = [1, 1]} : vector<1x512xf32> to vector<1x128xf32>
    %148 = arith.addf %146, %147 : vector<1x128xf32>
    %cst_48 = arith.constant 5.000000e-01 : f32
    %149 = vector.broadcast %cst_48 : f32 to vector<1x128xf32>
    %150 = arith.mulf %149, %148 : vector<1x128xf32>
    %151 = math.tanh %150 : vector<1x128xf32>
    %cst_49 = arith.constant 1.000000e+00 : f32
    %152 = vector.broadcast %cst_49 : f32 to vector<1x128xf32>
    %153 = arith.addf %151, %152 : vector<1x128xf32>
    %cst_50 = arith.constant 5.000000e-01 : f32
    %154 = vector.broadcast %cst_50 : f32 to vector<1x128xf32>
    %155 = arith.mulf %154, %153 : vector<1x128xf32>
    %156 = vector.extract_strided_slice %128 {offsets = [0, 256], sizes = [1, 128], strides = [1, 1]} : vector<1x512xf32> to vector<1x128xf32>
    %157 = vector.extract_strided_slice %130 {offsets = [0, 256], sizes = [1, 128], strides = [1, 1]} : vector<1x512xf32> to vector<1x128xf32>
    %158 = arith.mulf %145, %157 : vector<1x128xf32>
    %159 = arith.addf %156, %158 : vector<1x128xf32>
    %160 = math.tanh %159 : vector<1x128xf32>
    %cst_51 = arith.constant 1.000000e+00 : f32
    %161 = vector.broadcast %cst_51 : f32 to vector<1x128xf32>
    %162 = arith.subf %161, %155 : vector<1x128xf32>
    %163 = arith.mulf %162, %160 : vector<1x128xf32>
    %164 = arith.mulf %155, %126 : vector<1x128xf32>
    %165 = arith.addf %163, %164 : vector<1x128xf32>
    %c4_i32 = arith.constant 4 : i32
    %166 = arith.index_cast %c4_i32 : i32 to index
    %c0_52 = arith.constant 0 : index
    %167 = vector.load %arg7[%166, %c0_52] : memref<16x512xf32, #tpu.memory_space<vmem>>, vector<1x512xf32>
    %cst_53 = arith.constant dense<0.000000e+00> : vector<1x512xf32>
    %168 = tpu.matmul %165, %7, %cst_53 {dimension_numbers = #tpu.dot_dimension_numbers<[1], [0], [0], [1], [0, 0, 1, 1], [], []>} : vector<1x128xf32>, vector<128x512xf32>, vector<1x512xf32> -> vector<1x512xf32>
    %169 = arith.addf %168, %8 : vector<1x512xf32>
    %170 = vector.extract_strided_slice %167 {offsets = [0, 384], sizes = [1, 128], strides = [1, 1]} : vector<1x512xf32> to vector<1x128xf32>
    %171 = vector.extract_strided_slice %169 {offsets = [0, 384], sizes = [1, 128], strides = [1, 1]} : vector<1x512xf32> to vector<1x128xf32>
    %172 = arith.addf %170, %171 : vector<1x128xf32>
    %173 = arith.index_cast %c4_i32 : i32 to index
    %c0_54 = arith.constant 0 : index
    %174 = vector.load %arg5[%173, %c0_54] : memref<16x128xf32, #tpu.memory_space<vmem>>, vector<1x128xf32>
    tpu.vector_store %arg5[%173, %c0_54], %172 {strides = array<i32>} : memref<16x128xf32, #tpu.memory_space<vmem>>, vector<1x128xf32>,
    %175 = vector.extract_strided_slice %167 {offsets = [0, 0], sizes = [1, 128], strides = [1, 1]} : vector<1x512xf32> to vector<1x128xf32>
    %176 = vector.extract_strided_slice %169 {offsets = [0, 0], sizes = [1, 128], strides = [1, 1]} : vector<1x512xf32> to vector<1x128xf32>
    %177 = arith.addf %175, %176 : vector<1x128xf32>
    %cst_55 = arith.constant 5.000000e-01 : f32
    %178 = vector.broadcast %cst_55 : f32 to vector<1x128xf32>
    %179 = arith.mulf %178, %177 : vector<1x128xf32>
    %180 = math.tanh %179 : vector<1x128xf32>
    %cst_56 = arith.constant 1.000000e+00 : f32
    %181 = vector.broadcast %cst_56 : f32 to vector<1x128xf32>
    %182 = arith.addf %180, %181 : vector<1x128xf32>
    %cst_57 = arith.constant 5.000000e-01 : f32
    %183 = vector.broadcast %cst_57 : f32 to vector<1x128xf32>
    %184 = arith.mulf %183, %182 : vector<1x128xf32>
    %185 = vector.extract_strided_slice %167 {offsets = [0, 128], sizes = [1, 128], strides = [1, 1]} : vector<1x512xf32> to vector<1x128xf32>
    %186 = vector.extract_strided_slice %169 {offsets = [0, 128], sizes = [1, 128], strides = [1, 1]} : vector<1x512xf32> to vector<1x128xf32>
    %187 = arith.addf %185, %186 : vector<1x128xf32>
    %cst_58 = arith.constant 5.000000e-01 : f32
    %188 = vector.broadcast %cst_58 : f32 to vector<1x128xf32>
    %189 = arith.mulf %188, %187 : vector<1x128xf32>
    %190 = math.tanh %189 : vector<1x128xf32>
    %cst_59 = arith.constant 1.000000e+00 : f32
    %191 = vector.broadcast %cst_59 : f32 to vector<1x128xf32>
    %192 = arith.addf %190, %191 : vector<1x128xf32>
    %cst_60 = arith.constant 5.000000e-01 : f32
    %193 = vector.broadcast %cst_60 : f32 to vector<1x128xf32>
    %194 = arith.mulf %193, %192 : vector<1x128xf32>
    %195 = vector.extract_strided_slice %167 {offsets = [0, 256], sizes = [1, 128], strides = [1, 1]} : vector<1x512xf32> to vector<1x128xf32>
    %196 = vector.extract_strided_slice %169 {offsets = [0, 256], sizes = [1, 128], strides = [1, 1]} : vector<1x512xf32> to vector<1x128xf32>
    %197 = arith.mulf %184, %196 : vector<1x128xf32>
    %198 = arith.addf %195, %197 : vector<1x128xf32>
    %199 = math.tanh %198 : vector<1x128xf32>
    %cst_61 = arith.constant 1.000000e+00 : f32
    %200 = vector.broadcast %cst_61 : f32 to vector<1x128xf32>
    %201 = arith.subf %200, %194 : vector<1x128xf32>
    %202 = arith.mulf %201, %199 : vector<1x128xf32>
    %203 = arith.mulf %194, %165 : vector<1x128xf32>
    %204 = arith.addf %202, %203 : vector<1x128xf32>
    %c5_i32 = arith.constant 5 : i32
    %205 = arith.index_cast %c5_i32 : i32 to index
    %c0_62 = arith.constant 0 : index
    %206 = vector.load %arg7[%205, %c0_62] : memref<16x512xf32, #tpu.memory_space<vmem>>, vector<1x512xf32>
    %cst_63 = arith.constant dense<0.000000e+00> : vector<1x512xf32>
    %207 = tpu.matmul %204, %7, %cst_63 {dimension_numbers = #tpu.dot_dimension_numbers<[1], [0], [0], [1], [0, 0, 1, 1], [], []>} : vector<1x128xf32>, vector<128x512xf32>, vector<1x512xf32> -> vector<1x512xf32>
    %208 = arith.addf %207, %8 : vector<1x512xf32>
    %209 = vector.extract_strided_slice %206 {offsets = [0, 384], sizes = [1, 128], strides = [1, 1]} : vector<1x512xf32> to vector<1x128xf32>
    %210 = vector.extract_strided_slice %208 {offsets = [0, 384], sizes = [1, 128], strides = [1, 1]} : vector<1x512xf32> to vector<1x128xf32>
    %211 = arith.addf %209, %210 : vector<1x128xf32>
    %212 = arith.index_cast %c5_i32 : i32 to index
    %c0_64 = arith.constant 0 : index
    %213 = vector.load %arg5[%212, %c0_64] : memref<16x128xf32, #tpu.memory_space<vmem>>, vector<1x128xf32>
    tpu.vector_store %arg5[%212, %c0_64], %211 {strides = array<i32>} : memref<16x128xf32, #tpu.memory_space<vmem>>, vector<1x128xf32>,
    %214 = vector.extract_strided_slice %206 {offsets = [0, 0], sizes = [1, 128], strides = [1, 1]} : vector<1x512xf32> to vector<1x128xf32>
    %215 = vector.extract_strided_slice %208 {offsets = [0, 0], sizes = [1, 128], strides = [1, 1]} : vector<1x512xf32> to vector<1x128xf32>
    %216 = arith.addf %214, %215 : vector<1x128xf32>
    %cst_65 = arith.constant 5.000000e-01 : f32
    %217 = vector.broadcast %cst_65 : f32 to vector<1x128xf32>
    %218 = arith.mulf %217, %216 : vector<1x128xf32>
    %219 = math.tanh %218 : vector<1x128xf32>
    %cst_66 = arith.constant 1.000000e+00 : f32
    %220 = vector.broadcast %cst_66 : f32 to vector<1x128xf32>
    %221 = arith.addf %219, %220 : vector<1x128xf32>
    %cst_67 = arith.constant 5.000000e-01 : f32
    %222 = vector.broadcast %cst_67 : f32 to vector<1x128xf32>
    %223 = arith.mulf %222, %221 : vector<1x128xf32>
    %224 = vector.extract_strided_slice %206 {offsets = [0, 128], sizes = [1, 128], strides = [1, 1]} : vector<1x512xf32> to vector<1x128xf32>
    %225 = vector.extract_strided_slice %208 {offsets = [0, 128], sizes = [1, 128], strides = [1, 1]} : vector<1x512xf32> to vector<1x128xf32>
    %226 = arith.addf %224, %225 : vector<1x128xf32>
    %cst_68 = arith.constant 5.000000e-01 : f32
    %227 = vector.broadcast %cst_68 : f32 to vector<1x128xf32>
    %228 = arith.mulf %227, %226 : vector<1x128xf32>
    %229 = math.tanh %228 : vector<1x128xf32>
    %cst_69 = arith.constant 1.000000e+00 : f32
    %230 = vector.broadcast %cst_69 : f32 to vector<1x128xf32>
    %231 = arith.addf %229, %230 : vector<1x128xf32>
    %cst_70 = arith.constant 5.000000e-01 : f32
    %232 = vector.broadcast %cst_70 : f32 to vector<1x128xf32>
    %233 = arith.mulf %232, %231 : vector<1x128xf32>
    %234 = vector.extract_strided_slice %206 {offsets = [0, 256], sizes = [1, 128], strides = [1, 1]} : vector<1x512xf32> to vector<1x128xf32>
    %235 = vector.extract_strided_slice %208 {offsets = [0, 256], sizes = [1, 128], strides = [1, 1]} : vector<1x512xf32> to vector<1x128xf32>
    %236 = arith.mulf %223, %235 : vector<1x128xf32>
    %237 = arith.addf %234, %236 : vector<1x128xf32>
    %238 = math.tanh %237 : vector<1x128xf32>
    %cst_71 = arith.constant 1.000000e+00 : f32
    %239 = vector.broadcast %cst_71 : f32 to vector<1x128xf32>
    %240 = arith.subf %239, %233 : vector<1x128xf32>
    %241 = arith.mulf %240, %238 : vector<1x128xf32>
    %242 = arith.mulf %233, %204 : vector<1x128xf32>
    %243 = arith.addf %241, %242 : vector<1x128xf32>
    %c6_i32 = arith.constant 6 : i32
    %244 = arith.index_cast %c6_i32 : i32 to index
    %c0_72 = arith.constant 0 : index
    %245 = vector.load %arg7[%244, %c0_72] : memref<16x512xf32, #tpu.memory_space<vmem>>, vector<1x512xf32>
    %cst_73 = arith.constant dense<0.000000e+00> : vector<1x512xf32>
    %246 = tpu.matmul %243, %7, %cst_73 {dimension_numbers = #tpu.dot_dimension_numbers<[1], [0], [0], [1], [0, 0, 1, 1], [], []>} : vector<1x128xf32>, vector<128x512xf32>, vector<1x512xf32> -> vector<1x512xf32>
    %247 = arith.addf %246, %8 : vector<1x512xf32>
    %248 = vector.extract_strided_slice %245 {offsets = [0, 384], sizes = [1, 128], strides = [1, 1]} : vector<1x512xf32> to vector<1x128xf32>
    %249 = vector.extract_strided_slice %247 {offsets = [0, 384], sizes = [1, 128], strides = [1, 1]} : vector<1x512xf32> to vector<1x128xf32>
    %250 = arith.addf %248, %249 : vector<1x128xf32>
    %251 = arith.index_cast %c6_i32 : i32 to index
    %c0_74 = arith.constant 0 : index
    %252 = vector.load %arg5[%251, %c0_74] : memref<16x128xf32, #tpu.memory_space<vmem>>, vector<1x128xf32>
    tpu.vector_store %arg5[%251, %c0_74], %250 {strides = array<i32>} : memref<16x128xf32, #tpu.memory_space<vmem>>, vector<1x128xf32>,
    %253 = vector.extract_strided_slice %245 {offsets = [0, 0], sizes = [1, 128], strides = [1, 1]} : vector<1x512xf32> to vector<1x128xf32>
    %254 = vector.extract_strided_slice %247 {offsets = [0, 0], sizes = [1, 128], strides = [1, 1]} : vector<1x512xf32> to vector<1x128xf32>
    %255 = arith.addf %253, %254 : vector<1x128xf32>
    %cst_75 = arith.constant 5.000000e-01 : f32
    %256 = vector.broadcast %cst_75 : f32 to vector<1x128xf32>
    %257 = arith.mulf %256, %255 : vector<1x128xf32>
    %258 = math.tanh %257 : vector<1x128xf32>
    %cst_76 = arith.constant 1.000000e+00 : f32
    %259 = vector.broadcast %cst_76 : f32 to vector<1x128xf32>
    %260 = arith.addf %258, %259 : vector<1x128xf32>
    %cst_77 = arith.constant 5.000000e-01 : f32
    %261 = vector.broadcast %cst_77 : f32 to vector<1x128xf32>
    %262 = arith.mulf %261, %260 : vector<1x128xf32>
    %263 = vector.extract_strided_slice %245 {offsets = [0, 128], sizes = [1, 128], strides = [1, 1]} : vector<1x512xf32> to vector<1x128xf32>
    %264 = vector.extract_strided_slice %247 {offsets = [0, 128], sizes = [1, 128], strides = [1, 1]} : vector<1x512xf32> to vector<1x128xf32>
    %265 = arith.addf %263, %264 : vector<1x128xf32>
    %cst_78 = arith.constant 5.000000e-01 : f32
    %266 = vector.broadcast %cst_78 : f32 to vector<1x128xf32>
    %267 = arith.mulf %266, %265 : vector<1x128xf32>
    %268 = math.tanh %267 : vector<1x128xf32>
    %cst_79 = arith.constant 1.000000e+00 : f32
    %269 = vector.broadcast %cst_79 : f32 to vector<1x128xf32>
    %270 = arith.addf %268, %269 : vector<1x128xf32>
    %cst_80 = arith.constant 5.000000e-01 : f32
    %271 = vector.broadcast %cst_80 : f32 to vector<1x128xf32>
    %272 = arith.mulf %271, %270 : vector<1x128xf32>
    %273 = vector.extract_strided_slice %245 {offsets = [0, 256], sizes = [1, 128], strides = [1, 1]} : vector<1x512xf32> to vector<1x128xf32>
    %274 = vector.extract_strided_slice %247 {offsets = [0, 256], sizes = [1, 128], strides = [1, 1]} : vector<1x512xf32> to vector<1x128xf32>
    %275 = arith.mulf %262, %274 : vector<1x128xf32>
    %276 = arith.addf %273, %275 : vector<1x128xf32>
    %277 = math.tanh %276 : vector<1x128xf32>
    %cst_81 = arith.constant 1.000000e+00 : f32
    %278 = vector.broadcast %cst_81 : f32 to vector<1x128xf32>
    %279 = arith.subf %278, %272 : vector<1x128xf32>
    %280 = arith.mulf %279, %277 : vector<1x128xf32>
    %281 = arith.mulf %272, %243 : vector<1x128xf32>
    %282 = arith.addf %280, %281 : vector<1x128xf32>
    %c7_i32 = arith.constant 7 : i32
    %283 = arith.index_cast %c7_i32 : i32 to index
    %c0_82 = arith.constant 0 : index
    %284 = vector.load %arg7[%283, %c0_82] : memref<16x512xf32, #tpu.memory_space<vmem>>, vector<1x512xf32>
    %cst_83 = arith.constant dense<0.000000e+00> : vector<1x512xf32>
    %285 = tpu.matmul %282, %7, %cst_83 {dimension_numbers = #tpu.dot_dimension_numbers<[1], [0], [0], [1], [0, 0, 1, 1], [], []>} : vector<1x128xf32>, vector<128x512xf32>, vector<1x512xf32> -> vector<1x512xf32>
    %286 = arith.addf %285, %8 : vector<1x512xf32>
    %287 = vector.extract_strided_slice %284 {offsets = [0, 384], sizes = [1, 128], strides = [1, 1]} : vector<1x512xf32> to vector<1x128xf32>
    %288 = vector.extract_strided_slice %286 {offsets = [0, 384], sizes = [1, 128], strides = [1, 1]} : vector<1x512xf32> to vector<1x128xf32>
    %289 = arith.addf %287, %288 : vector<1x128xf32>
    %290 = arith.index_cast %c7_i32 : i32 to index
    %c0_84 = arith.constant 0 : index
    %291 = vector.load %arg5[%290, %c0_84] : memref<16x128xf32, #tpu.memory_space<vmem>>, vector<1x128xf32>
    tpu.vector_store %arg5[%290, %c0_84], %289 {strides = array<i32>} : memref<16x128xf32, #tpu.memory_space<vmem>>, vector<1x128xf32>,
    %292 = vector.extract_strided_slice %284 {offsets = [0, 0], sizes = [1, 128], strides = [1, 1]} : vector<1x512xf32> to vector<1x128xf32>
    %293 = vector.extract_strided_slice %286 {offsets = [0, 0], sizes = [1, 128], strides = [1, 1]} : vector<1x512xf32> to vector<1x128xf32>
    %294 = arith.addf %292, %293 : vector<1x128xf32>
    %cst_85 = arith.constant 5.000000e-01 : f32
    %295 = vector.broadcast %cst_85 : f32 to vector<1x128xf32>
    %296 = arith.mulf %295, %294 : vector<1x128xf32>
    %297 = math.tanh %296 : vector<1x128xf32>
    %cst_86 = arith.constant 1.000000e+00 : f32
    %298 = vector.broadcast %cst_86 : f32 to vector<1x128xf32>
    %299 = arith.addf %297, %298 : vector<1x128xf32>
    %cst_87 = arith.constant 5.000000e-01 : f32
    %300 = vector.broadcast %cst_87 : f32 to vector<1x128xf32>
    %301 = arith.mulf %300, %299 : vector<1x128xf32>
    %302 = vector.extract_strided_slice %284 {offsets = [0, 128], sizes = [1, 128], strides = [1, 1]} : vector<1x512xf32> to vector<1x128xf32>
    %303 = vector.extract_strided_slice %286 {offsets = [0, 128], sizes = [1, 128], strides = [1, 1]} : vector<1x512xf32> to vector<1x128xf32>
    %304 = arith.addf %302, %303 : vector<1x128xf32>
    %cst_88 = arith.constant 5.000000e-01 : f32
    %305 = vector.broadcast %cst_88 : f32 to vector<1x128xf32>
    %306 = arith.mulf %305, %304 : vector<1x128xf32>
    %307 = math.tanh %306 : vector<1x128xf32>
    %cst_89 = arith.constant 1.000000e+00 : f32
    %308 = vector.broadcast %cst_89 : f32 to vector<1x128xf32>
    %309 = arith.addf %307, %308 : vector<1x128xf32>
    %cst_90 = arith.constant 5.000000e-01 : f32
    %310 = vector.broadcast %cst_90 : f32 to vector<1x128xf32>
    %311 = arith.mulf %310, %309 : vector<1x128xf32>
    %312 = vector.extract_strided_slice %284 {offsets = [0, 256], sizes = [1, 128], strides = [1, 1]} : vector<1x512xf32> to vector<1x128xf32>
    %313 = vector.extract_strided_slice %286 {offsets = [0, 256], sizes = [1, 128], strides = [1, 1]} : vector<1x512xf32> to vector<1x128xf32>
    %314 = arith.mulf %301, %313 : vector<1x128xf32>
    %315 = arith.addf %312, %314 : vector<1x128xf32>
    %316 = math.tanh %315 : vector<1x128xf32>
    %cst_91 = arith.constant 1.000000e+00 : f32
    %317 = vector.broadcast %cst_91 : f32 to vector<1x128xf32>
    %318 = arith.subf %317, %311 : vector<1x128xf32>
    %319 = arith.mulf %318, %316 : vector<1x128xf32>
    %320 = arith.mulf %311, %282 : vector<1x128xf32>
    %321 = arith.addf %319, %320 : vector<1x128xf32>
    %c8_i32 = arith.constant 8 : i32
    %322 = arith.index_cast %c8_i32 : i32 to index
    %c0_92 = arith.constant 0 : index
    %323 = vector.load %arg7[%322, %c0_92] : memref<16x512xf32, #tpu.memory_space<vmem>>, vector<1x512xf32>
    %cst_93 = arith.constant dense<0.000000e+00> : vector<1x512xf32>
    %324 = tpu.matmul %321, %7, %cst_93 {dimension_numbers = #tpu.dot_dimension_numbers<[1], [0], [0], [1], [0, 0, 1, 1], [], []>} : vector<1x128xf32>, vector<128x512xf32>, vector<1x512xf32> -> vector<1x512xf32>
    %325 = arith.addf %324, %8 : vector<1x512xf32>
    %326 = vector.extract_strided_slice %323 {offsets = [0, 384], sizes = [1, 128], strides = [1, 1]} : vector<1x512xf32> to vector<1x128xf32>
    %327 = vector.extract_strided_slice %325 {offsets = [0, 384], sizes = [1, 128], strides = [1, 1]} : vector<1x512xf32> to vector<1x128xf32>
    %328 = arith.addf %326, %327 : vector<1x128xf32>
    %329 = arith.index_cast %c8_i32 : i32 to index
    %c0_94 = arith.constant 0 : index
    %330 = vector.load %arg5[%329, %c0_94] : memref<16x128xf32, #tpu.memory_space<vmem>>, vector<1x128xf32>
    tpu.vector_store %arg5[%329, %c0_94], %328 {strides = array<i32>} : memref<16x128xf32, #tpu.memory_space<vmem>>, vector<1x128xf32>,
    %331 = vector.extract_strided_slice %323 {offsets = [0, 0], sizes = [1, 128], strides = [1, 1]} : vector<1x512xf32> to vector<1x128xf32>
    %332 = vector.extract_strided_slice %325 {offsets = [0, 0], sizes = [1, 128], strides = [1, 1]} : vector<1x512xf32> to vector<1x128xf32>
    %333 = arith.addf %331, %332 : vector<1x128xf32>
    %cst_95 = arith.constant 5.000000e-01 : f32
    %334 = vector.broadcast %cst_95 : f32 to vector<1x128xf32>
    %335 = arith.mulf %334, %333 : vector<1x128xf32>
    %336 = math.tanh %335 : vector<1x128xf32>
    %cst_96 = arith.constant 1.000000e+00 : f32
    %337 = vector.broadcast %cst_96 : f32 to vector<1x128xf32>
    %338 = arith.addf %336, %337 : vector<1x128xf32>
    %cst_97 = arith.constant 5.000000e-01 : f32
    %339 = vector.broadcast %cst_97 : f32 to vector<1x128xf32>
    %340 = arith.mulf %339, %338 : vector<1x128xf32>
    %341 = vector.extract_strided_slice %323 {offsets = [0, 128], sizes = [1, 128], strides = [1, 1]} : vector<1x512xf32> to vector<1x128xf32>
    %342 = vector.extract_strided_slice %325 {offsets = [0, 128], sizes = [1, 128], strides = [1, 1]} : vector<1x512xf32> to vector<1x128xf32>
    %343 = arith.addf %341, %342 : vector<1x128xf32>
    %cst_98 = arith.constant 5.000000e-01 : f32
    %344 = vector.broadcast %cst_98 : f32 to vector<1x128xf32>
    %345 = arith.mulf %344, %343 : vector<1x128xf32>
    %346 = math.tanh %345 : vector<1x128xf32>
    %cst_99 = arith.constant 1.000000e+00 : f32
    %347 = vector.broadcast %cst_99 : f32 to vector<1x128xf32>
    %348 = arith.addf %346, %347 : vector<1x128xf32>
    %cst_100 = arith.constant 5.000000e-01 : f32
    %349 = vector.broadcast %cst_100 : f32 to vector<1x128xf32>
    %350 = arith.mulf %349, %348 : vector<1x128xf32>
    %351 = vector.extract_strided_slice %323 {offsets = [0, 256], sizes = [1, 128], strides = [1, 1]} : vector<1x512xf32> to vector<1x128xf32>
    %352 = vector.extract_strided_slice %325 {offsets = [0, 256], sizes = [1, 128], strides = [1, 1]} : vector<1x512xf32> to vector<1x128xf32>
    %353 = arith.mulf %340, %352 : vector<1x128xf32>
    %354 = arith.addf %351, %353 : vector<1x128xf32>
    %355 = math.tanh %354 : vector<1x128xf32>
    %cst_101 = arith.constant 1.000000e+00 : f32
    %356 = vector.broadcast %cst_101 : f32 to vector<1x128xf32>
    %357 = arith.subf %356, %350 : vector<1x128xf32>
    %358 = arith.mulf %357, %355 : vector<1x128xf32>
    %359 = arith.mulf %350, %321 : vector<1x128xf32>
    %360 = arith.addf %358, %359 : vector<1x128xf32>
    %c9_i32 = arith.constant 9 : i32
    %361 = arith.index_cast %c9_i32 : i32 to index
    %c0_102 = arith.constant 0 : index
    %362 = vector.load %arg7[%361, %c0_102] : memref<16x512xf32, #tpu.memory_space<vmem>>, vector<1x512xf32>
    %cst_103 = arith.constant dense<0.000000e+00> : vector<1x512xf32>
    %363 = tpu.matmul %360, %7, %cst_103 {dimension_numbers = #tpu.dot_dimension_numbers<[1], [0], [0], [1], [0, 0, 1, 1], [], []>} : vector<1x128xf32>, vector<128x512xf32>, vector<1x512xf32> -> vector<1x512xf32>
    %364 = arith.addf %363, %8 : vector<1x512xf32>
    %365 = vector.extract_strided_slice %362 {offsets = [0, 384], sizes = [1, 128], strides = [1, 1]} : vector<1x512xf32> to vector<1x128xf32>
    %366 = vector.extract_strided_slice %364 {offsets = [0, 384], sizes = [1, 128], strides = [1, 1]} : vector<1x512xf32> to vector<1x128xf32>
    %367 = arith.addf %365, %366 : vector<1x128xf32>
    %368 = arith.index_cast %c9_i32 : i32 to index
    %c0_104 = arith.constant 0 : index
    %369 = vector.load %arg5[%368, %c0_104] : memref<16x128xf32, #tpu.memory_space<vmem>>, vector<1x128xf32>
    tpu.vector_store %arg5[%368, %c0_104], %367 {strides = array<i32>} : memref<16x128xf32, #tpu.memory_space<vmem>>, vector<1x128xf32>,
    %370 = vector.extract_strided_slice %362 {offsets = [0, 0], sizes = [1, 128], strides = [1, 1]} : vector<1x512xf32> to vector<1x128xf32>
    %371 = vector.extract_strided_slice %364 {offsets = [0, 0], sizes = [1, 128], strides = [1, 1]} : vector<1x512xf32> to vector<1x128xf32>
    %372 = arith.addf %370, %371 : vector<1x128xf32>
    %cst_105 = arith.constant 5.000000e-01 : f32
    %373 = vector.broadcast %cst_105 : f32 to vector<1x128xf32>
    %374 = arith.mulf %373, %372 : vector<1x128xf32>
    %375 = math.tanh %374 : vector<1x128xf32>
    %cst_106 = arith.constant 1.000000e+00 : f32
    %376 = vector.broadcast %cst_106 : f32 to vector<1x128xf32>
    %377 = arith.addf %375, %376 : vector<1x128xf32>
    %cst_107 = arith.constant 5.000000e-01 : f32
    %378 = vector.broadcast %cst_107 : f32 to vector<1x128xf32>
    %379 = arith.mulf %378, %377 : vector<1x128xf32>
    %380 = vector.extract_strided_slice %362 {offsets = [0, 128], sizes = [1, 128], strides = [1, 1]} : vector<1x512xf32> to vector<1x128xf32>
    %381 = vector.extract_strided_slice %364 {offsets = [0, 128], sizes = [1, 128], strides = [1, 1]} : vector<1x512xf32> to vector<1x128xf32>
    %382 = arith.addf %380, %381 : vector<1x128xf32>
    %cst_108 = arith.constant 5.000000e-01 : f32
    %383 = vector.broadcast %cst_108 : f32 to vector<1x128xf32>
    %384 = arith.mulf %383, %382 : vector<1x128xf32>
    %385 = math.tanh %384 : vector<1x128xf32>
    %cst_109 = arith.constant 1.000000e+00 : f32
    %386 = vector.broadcast %cst_109 : f32 to vector<1x128xf32>
    %387 = arith.addf %385, %386 : vector<1x128xf32>
    %cst_110 = arith.constant 5.000000e-01 : f32
    %388 = vector.broadcast %cst_110 : f32 to vector<1x128xf32>
    %389 = arith.mulf %388, %387 : vector<1x128xf32>
    %390 = vector.extract_strided_slice %362 {offsets = [0, 256], sizes = [1, 128], strides = [1, 1]} : vector<1x512xf32> to vector<1x128xf32>
    %391 = vector.extract_strided_slice %364 {offsets = [0, 256], sizes = [1, 128], strides = [1, 1]} : vector<1x512xf32> to vector<1x128xf32>
    %392 = arith.mulf %379, %391 : vector<1x128xf32>
    %393 = arith.addf %390, %392 : vector<1x128xf32>
    %394 = math.tanh %393 : vector<1x128xf32>
    %cst_111 = arith.constant 1.000000e+00 : f32
    %395 = vector.broadcast %cst_111 : f32 to vector<1x128xf32>
    %396 = arith.subf %395, %389 : vector<1x128xf32>
    %397 = arith.mulf %396, %394 : vector<1x128xf32>
    %398 = arith.mulf %389, %360 : vector<1x128xf32>
    %399 = arith.addf %397, %398 : vector<1x128xf32>
    %c10_i32 = arith.constant 10 : i32
    %400 = arith.index_cast %c10_i32 : i32 to index
    %c0_112 = arith.constant 0 : index
    %401 = vector.load %arg7[%400, %c0_112] : memref<16x512xf32, #tpu.memory_space<vmem>>, vector<1x512xf32>
    %cst_113 = arith.constant dense<0.000000e+00> : vector<1x512xf32>
    %402 = tpu.matmul %399, %7, %cst_113 {dimension_numbers = #tpu.dot_dimension_numbers<[1], [0], [0], [1], [0, 0, 1, 1], [], []>} : vector<1x128xf32>, vector<128x512xf32>, vector<1x512xf32> -> vector<1x512xf32>
    %403 = arith.addf %402, %8 : vector<1x512xf32>
    %404 = vector.extract_strided_slice %401 {offsets = [0, 384], sizes = [1, 128], strides = [1, 1]} : vector<1x512xf32> to vector<1x128xf32>
    %405 = vector.extract_strided_slice %403 {offsets = [0, 384], sizes = [1, 128], strides = [1, 1]} : vector<1x512xf32> to vector<1x128xf32>
    %406 = arith.addf %404, %405 : vector<1x128xf32>
    %407 = arith.index_cast %c10_i32 : i32 to index
    %c0_114 = arith.constant 0 : index
    %408 = vector.load %arg5[%407, %c0_114] : memref<16x128xf32, #tpu.memory_space<vmem>>, vector<1x128xf32>
    tpu.vector_store %arg5[%407, %c0_114], %406 {strides = array<i32>} : memref<16x128xf32, #tpu.memory_space<vmem>>, vector<1x128xf32>,
    %409 = vector.extract_strided_slice %401 {offsets = [0, 0], sizes = [1, 128], strides = [1, 1]} : vector<1x512xf32> to vector<1x128xf32>
    %410 = vector.extract_strided_slice %403 {offsets = [0, 0], sizes = [1, 128], strides = [1, 1]} : vector<1x512xf32> to vector<1x128xf32>
    %411 = arith.addf %409, %410 : vector<1x128xf32>
    %cst_115 = arith.constant 5.000000e-01 : f32
    %412 = vector.broadcast %cst_115 : f32 to vector<1x128xf32>
    %413 = arith.mulf %412, %411 : vector<1x128xf32>
    %414 = math.tanh %413 : vector<1x128xf32>
    %cst_116 = arith.constant 1.000000e+00 : f32
    %415 = vector.broadcast %cst_116 : f32 to vector<1x128xf32>
    %416 = arith.addf %414, %415 : vector<1x128xf32>
    %cst_117 = arith.constant 5.000000e-01 : f32
    %417 = vector.broadcast %cst_117 : f32 to vector<1x128xf32>
    %418 = arith.mulf %417, %416 : vector<1x128xf32>
    %419 = vector.extract_strided_slice %401 {offsets = [0, 128], sizes = [1, 128], strides = [1, 1]} : vector<1x512xf32> to vector<1x128xf32>
    %420 = vector.extract_strided_slice %403 {offsets = [0, 128], sizes = [1, 128], strides = [1, 1]} : vector<1x512xf32> to vector<1x128xf32>
    %421 = arith.addf %419, %420 : vector<1x128xf32>
    %cst_118 = arith.constant 5.000000e-01 : f32
    %422 = vector.broadcast %cst_118 : f32 to vector<1x128xf32>
    %423 = arith.mulf %422, %421 : vector<1x128xf32>
    %424 = math.tanh %423 : vector<1x128xf32>
    %cst_119 = arith.constant 1.000000e+00 : f32
    %425 = vector.broadcast %cst_119 : f32 to vector<1x128xf32>
    %426 = arith.addf %424, %425 : vector<1x128xf32>
    %cst_120 = arith.constant 5.000000e-01 : f32
    %427 = vector.broadcast %cst_120 : f32 to vector<1x128xf32>
    %428 = arith.mulf %427, %426 : vector<1x128xf32>
    %429 = vector.extract_strided_slice %401 {offsets = [0, 256], sizes = [1, 128], strides = [1, 1]} : vector<1x512xf32> to vector<1x128xf32>
    %430 = vector.extract_strided_slice %403 {offsets = [0, 256], sizes = [1, 128], strides = [1, 1]} : vector<1x512xf32> to vector<1x128xf32>
    %431 = arith.mulf %418, %430 : vector<1x128xf32>
    %432 = arith.addf %429, %431 : vector<1x128xf32>
    %433 = math.tanh %432 : vector<1x128xf32>
    %cst_121 = arith.constant 1.000000e+00 : f32
    %434 = vector.broadcast %cst_121 : f32 to vector<1x128xf32>
    %435 = arith.subf %434, %428 : vector<1x128xf32>
    %436 = arith.mulf %435, %433 : vector<1x128xf32>
    %437 = arith.mulf %428, %399 : vector<1x128xf32>
    %438 = arith.addf %436, %437 : vector<1x128xf32>
    %c11_i32 = arith.constant 11 : i32
    %439 = arith.index_cast %c11_i32 : i32 to index
    %c0_122 = arith.constant 0 : index
    %440 = vector.load %arg7[%439, %c0_122] : memref<16x512xf32, #tpu.memory_space<vmem>>, vector<1x512xf32>
    %cst_123 = arith.constant dense<0.000000e+00> : vector<1x512xf32>
    %441 = tpu.matmul %438, %7, %cst_123 {dimension_numbers = #tpu.dot_dimension_numbers<[1], [0], [0], [1], [0, 0, 1, 1], [], []>} : vector<1x128xf32>, vector<128x512xf32>, vector<1x512xf32> -> vector<1x512xf32>
    %442 = arith.addf %441, %8 : vector<1x512xf32>
    %443 = vector.extract_strided_slice %440 {offsets = [0, 384], sizes = [1, 128], strides = [1, 1]} : vector<1x512xf32> to vector<1x128xf32>
    %444 = vector.extract_strided_slice %442 {offsets = [0, 384], sizes = [1, 128], strides = [1, 1]} : vector<1x512xf32> to vector<1x128xf32>
    %445 = arith.addf %443, %444 : vector<1x128xf32>
    %446 = arith.index_cast %c11_i32 : i32 to index
    %c0_124 = arith.constant 0 : index
    %447 = vector.load %arg5[%446, %c0_124] : memref<16x128xf32, #tpu.memory_space<vmem>>, vector<1x128xf32>
    tpu.vector_store %arg5[%446, %c0_124], %445 {strides = array<i32>} : memref<16x128xf32, #tpu.memory_space<vmem>>, vector<1x128xf32>,
    %448 = vector.extract_strided_slice %440 {offsets = [0, 0], sizes = [1, 128], strides = [1, 1]} : vector<1x512xf32> to vector<1x128xf32>
    %449 = vector.extract_strided_slice %442 {offsets = [0, 0], sizes = [1, 128], strides = [1, 1]} : vector<1x512xf32> to vector<1x128xf32>
    %450 = arith.addf %448, %449 : vector<1x128xf32>
    %cst_125 = arith.constant 5.000000e-01 : f32
    %451 = vector.broadcast %cst_125 : f32 to vector<1x128xf32>
    %452 = arith.mulf %451, %450 : vector<1x128xf32>
    %453 = math.tanh %452 : vector<1x128xf32>
    %cst_126 = arith.constant 1.000000e+00 : f32
    %454 = vector.broadcast %cst_126 : f32 to vector<1x128xf32>
    %455 = arith.addf %453, %454 : vector<1x128xf32>
    %cst_127 = arith.constant 5.000000e-01 : f32
    %456 = vector.broadcast %cst_127 : f32 to vector<1x128xf32>
    %457 = arith.mulf %456, %455 : vector<1x128xf32>
    %458 = vector.extract_strided_slice %440 {offsets = [0, 128], sizes = [1, 128], strides = [1, 1]} : vector<1x512xf32> to vector<1x128xf32>
    %459 = vector.extract_strided_slice %442 {offsets = [0, 128], sizes = [1, 128], strides = [1, 1]} : vector<1x512xf32> to vector<1x128xf32>
    %460 = arith.addf %458, %459 : vector<1x128xf32>
    %cst_128 = arith.constant 5.000000e-01 : f32
    %461 = vector.broadcast %cst_128 : f32 to vector<1x128xf32>
    %462 = arith.mulf %461, %460 : vector<1x128xf32>
    %463 = math.tanh %462 : vector<1x128xf32>
    %cst_129 = arith.constant 1.000000e+00 : f32
    %464 = vector.broadcast %cst_129 : f32 to vector<1x128xf32>
    %465 = arith.addf %463, %464 : vector<1x128xf32>
    %cst_130 = arith.constant 5.000000e-01 : f32
    %466 = vector.broadcast %cst_130 : f32 to vector<1x128xf32>
    %467 = arith.mulf %466, %465 : vector<1x128xf32>
    %468 = vector.extract_strided_slice %440 {offsets = [0, 256], sizes = [1, 128], strides = [1, 1]} : vector<1x512xf32> to vector<1x128xf32>
    %469 = vector.extract_strided_slice %442 {offsets = [0, 256], sizes = [1, 128], strides = [1, 1]} : vector<1x512xf32> to vector<1x128xf32>
    %470 = arith.mulf %457, %469 : vector<1x128xf32>
    %471 = arith.addf %468, %470 : vector<1x128xf32>
    %472 = math.tanh %471 : vector<1x128xf32>
    %cst_131 = arith.constant 1.000000e+00 : f32
    %473 = vector.broadcast %cst_131 : f32 to vector<1x128xf32>
    %474 = arith.subf %473, %467 : vector<1x128xf32>
    %475 = arith.mulf %474, %472 : vector<1x128xf32>
    %476 = arith.mulf %467, %438 : vector<1x128xf32>
    %477 = arith.addf %475, %476 : vector<1x128xf32>
    %c12_i32 = arith.constant 12 : i32
    %478 = arith.index_cast %c12_i32 : i32 to index
    %c0_132 = arith.constant 0 : index
    %479 = vector.load %arg7[%478, %c0_132] : memref<16x512xf32, #tpu.memory_space<vmem>>, vector<1x512xf32>
    %cst_133 = arith.constant dense<0.000000e+00> : vector<1x512xf32>
    %480 = tpu.matmul %477, %7, %cst_133 {dimension_numbers = #tpu.dot_dimension_numbers<[1], [0], [0], [1], [0, 0, 1, 1], [], []>} : vector<1x128xf32>, vector<128x512xf32>, vector<1x512xf32> -> vector<1x512xf32>
    %481 = arith.addf %480, %8 : vector<1x512xf32>
    %482 = vector.extract_strided_slice %479 {offsets = [0, 384], sizes = [1, 128], strides = [1, 1]} : vector<1x512xf32> to vector<1x128xf32>
    %483 = vector.extract_strided_slice %481 {offsets = [0, 384], sizes = [1, 128], strides = [1, 1]} : vector<1x512xf32> to vector<1x128xf32>
    %484 = arith.addf %482, %483 : vector<1x128xf32>
    %485 = arith.index_cast %c12_i32 : i32 to index
    %c0_134 = arith.constant 0 : index
    %486 = vector.load %arg5[%485, %c0_134] : memref<16x128xf32, #tpu.memory_space<vmem>>, vector<1x128xf32>
    tpu.vector_store %arg5[%485, %c0_134], %484 {strides = array<i32>} : memref<16x128xf32, #tpu.memory_space<vmem>>, vector<1x128xf32>,
    %487 = vector.extract_strided_slice %479 {offsets = [0, 0], sizes = [1, 128], strides = [1, 1]} : vector<1x512xf32> to vector<1x128xf32>
    %488 = vector.extract_strided_slice %481 {offsets = [0, 0], sizes = [1, 128], strides = [1, 1]} : vector<1x512xf32> to vector<1x128xf32>
    %489 = arith.addf %487, %488 : vector<1x128xf32>
    %cst_135 = arith.constant 5.000000e-01 : f32
    %490 = vector.broadcast %cst_135 : f32 to vector<1x128xf32>
    %491 = arith.mulf %490, %489 : vector<1x128xf32>
    %492 = math.tanh %491 : vector<1x128xf32>
    %cst_136 = arith.constant 1.000000e+00 : f32
    %493 = vector.broadcast %cst_136 : f32 to vector<1x128xf32>
    %494 = arith.addf %492, %493 : vector<1x128xf32>
    %cst_137 = arith.constant 5.000000e-01 : f32
    %495 = vector.broadcast %cst_137 : f32 to vector<1x128xf32>
    %496 = arith.mulf %495, %494 : vector<1x128xf32>
    %497 = vector.extract_strided_slice %479 {offsets = [0, 128], sizes = [1, 128], strides = [1, 1]} : vector<1x512xf32> to vector<1x128xf32>
    %498 = vector.extract_strided_slice %481 {offsets = [0, 128], sizes = [1, 128], strides = [1, 1]} : vector<1x512xf32> to vector<1x128xf32>
    %499 = arith.addf %497, %498 : vector<1x128xf32>
    %cst_138 = arith.constant 5.000000e-01 : f32
    %500 = vector.broadcast %cst_138 : f32 to vector<1x128xf32>
    %501 = arith.mulf %500, %499 : vector<1x128xf32>
    %502 = math.tanh %501 : vector<1x128xf32>
    %cst_139 = arith.constant 1.000000e+00 : f32
    %503 = vector.broadcast %cst_139 : f32 to vector<1x128xf32>
    %504 = arith.addf %502, %503 : vector<1x128xf32>
    %cst_140 = arith.constant 5.000000e-01 : f32
    %505 = vector.broadcast %cst_140 : f32 to vector<1x128xf32>
    %506 = arith.mulf %505, %504 : vector<1x128xf32>
    %507 = vector.extract_strided_slice %479 {offsets = [0, 256], sizes = [1, 128], strides = [1, 1]} : vector<1x512xf32> to vector<1x128xf32>
    %508 = vector.extract_strided_slice %481 {offsets = [0, 256], sizes = [1, 128], strides = [1, 1]} : vector<1x512xf32> to vector<1x128xf32>
    %509 = arith.mulf %496, %508 : vector<1x128xf32>
    %510 = arith.addf %507, %509 : vector<1x128xf32>
    %511 = math.tanh %510 : vector<1x128xf32>
    %cst_141 = arith.constant 1.000000e+00 : f32
    %512 = vector.broadcast %cst_141 : f32 to vector<1x128xf32>
    %513 = arith.subf %512, %506 : vector<1x128xf32>
    %514 = arith.mulf %513, %511 : vector<1x128xf32>
    %515 = arith.mulf %506, %477 : vector<1x128xf32>
    %516 = arith.addf %514, %515 : vector<1x128xf32>
    %c13_i32 = arith.constant 13 : i32
    %517 = arith.index_cast %c13_i32 : i32 to index
    %c0_142 = arith.constant 0 : index
    %518 = vector.load %arg7[%517, %c0_142] : memref<16x512xf32, #tpu.memory_space<vmem>>, vector<1x512xf32>
    %cst_143 = arith.constant dense<0.000000e+00> : vector<1x512xf32>
    %519 = tpu.matmul %516, %7, %cst_143 {dimension_numbers = #tpu.dot_dimension_numbers<[1], [0], [0], [1], [0, 0, 1, 1], [], []>} : vector<1x128xf32>, vector<128x512xf32>, vector<1x512xf32> -> vector<1x512xf32>
    %520 = arith.addf %519, %8 : vector<1x512xf32>
    %521 = vector.extract_strided_slice %518 {offsets = [0, 384], sizes = [1, 128], strides = [1, 1]} : vector<1x512xf32> to vector<1x128xf32>
    %522 = vector.extract_strided_slice %520 {offsets = [0, 384], sizes = [1, 128], strides = [1, 1]} : vector<1x512xf32> to vector<1x128xf32>
    %523 = arith.addf %521, %522 : vector<1x128xf32>
    %524 = arith.index_cast %c13_i32 : i32 to index
    %c0_144 = arith.constant 0 : index
    %525 = vector.load %arg5[%524, %c0_144] : memref<16x128xf32, #tpu.memory_space<vmem>>, vector<1x128xf32>
    tpu.vector_store %arg5[%524, %c0_144], %523 {strides = array<i32>} : memref<16x128xf32, #tpu.memory_space<vmem>>, vector<1x128xf32>,
    %526 = vector.extract_strided_slice %518 {offsets = [0, 0], sizes = [1, 128], strides = [1, 1]} : vector<1x512xf32> to vector<1x128xf32>
    %527 = vector.extract_strided_slice %520 {offsets = [0, 0], sizes = [1, 128], strides = [1, 1]} : vector<1x512xf32> to vector<1x128xf32>
    %528 = arith.addf %526, %527 : vector<1x128xf32>
    %cst_145 = arith.constant 5.000000e-01 : f32
    %529 = vector.broadcast %cst_145 : f32 to vector<1x128xf32>
    %530 = arith.mulf %529, %528 : vector<1x128xf32>
    %531 = math.tanh %530 : vector<1x128xf32>
    %cst_146 = arith.constant 1.000000e+00 : f32
    %532 = vector.broadcast %cst_146 : f32 to vector<1x128xf32>
    %533 = arith.addf %531, %532 : vector<1x128xf32>
    %cst_147 = arith.constant 5.000000e-01 : f32
    %534 = vector.broadcast %cst_147 : f32 to vector<1x128xf32>
    %535 = arith.mulf %534, %533 : vector<1x128xf32>
    %536 = vector.extract_strided_slice %518 {offsets = [0, 128], sizes = [1, 128], strides = [1, 1]} : vector<1x512xf32> to vector<1x128xf32>
    %537 = vector.extract_strided_slice %520 {offsets = [0, 128], sizes = [1, 128], strides = [1, 1]} : vector<1x512xf32> to vector<1x128xf32>
    %538 = arith.addf %536, %537 : vector<1x128xf32>
    %cst_148 = arith.constant 5.000000e-01 : f32
    %539 = vector.broadcast %cst_148 : f32 to vector<1x128xf32>
    %540 = arith.mulf %539, %538 : vector<1x128xf32>
    %541 = math.tanh %540 : vector<1x128xf32>
    %cst_149 = arith.constant 1.000000e+00 : f32
    %542 = vector.broadcast %cst_149 : f32 to vector<1x128xf32>
    %543 = arith.addf %541, %542 : vector<1x128xf32>
    %cst_150 = arith.constant 5.000000e-01 : f32
    %544 = vector.broadcast %cst_150 : f32 to vector<1x128xf32>
    %545 = arith.mulf %544, %543 : vector<1x128xf32>
    %546 = vector.extract_strided_slice %518 {offsets = [0, 256], sizes = [1, 128], strides = [1, 1]} : vector<1x512xf32> to vector<1x128xf32>
    %547 = vector.extract_strided_slice %520 {offsets = [0, 256], sizes = [1, 128], strides = [1, 1]} : vector<1x512xf32> to vector<1x128xf32>
    %548 = arith.mulf %535, %547 : vector<1x128xf32>
    %549 = arith.addf %546, %548 : vector<1x128xf32>
    %550 = math.tanh %549 : vector<1x128xf32>
    %cst_151 = arith.constant 1.000000e+00 : f32
    %551 = vector.broadcast %cst_151 : f32 to vector<1x128xf32>
    %552 = arith.subf %551, %545 : vector<1x128xf32>
    %553 = arith.mulf %552, %550 : vector<1x128xf32>
    %554 = arith.mulf %545, %516 : vector<1x128xf32>
    %555 = arith.addf %553, %554 : vector<1x128xf32>
    %c14_i32 = arith.constant 14 : i32
    %556 = arith.index_cast %c14_i32 : i32 to index
    %c0_152 = arith.constant 0 : index
    %557 = vector.load %arg7[%556, %c0_152] : memref<16x512xf32, #tpu.memory_space<vmem>>, vector<1x512xf32>
    %cst_153 = arith.constant dense<0.000000e+00> : vector<1x512xf32>
    %558 = tpu.matmul %555, %7, %cst_153 {dimension_numbers = #tpu.dot_dimension_numbers<[1], [0], [0], [1], [0, 0, 1, 1], [], []>} : vector<1x128xf32>, vector<128x512xf32>, vector<1x512xf32> -> vector<1x512xf32>
    %559 = arith.addf %558, %8 : vector<1x512xf32>
    %560 = vector.extract_strided_slice %557 {offsets = [0, 384], sizes = [1, 128], strides = [1, 1]} : vector<1x512xf32> to vector<1x128xf32>
    %561 = vector.extract_strided_slice %559 {offsets = [0, 384], sizes = [1, 128], strides = [1, 1]} : vector<1x512xf32> to vector<1x128xf32>
    %562 = arith.addf %560, %561 : vector<1x128xf32>
    %563 = arith.index_cast %c14_i32 : i32 to index
    %c0_154 = arith.constant 0 : index
    %564 = vector.load %arg5[%563, %c0_154] : memref<16x128xf32, #tpu.memory_space<vmem>>, vector<1x128xf32>
    tpu.vector_store %arg5[%563, %c0_154], %562 {strides = array<i32>} : memref<16x128xf32, #tpu.memory_space<vmem>>, vector<1x128xf32>,
    %565 = vector.extract_strided_slice %557 {offsets = [0, 0], sizes = [1, 128], strides = [1, 1]} : vector<1x512xf32> to vector<1x128xf32>
    %566 = vector.extract_strided_slice %559 {offsets = [0, 0], sizes = [1, 128], strides = [1, 1]} : vector<1x512xf32> to vector<1x128xf32>
    %567 = arith.addf %565, %566 : vector<1x128xf32>
    %cst_155 = arith.constant 5.000000e-01 : f32
    %568 = vector.broadcast %cst_155 : f32 to vector<1x128xf32>
    %569 = arith.mulf %568, %567 : vector<1x128xf32>
    %570 = math.tanh %569 : vector<1x128xf32>
    %cst_156 = arith.constant 1.000000e+00 : f32
    %571 = vector.broadcast %cst_156 : f32 to vector<1x128xf32>
    %572 = arith.addf %570, %571 : vector<1x128xf32>
    %cst_157 = arith.constant 5.000000e-01 : f32
    %573 = vector.broadcast %cst_157 : f32 to vector<1x128xf32>
    %574 = arith.mulf %573, %572 : vector<1x128xf32>
    %575 = vector.extract_strided_slice %557 {offsets = [0, 128], sizes = [1, 128], strides = [1, 1]} : vector<1x512xf32> to vector<1x128xf32>
    %576 = vector.extract_strided_slice %559 {offsets = [0, 128], sizes = [1, 128], strides = [1, 1]} : vector<1x512xf32> to vector<1x128xf32>
    %577 = arith.addf %575, %576 : vector<1x128xf32>
    %cst_158 = arith.constant 5.000000e-01 : f32
    %578 = vector.broadcast %cst_158 : f32 to vector<1x128xf32>
    %579 = arith.mulf %578, %577 : vector<1x128xf32>
    %580 = math.tanh %579 : vector<1x128xf32>
    %cst_159 = arith.constant 1.000000e+00 : f32
    %581 = vector.broadcast %cst_159 : f32 to vector<1x128xf32>
    %582 = arith.addf %580, %581 : vector<1x128xf32>
    %cst_160 = arith.constant 5.000000e-01 : f32
    %583 = vector.broadcast %cst_160 : f32 to vector<1x128xf32>
    %584 = arith.mulf %583, %582 : vector<1x128xf32>
    %585 = vector.extract_strided_slice %557 {offsets = [0, 256], sizes = [1, 128], strides = [1, 1]} : vector<1x512xf32> to vector<1x128xf32>
    %586 = vector.extract_strided_slice %559 {offsets = [0, 256], sizes = [1, 128], strides = [1, 1]} : vector<1x512xf32> to vector<1x128xf32>
    %587 = arith.mulf %574, %586 : vector<1x128xf32>
    %588 = arith.addf %585, %587 : vector<1x128xf32>
    %589 = math.tanh %588 : vector<1x128xf32>
    %cst_161 = arith.constant 1.000000e+00 : f32
    %590 = vector.broadcast %cst_161 : f32 to vector<1x128xf32>
    %591 = arith.subf %590, %584 : vector<1x128xf32>
    %592 = arith.mulf %591, %589 : vector<1x128xf32>
    %593 = arith.mulf %584, %555 : vector<1x128xf32>
    %594 = arith.addf %592, %593 : vector<1x128xf32>
    %c15_i32 = arith.constant 15 : i32
    %595 = arith.index_cast %c15_i32 : i32 to index
    %c0_162 = arith.constant 0 : index
    %596 = vector.load %arg7[%595, %c0_162] : memref<16x512xf32, #tpu.memory_space<vmem>>, vector<1x512xf32>
    %cst_163 = arith.constant dense<0.000000e+00> : vector<1x512xf32>
    %597 = tpu.matmul %594, %7, %cst_163 {dimension_numbers = #tpu.dot_dimension_numbers<[1], [0], [0], [1], [0, 0, 1, 1], [], []>} : vector<1x128xf32>, vector<128x512xf32>, vector<1x512xf32> -> vector<1x512xf32>
    %598 = arith.addf %597, %8 : vector<1x512xf32>
    %599 = vector.extract_strided_slice %596 {offsets = [0, 384], sizes = [1, 128], strides = [1, 1]} : vector<1x512xf32> to vector<1x128xf32>
    %600 = vector.extract_strided_slice %598 {offsets = [0, 384], sizes = [1, 128], strides = [1, 1]} : vector<1x512xf32> to vector<1x128xf32>
    %601 = arith.addf %599, %600 : vector<1x128xf32>
    %602 = arith.index_cast %c15_i32 : i32 to index
    %c0_164 = arith.constant 0 : index
    %603 = vector.load %arg5[%602, %c0_164] : memref<16x128xf32, #tpu.memory_space<vmem>>, vector<1x128xf32>
    tpu.vector_store %arg5[%602, %c0_164], %601 {strides = array<i32>} : memref<16x128xf32, #tpu.memory_space<vmem>>, vector<1x128xf32>,
    %604 = vector.extract_strided_slice %596 {offsets = [0, 0], sizes = [1, 128], strides = [1, 1]} : vector<1x512xf32> to vector<1x128xf32>
    %605 = vector.extract_strided_slice %598 {offsets = [0, 0], sizes = [1, 128], strides = [1, 1]} : vector<1x512xf32> to vector<1x128xf32>
    %606 = arith.addf %604, %605 : vector<1x128xf32>
    %cst_165 = arith.constant 5.000000e-01 : f32
    %607 = vector.broadcast %cst_165 : f32 to vector<1x128xf32>
    %608 = arith.mulf %607, %606 : vector<1x128xf32>
    %609 = math.tanh %608 : vector<1x128xf32>
    %cst_166 = arith.constant 1.000000e+00 : f32
    %610 = vector.broadcast %cst_166 : f32 to vector<1x128xf32>
    %611 = arith.addf %609, %610 : vector<1x128xf32>
    %cst_167 = arith.constant 5.000000e-01 : f32
    %612 = vector.broadcast %cst_167 : f32 to vector<1x128xf32>
    %613 = arith.mulf %612, %611 : vector<1x128xf32>
    %614 = vector.extract_strided_slice %596 {offsets = [0, 128], sizes = [1, 128], strides = [1, 1]} : vector<1x512xf32> to vector<1x128xf32>
    %615 = vector.extract_strided_slice %598 {offsets = [0, 128], sizes = [1, 128], strides = [1, 1]} : vector<1x512xf32> to vector<1x128xf32>
    %616 = arith.addf %614, %615 : vector<1x128xf32>
    %cst_168 = arith.constant 5.000000e-01 : f32
    %617 = vector.broadcast %cst_168 : f32 to vector<1x128xf32>
    %618 = arith.mulf %617, %616 : vector<1x128xf32>
    %619 = math.tanh %618 : vector<1x128xf32>
    %cst_169 = arith.constant 1.000000e+00 : f32
    %620 = vector.broadcast %cst_169 : f32 to vector<1x128xf32>
    %621 = arith.addf %619, %620 : vector<1x128xf32>
    %cst_170 = arith.constant 5.000000e-01 : f32
    %622 = vector.broadcast %cst_170 : f32 to vector<1x128xf32>
    %623 = arith.mulf %622, %621 : vector<1x128xf32>
    %624 = vector.extract_strided_slice %596 {offsets = [0, 256], sizes = [1, 128], strides = [1, 1]} : vector<1x512xf32> to vector<1x128xf32>
    %625 = vector.extract_strided_slice %598 {offsets = [0, 256], sizes = [1, 128], strides = [1, 1]} : vector<1x512xf32> to vector<1x128xf32>
    %626 = arith.mulf %613, %625 : vector<1x128xf32>
    %627 = arith.addf %624, %626 : vector<1x128xf32>
    %628 = math.tanh %627 : vector<1x128xf32>
    %cst_171 = arith.constant 1.000000e+00 : f32
    %629 = vector.broadcast %cst_171 : f32 to vector<1x128xf32>
    %630 = arith.subf %629, %623 : vector<1x128xf32>
    %631 = arith.mulf %630, %628 : vector<1x128xf32>
    %632 = arith.mulf %623, %594 : vector<1x128xf32>
    %633 = arith.addf %631, %632 : vector<1x128xf32>
    %c16_i32 = arith.constant 16 : i32
    %c0_172 = arith.constant 0 : index
    %c0_173 = arith.constant 0 : index
    %634 = vector.load %arg6[%c0_172, %c0_173] : memref<1x128xf32, #tpu.memory_space<vmem>>, vector<1x128xf32>
    tpu.vector_store %arg6[%c0_172, %c0_173], %633 {strides = array<i32>} : memref<1x128xf32, #tpu.memory_space<vmem>>, vector<1x128xf32>,
    return
  }
}

</mosaic_0001>

<llo_original>
// kernel: tpu_custom_call.1
$region0: #{tpu_custom_call.1}
  #allocation0 [shape = 'u32[]', space=smem, size = 0x4, offset = 0x4, fixed_abs, tag = 'smem constant byte address 0x4 - core index']
  #allocation1 [shape = 'u32[144,128]{1,0:T(1,128)}', space=vmem, size = 0x12000, scoped, tag = 'internal scratch']
  #allocation2 [shape = 'f32[16,512]{1,0:T(8,128)}', space=vmem, size = 0x8000, scoped, tag = 'scratch operand']
  %s0 = inlined_call_operand.hbm [shape: f32[16,33], index: 0, kind: input, shape index: {}]
  %s1 = inlined_call_operand.vmem [shape: f32[1,128], index: 1, kind: input, shape index: {}]
  %s2 = inlined_call_operand.hbm [shape: f32[33,512], index: 2, kind: input, shape index: {}]
  %s3 = inlined_call_operand.hbm [shape: f32[128,512], index: 3, kind: input, shape index: {}]
  %s4 = inlined_call_operand.vmem [shape: f32[2,512], index: 4, kind: input, shape index: {}]
  %s5 = inlined_call_operand.hbm [shape: f32[16,128], index: 5, kind: output, shape index: {0}]
  %s6 = inlined_call_operand.hbm [shape: f32[1,128], index: 6, kind: output, shape index: {1}]
  %7 = xla_tuple %s5, %s6
  %s8 = sld [smem:[#allocation0]]
  $region50: #{tpu_custom_call.1} parent=0
    _
  %s10 = ssub.s32 1, %s8
  %s11 = scalar_select 0, %s10, %s8
  $region1: #{tpu_custom_call.1} parent=0
    #allocation3 [shape = 'u8[8192]{0}', space=vmem, size = 0x2000, scoped, tag = 'input window, operand 0, single buffered']
    #allocation4 [shape = 's32[1]{0}', space=sflag, size = 0x4, scoped, tag = 'scoped memory for tpu_custom_call.1']
    #allocation5 [shape = 's32[1]{0}', space=sflag, size = 0x4, scoped, tag = 'scoped memory for tpu_custom_call.1']
    #allocation6 [shape = 'u8[81920]{0}', space=vmem, size = 0x14000, scoped, tag = 'input window, operand 2, single buffered']
    #allocation7 [shape = 's32[1]{0}', space=sflag, size = 0x4, scoped, tag = 'scoped memory for tpu_custom_call.1']
    #allocation8 [shape = 'u8[262144]{0}', space=vmem, size = 0x40000, scoped, tag = 'input window, operand 3, single buffered']
    #allocation9 [shape = 'u8[8192]{0}', space=vmem, size = 0x2000, scoped, tag = 'output window, operand 0, single buffered']
    #allocation10 [shape = 'u8[512]{0}', space=vmem, size = 0x400, scoped, tag = 'output window, operand 1, single buffered']
    #allocation11 [shape = 's32[1]{0}', space=sflag, size = 0x4, scoped, tag = 'scoped memory for tpu_custom_call.1']
    %12 = vsyncpa [#allocation4], 0
    %13 = vsyncpa [#allocation7], 0
    %14 = vsyncpa [#allocation5], 0
    %15 = vsyncpa [#allocation11], 0
    // Predicated region
    $region2: #{tpu_custom_call.1} parent=1 // pred_check
      _
    $region3: #{tpu_custom_call.1} parent=1 // pred_check_branch
      %17 = sbr.rel (0) target = $region5
    $region4: #{tpu_custom_call.1} parent=1 // pred_region
      %s19 = ssub.s32 256, 256
      %20 = vsyncadd [#allocation4], %s19
      %s21 = sshll.u32 [#allocation3], 4
      %s22 = int_to_ptr.vmem [resolvable:$true] %s21
      %27 = dma.hbm_to_vmem [thread:$0]  %s0, 256, %s22, [#allocation4], 128, 128, 8
    $region5: #{tpu_custom_call.1} parent=1 // pred_fallthru
      _
    // Predicated region
    $region6: #{tpu_custom_call.1} parent=1 // pred_check
      _
    $region7: #{tpu_custom_call.1} parent=1 // pred_check_branch
      %29 = sbr.rel (0) target = $region9
    $region8: #{tpu_custom_call.1} parent=1 // pred_region
      _
    $region9: #{tpu_custom_call.1} parent=1 // pred_fallthru
      _
    // Predicated region
    $region10: #{tpu_custom_call.1} parent=1 // pred_check
      _
    $region11: #{tpu_custom_call.1} parent=1 // pred_check_branch
      %31 = sbr.rel (0) target = $region13
    $region12: #{tpu_custom_call.1} parent=1 // pred_region
      %s33 = ssub.s32 2560, 2560
      %34 = vsyncadd [#allocation7], %s33
      %s35 = sshll.u32 [#allocation6], 4
      %s36 = int_to_ptr.vmem [resolvable:$true] %s35
      %41 = dma.hbm_to_vmem [thread:$0]  %s2, 2560, %s36, [#allocation7], 512, 512, 32
    $region13: #{tpu_custom_call.1} parent=1 // pred_fallthru
      _
    // Predicated region
    $region14: #{tpu_custom_call.1} parent=1 // pred_check
      _
    $region15: #{tpu_custom_call.1} parent=1 // pred_check_branch
      %43 = sbr.rel (0) target = $region17
    $region16: #{tpu_custom_call.1} parent=1 // pred_region
      %s45 = ssub.s32 8192, 8192
      %46 = vsyncadd [#allocation7], %s45
      %s47 = sshll.u32 [#allocation8], 4
      %s48 = int_to_ptr.vmem [resolvable:$true] %s47
      %53 = dma.hbm_to_vmem [thread:$0]  %s3, 8192, %s48, [#allocation7], 512, 512, 32
    $region17: #{tpu_custom_call.1} parent=1 // pred_fallthru
      _
    // Predicated region
    $region18: #{tpu_custom_call.1} parent=1 // pred_check
      _
    $region19: #{tpu_custom_call.1} parent=1 // pred_check_branch
      %55 = sbr.rel (0) target = $region21
    $region20: #{tpu_custom_call.1} parent=1 // pred_region
      _
    $region21: #{tpu_custom_call.1} parent=1 // pred_fallthru
      _
    // Predicated region
    $region22: #{tpu_custom_call.1} parent=1 // pred_check
      _
    $region23: #{tpu_custom_call.1} parent=1 // pred_check_branch
      %57 = sbr.rel (0) target = $region25
    $region24: #{tpu_custom_call.1} parent=1 // pred_region
      %58 = dma.done [#allocation4], 256
    $region25: #{tpu_custom_call.1} parent=1 // pred_fallthru
      _
    // Predicated region
    $region26: #{tpu_custom_call.1} parent=1 // pred_check
      _
    $region27: #{tpu_custom_call.1} parent=1 // pred_check_branch
      %60 = sbr.rel (0) target = $region29
    $region28: #{tpu_custom_call.1} parent=1 // pred_region
      %61 = dma.done [#allocation7], 2560
    $region29: #{tpu_custom_call.1} parent=1 // pred_fallthru
      _
    // Predicated region
    $region30: #{tpu_custom_call.1} parent=1 // pred_check
      _
    $region31: #{tpu_custom_call.1} parent=1 // pred_check_branch
      %63 = sbr.rel (0) target = $region33
    $region32: #{tpu_custom_call.1} parent=1 // pred_region
      %64 = dma.done [#allocation7], 8192
    $region33: #{tpu_custom_call.1} parent=1 // pred_fallthru
      _
    %v65 = vld [vmem:[#allocation3] sm:$0xff]
    %v66 = vld [vmem:[#allocation3 + $0x8] sm:$0xff]
    %v67 = vld [vmem:[#allocation6] sm:$0xff]
    %v68 = vld [vmem:[#allocation6 + $0x8] sm:$0xff]
    %v69 = vld [vmem:[#allocation6 + $0x10] sm:$0xff]
    %v70 = vld [vmem:[#allocation6 + $0x18] sm:$0xff]
    %v71 = vld [vmem:[#allocation6 + $0x20] sm:$0xff]
    %v72 = vld [vmem:[#allocation6 + $0x28] sm:$0xff]
    %v73 = vld [vmem:[#allocation6 + $0x30] sm:$0xff]
    %v74 = vld [vmem:[#allocation6 + $0x38] sm:$0xff]
    %v75 = vld [vmem:[#allocation6 + $0x40] sm:$0xff]
    %v76 = vld [vmem:[#allocation6 + $0x48] sm:$0xff]
    %v77 = vld [vmem:[#allocation6 + $0x50] sm:$0xff]
    %v78 = vld [vmem:[#allocation6 + $0x58] sm:$0xff]
    %v79 = vld [vmem:[#allocation6 + $0x60] sm:$0xff]
    %v80 = vld [vmem:[#allocation6 + $0x68] sm:$0xff]
    %v81 = vld [vmem:[#allocation6 + $0x70] sm:$0xff]
    %v82 = vld [vmem:[#allocation6 + $0x78] sm:$0xff]
    %v83 = vld [vmem:[#allocation6 + $0x80] sm:$0x1]
    %v84 = vld [vmem:[#allocation6 + $0x88] sm:$0x1]
    %v85 = vld [vmem:[#allocation6 + $0x90] sm:$0x1]
    %v86 = vld [vmem:[#allocation6 + $0x98] sm:$0x1]
    %v87 = vld [vmem:[%s4] ss:$2 sm:$0xf]
    %v89 = vlaneseq
    %v90 = vshrl.u32 %v89, 7
    %v91 = vsub.s32 0, %v90
    %v92 = vrot.slane %v87, %v91
    %v93 = vlaneseq
    %v94 = vshrl.u32 %v93, 7
    %v95 = vsub.s32 1, %v94
    %v96 = vrot.slane %v87, %v95
    %v97 = vlaneseq
    %v98 = vshrl.u32 %v97, 7
    %v99 = vsub.s32 2, %v98
    %v100 = vrot.slane %v87, %v99
    %v101 = vlaneseq
    %v102 = vshrl.u32 %v101, 7
    %v103 = vsub.s32 3, %v102
    %v104 = vrot.slane %v87, %v103
    %vm109 = vcmask 269312
    %v111 = vsel %vm109, %v65, 0
    %v114 = vsel %vm109, %v66, 0
    %vm116 = vcmask 1040384
    %v118 = vsel %vm116, %v83, 0
    %v121 = vsel %vm116, %v84, 0
    %v124 = vsel %vm116, %v85, 0
    %v127 = vsel %vm116, %v86, 0
    %129 = vmatprep.subr.mxu0 %v68
    %130 = vmatpush1.msra.mxu0 %v67
    %131 = vmatprep.subr.mxu0 %v72
    %132 = vmatpush1.msra.mxu0 %v71
    %133 = vmatprep.subr.mxu0 %v76
    %134 = vmatpush1.msra.mxu0 %v75
    %135 = vmatprep.subr.mxu0 %v80
    %136 = vmatpush1.msra.mxu0 %v79
    %137 = vmatprep.subr.mxu0 %v121
    %138 = vmatpush1.msra.mxu0 %v118
    %139 = vmatprep.subr.mxu0 0.0
    %140 = vmatpush1.msra.mxu0 0.0
    %141 = vmatprep.subr.mxu0 0.0
    %142 = vmatpush1.msra.mxu0 0.0
    %143 = vmatprep.subr.mxu0 0.0
    %144 = vmatpush1.msra.mxu0 0.0
    %145 = vmatprep.subr.mxu0 0.0
    %146 = vmatpush1.msra.mxu0 0.0
    %147 = vmatprep.subr.mxu0 0.0
    %148 = vmatpush1.msra.mxu0 0.0
    %149 = vmatprep.subr.mxu0 0.0
    %150 = vmatpush1.msra.mxu0 0.0
    %151 = vmatprep.subr.mxu0 0.0
    %152 = vmatpush1.msra.mxu0 0.0
    %153 = vmatprep.subr.mxu0 0.0
    %154 = vmatpush1.msra.mxu0 0.0
    %155 = vmatprep.subr.mxu0 0.0
    %156 = vmatpush1.msra.mxu0 0.0
    %157 = vmatprep.subr.mxu0 0.0
    %158 = vmatpush1.msra.mxu0 0.0
    %159 = vmatprep.subr.mxu0 0.0
    %160 = vmatpush1.msra.mxu0 0.0
    %161 = vmatprep.subr.mxu0 0.0
    %162 = vmatpush1.msra.mxu0 0.0
    %163 = vmatprep.subr.mxu0 0.0
    %164 = vmatpush1.msra.mxu0 0.0
    %165 = vmatprep.subr.mxu0 0.0
    %166 = vmatpush1.msra.mxu0 0.0
    %167 = vmatprep.subr.mxu0 0.0
    %168 = vmatpush1.msra.mxu0 0.0
    %169 = vmatprep.subr.mxu0 0.0
    %170 = vmatpush1.msra.mxu0 0.0
    %171 = vmatprep.subr.mxu0 0.0
    %172 = vmatpush1.msra.mxu0 0.0
    %173 = vmatprep.subr.mxu0 0.0
    %174 = vmatpush1.msra.mxu0 0.0
    %175 = vmatprep.subr.mxu0 0.0
    %176 = vmatpush1.msra.mxu0 0.0
    %177 = vmatprep.subr.mxu0 0.0
    %178 = vmatpush1.msra.mxu0 0.0
    %179 = vmatprep.subr.mxu0 0.0
    %180 = vmatpush1.msra.mxu0 0.0
    %181 = vmatprep.subr.mxu0 0.0
    %182 = vmatpush1.msra.mxu0 0.0
    %183 = vmatprep.subr.mxu0 0.0
    %184 = vmatpush1.msra.mxu0 0.0
    %185 = vmatprep.subr.mxu0 0.0
    %186 = vmatpush1.msra.mxu0 0.0
    %187 = vmatprep.subr.mxu0 0.0
    %188 = vmatpush1.msra.mxu0 0.0
    %189 = vmatprep.subr.mxu0 0.0
    %190 = vmatpush1.msra.mxu0 0.0
    %191 = vmatprep.subr.mxu0 0.0
    %192 = vmatpush1.msra.mxu0 0.0
    %193 = vmatprep.mubr.f32.mxu0 0.0
    %194 = vmatmul.mubr.f32.gmra.mrb[0].mxu0 %v111
    %v195 = vpop.f32.mrb[0].mxu0
    %v196 = vadd.f32 %v92, %v195
    %v197 = vpop.f32.mrb[0].mxu0
    %v198 = vadd.f32 %v96, %v197
    %199 = vmatprep.mubr.f32.mxu0 0.0
    %200 = vmatmul.mubr.f32.gmra.mrb[0].mxu0 %v114
    %v201 = vpop.f32.mrb[0].mxu0
    %v202 = vadd.f32 %v92, %v201
    %v203 = vpop.f32.mrb[0].mxu0
    %v204 = vadd.f32 %v96, %v203
    %205 = vdwg.mxu0
    %206 = vmatprep.subr.mxu0 %v70
    %207 = vmatpush1.msra.mxu0 %v69
    %208 = vmatprep.subr.mxu0 %v74
    %209 = vmatpush1.msra.mxu0 %v73
    %210 = vmatprep.subr.mxu0 %v78
    %211 = vmatpush1.msra.mxu0 %v77
    %212 = vmatprep.subr.mxu0 %v82
    %213 = vmatpush1.msra.mxu0 %v81
    %214 = vmatprep.subr.mxu0 %v127
    %215 = vmatpush1.msra.mxu0 %v124
    %216 = vmatprep.subr.mxu0 0.0
    %217 = vmatpush1.msra.mxu0 0.0
    %218 = vmatprep.subr.mxu0 0.0
    %219 = vmatpush1.msra.mxu0 0.0
    %220 = vmatprep.subr.mxu0 0.0
    %221 = vmatpush1.msra.mxu0 0.0
    %222 = vmatprep.subr.mxu0 0.0
    %223 = vmatpush1.msra.mxu0 0.0
    %224 = vmatprep.subr.mxu0 0.0
    %225 = vmatpush1.msra.mxu0 0.0
    %226 = vmatprep.subr.mxu0 0.0
    %227 = vmatpush1.msra.mxu0 0.0
    %228 = vmatprep.subr.mxu0 0.0
    %229 = vmatpush1.msra.mxu0 0.0
    %230 = vmatprep.subr.mxu0 0.0
    %231 = vmatpush1.msra.mxu0 0.0
    %232 = vmatprep.subr.mxu0 0.0
    %233 = vmatpush1.msra.mxu0 0.0
    %234 = vmatprep.subr.mxu0 0.0
    %235 = vmatpush1.msra.mxu0 0.0
    %236 = vmatprep.subr.mxu0 0.0
    %237 = vmatpush1.msra.mxu0 0.0
    %238 = vmatprep.subr.mxu0 0.0
    %239 = vmatpush1.msra.mxu0 0.0
    %240 = vmatprep.subr.mxu0 0.0
    %241 = vmatpush1.msra.mxu0 0.0
    %242 = vmatprep.subr.mxu0 0.0
    %243 = vmatpush1.msra.mxu0 0.0
    %244 = vmatprep.subr.mxu0 0.0
    %245 = vmatpush1.msra.mxu0 0.0
    %246 = vmatprep.subr.mxu0 0.0
    %247 = vmatpush1.msra.mxu0 0.0
    %248 = vmatprep.subr.mxu0 0.0
    %249 = vmatpush1.msra.mxu0 0.0
    %250 = vmatprep.subr.mxu0 0.0
    %251 = vmatpush1.msra.mxu0 0.0
    %252 = vmatprep.subr.mxu0 0.0
    %253 = vmatpush1.msra.mxu0 0.0
    %254 = vmatprep.subr.mxu0 0.0
    %255 = vmatpush1.msra.mxu0 0.0
    %256 = vmatprep.subr.mxu0 0.0
    %257 = vmatpush1.msra.mxu0 0.0
    %258 = vmatprep.subr.mxu0 0.0
    %259 = vmatpush1.msra.mxu0 0.0
    %260 = vmatprep.subr.mxu0 0.0
    %261 = vmatpush1.msra.mxu0 0.0
    %262 = vmatprep.subr.mxu0 0.0
    %263 = vmatpush1.msra.mxu0 0.0
    %264 = vmatprep.subr.mxu0 0.0
    %265 = vmatpush1.msra.mxu0 0.0
    %266 = vmatprep.subr.mxu0 0.0
    %267 = vmatpush1.msra.mxu0 0.0
    %268 = vmatprep.subr.mxu0 0.0
    %269 = vmatpush1.msra.mxu0 0.0
    %270 = vmatprep.mubr.f32.mxu0 0.0
    %271 = vmatmul.mubr.f32.gmra.mrb[0].mxu0 %v111
    %v272 = vpop.f32.mrb[0].mxu0
    %v273 = vadd.f32 %v100, %v272
    %v274 = vpop.f32.mrb[0].mxu0
    %v275 = vadd.f32 %v104, %v274
    %276 = vmatprep.mubr.f32.mxu0 0.0
    %277 = vmatmul.mubr.f32.gmra.mrb[0].mxu0 %v114
    %v278 = vpop.f32.mrb[0].mxu0
    %v279 = vadd.f32 %v100, %v278
    %v280 = vpop.f32.mrb[0].mxu0
    %v281 = vadd.f32 %v104, %v280
    %282 = vdwg.mxu0
    %283 = vst [vmem:[#allocation2] sm:$0xff] %v196
    %284 = vst [vmem:[#allocation2 + $0x8] sm:$0xff] %v198
    %285 = vst [vmem:[#allocation2 + $0x10] sm:$0xff] %v273
    %286 = vst [vmem:[#allocation2 + $0x18] sm:$0xff] %v275
    %287 = vst [vmem:[#allocation2 + $0x20] sm:$0xff] %v202
    %288 = vst [vmem:[#allocation2 + $0x28] sm:$0xff] %v204
    %289 = vst [vmem:[#allocation2 + $0x30] sm:$0xff] %v279
    %290 = vst [vmem:[#allocation2 + $0x38] sm:$0xff] %v281
    %v291 = vld [vmem:[#allocation8] sm:$0xff]
    %v292 = vld [vmem:[#allocation8 + $0x8] sm:$0xff]
    %v293 = vld [vmem:[#allocation8 + $0x10] sm:$0xff]
    %v294 = vld [vmem:[#allocation8 + $0x18] sm:$0xff]
    %v295 = vld [vmem:[#allocation8 + $0x20] sm:$0xff]
    %v296 = vld [vmem:[#allocation8 + $0x28] sm:$0xff]
    %v297 = vld [vmem:[#allocation8 + $0x30] sm:$0xff]
    %v298 = vld [vmem:[#allocation8 + $0x38] sm:$0xff]
    %v299 = vld [vmem:[#allocation8 + $0x40] sm:$0xff]
    %v300 = vld [vmem:[#allocation8 + $0x48] sm:$0xff]
    %v301 = vld [vmem:[#allocation8 + $0x50] sm:$0xff]
    %v302 = vld [vmem:[#allocation8 + $0x58] sm:$0xff]
    %v303 = vld [vmem:[#allocation8 + $0x60] sm:$0xff]
    %v304 = vld [vmem:[#allocation8 + $0x68] sm:$0xff]
    %v305 = vld [vmem:[#allocation8 + $0x70] sm:$0xff]
    %v306 = vld [vmem:[#allocation8 + $0x78] sm:$0xff]
    %v307 = vld [vmem:[#allocation8 + $0x80] sm:$0xff]
    %v308 = vld [vmem:[#allocation8 + $0x88] sm:$0xff]
    %v309 = vld [vmem:[#allocation8 + $0x90] sm:$0xff]
    %v310 = vld [vmem:[#allocation8 + $0x98] sm:$0xff]
    %v311 = vld [vmem:[#allocation8 + $0xa0] sm:$0xff]
    %v312 = vld [vmem:[#allocation8 + $0xa8] sm:$0xff]
    %v313 = vld [vmem:[#allocation8 + $0xb0] sm:$0xff]
    %v314 = vld [vmem:[#allocation8 + $0xb8] sm:$0xff]
    %v315 = vld [vmem:[#allocation8 + $0xc0] sm:$0xff]
    %v316 = vld [vmem:[#allocation8 + $0xc8] sm:$0xff]
    %v317 = vld [vmem:[#allocation8 + $0xd0] sm:$0xff]
    %v318 = vld [vmem:[#allocation8 + $0xd8] sm:$0xff]
    %v319 = vld [vmem:[#allocation8 + $0xe0] sm:$0xff]
    %v320 = vld [vmem:[#allocation8 + $0xe8] sm:$0xff]
    %v321 = vld [vmem:[#allocation8 + $0xf0] sm:$0xff]
    %v322 = vld [vmem:[#allocation8 + $0xf8] sm:$0xff]
    %v323 = vld [vmem:[#allocation8 + $0x100] sm:$0xff]
    %v324 = vld [vmem:[#allocation8 + $0x108] sm:$0xff]
    %v325 = vld [vmem:[#allocation8 + $0x110] sm:$0xff]
    %v326 = vld [vmem:[#allocation8 + $0x118] sm:$0xff]
    %v327 = vld [vmem:[#allocation8 + $0x120] sm:$0xff]
    %v328 = vld [vmem:[#allocation8 + $0x128] sm:$0xff]
    %v329 = vld [vmem:[#allocation8 + $0x130] sm:$0xff]
    %v330 = vld [vmem:[#allocation8 + $0x138] sm:$0xff]
    %v331 = vld [vmem:[#allocation8 + $0x140] sm:$0xff]
    %v332 = vld [vmem:[#allocation8 + $0x148] sm:$0xff]
    %v333 = vld [vmem:[#allocation8 + $0x150] sm:$0xff]
    %v334 = vld [vmem:[#allocation8 + $0x158] sm:$0xff]
    %v335 = vld [vmem:[#allocation8 + $0x160] sm:$0xff]
    %v336 = vld [vmem:[#allocation8 + $0x168] sm:$0xff]
    %v337 = vld [vmem:[#allocation8 + $0x170] sm:$0xff]
    %v338 = vld [vmem:[#allocation8 + $0x178] sm:$0xff]
    %v339 = vld [vmem:[#allocation8 + $0x180] sm:$0xff]
    %v340 = vld [vmem:[#allocation8 + $0x188] sm:$0xff]
    %v341 = vld [vmem:[#allocation8 + $0x190] sm:$0xff]
    %v342 = vld [vmem:[#allocation8 + $0x198] sm:$0xff]
    %v343 = vld [vmem:[#allocation8 + $0x1a0] sm:$0xff]
    %v344 = vld [vmem:[#allocation8 + $0x1a8] sm:$0xff]
    %v345 = vld [vmem:[#allocation8 + $0x1b0] sm:$0xff]
    %v346 = vld [vmem:[#allocation8 + $0x1b8] sm:$0xff]
    %v347 = vld [vmem:[#allocation8 + $0x1c0] sm:$0xff]
    %v348 = vld [vmem:[#allocation8 + $0x1c8] sm:$0xff]
    %v349 = vld [vmem:[#allocation8 + $0x1d0] sm:$0xff]
    %v350 = vld [vmem:[#allocation8 + $0x1d8] sm:$0xff]
    %v351 = vld [vmem:[#allocation8 + $0x1e0] sm:$0xff]
    %v352 = vld [vmem:[#allocation8 + $0x1e8] sm:$0xff]
    %v353 = vld [vmem:[#allocation8 + $0x1f0] sm:$0xff]
    %v354 = vld [vmem:[#allocation8 + $0x1f8] sm:$0xff]
    %s355 = scalar_lea.vmem %s4, 1
    %v356 = vld [vmem:[%s355] ss:$2 sm:$0xf]
    %v357 = vld [vmem:[%s1] sm:$0x1]
    %v358 = vld [vmem:[#allocation2] ss:$8 sm:$0xf]
    %v360 = vlaneseq
    %v361 = vshrl.u32 %v360, 7
    %v362 = vsub.s32 0, %v361
    %v363 = vrot.slane %v356, %v362
    %v364 = vlaneseq
    %v365 = vshrl.u32 %v364, 7
    %v366 = vsub.s32 1, %v365
    %v367 = vrot.slane %v356, %v366
    %v368 = vlaneseq
    %v369 = vshrl.u32 %v368, 7
    %v370 = vsub.s32 2, %v369
    %v371 = vrot.slane %v356, %v370
    %v372 = vlaneseq
    %v373 = vshrl.u32 %v372, 7
    %v374 = vsub.s32 3, %v373
    %v375 = vrot.slane %v356, %v374
    %380 = vmatprep.subr.mxu0 %v292
    %381 = vmatpush1.msra.mxu0 %v291
    %382 = vmatprep.subr.mxu0 %v296
    %383 = vmatpush1.msra.mxu0 %v295
    %384 = vmatprep.subr.mxu0 %v300
    %385 = vmatpush1.msra.mxu0 %v299
    %386 = vmatprep.subr.mxu0 %v304
    %387 = vmatpush1.msra.mxu0 %v303
    %388 = vmatprep.subr.mxu0 %v308
    %389 = vmatpush1.msra.mxu0 %v307
    %390 = vmatprep.subr.mxu0 %v312
    %391 = vmatpush1.msra.mxu0 %v311
    %392 = vmatprep.subr.mxu0 %v316
    %393 = vmatpush1.msra.mxu0 %v315
    %394 = vmatprep.subr.mxu0 %v320
    %395 = vmatpush1.msra.mxu0 %v319
    %396 = vmatprep.subr.mxu0 %v324
    %397 = vmatpush1.msra.mxu0 %v323
    %398 = vmatprep.subr.mxu0 %v328
    %399 = vmatpush1.msra.mxu0 %v327
    %400 = vmatprep.subr.mxu0 %v332
    %401 = vmatpush1.msra.mxu0 %v331
    %402 = vmatprep.subr.mxu0 %v336
    %403 = vmatpush1.msra.mxu0 %v335
    %404 = vmatprep.subr.mxu0 %v340
    %405 = vmatpush1.msra.mxu0 %v339
    %406 = vmatprep.subr.mxu0 %v344
    %407 = vmatpush1.msra.mxu0 %v343
    %408 = vmatprep.subr.mxu0 %v348
    %409 = vmatpush1.msra.mxu0 %v347
    %410 = vmatprep.subr.mxu0 %v352
    %411 = vmatpush1.msra.mxu0 %v351
    %412 = vmatprep.subr.mxu0 0.0
    %413 = vmatpush1.msra.mxu0 0.0
    %414 = vmatprep.subr.mxu0 0.0
    %415 = vmatpush1.msra.mxu0 0.0
    %416 = vmatprep.subr.mxu0 0.0
    %417 = vmatpush1.msra.mxu0 0.0
    %418 = vmatprep.subr.mxu0 0.0
    %419 = vmatpush1.msra.mxu0 0.0
    %420 = vmatprep.subr.mxu0 0.0
    %421 = vmatpush1.msra.mxu0 0.0
    %422 = vmatprep.subr.mxu0 0.0
    %423 = vmatpush1.msra.mxu0 0.0
    %424 = vmatprep.subr.mxu0 0.0
    %425 = vmatpush1.msra.mxu0 0.0
    %426 = vmatprep.subr.mxu0 0.0
    %427 = vmatpush1.msra.mxu0 0.0
    %428 = vmatprep.subr.mxu0 0.0
    %429 = vmatpush1.msra.mxu0 0.0
    %430 = vmatprep.subr.mxu0 0.0
    %431 = vmatpush1.msra.mxu0 0.0
    %432 = vmatprep.subr.mxu0 0.0
    %433 = vmatpush1.msra.mxu0 0.0
    %434 = vmatprep.subr.mxu0 0.0
    %435 = vmatpush1.msra.mxu0 0.0
    %436 = vmatprep.subr.mxu0 0.0
    %437 = vmatpush1.msra.mxu0 0.0
    %438 = vmatprep.subr.mxu0 0.0
    %439 = vmatpush1.msra.mxu0 0.0
    %440 = vmatprep.subr.mxu0 0.0
    %441 = vmatpush1.msra.mxu0 0.0
    %442 = vmatprep.subr.mxu0 0.0
    %443 = vmatpush1.msra.mxu0 0.0
    %444 = vmatprep.mubr.f32.mxu0 0.0
    %445 = vmatmul.mubr.f32.gmra.mrb[0].mxu0 %v357
    %v446 = vpop.f32.mrb[0].mxu0
    %v447 = vadd.f32 %v363, %v446
    %v448 = vpop.f32.mrb[0].mxu0
    %v449 = vadd.f32 %v367, %v448
    %450 = vdwg.mxu0
    %451 = vmatprep.subr.mxu0 %v294
    %452 = vmatpush1.msra.mxu0 %v293
    %453 = vmatprep.subr.mxu0 %v298
    %454 = vmatpush1.msra.mxu0 %v297
    %455 = vmatprep.subr.mxu0 %v302
    %456 = vmatpush1.msra.mxu0 %v301
    %457 = vmatprep.subr.mxu0 %v306
    %458 = vmatpush1.msra.mxu0 %v305
    %459 = vmatprep.subr.mxu0 %v310
    %460 = vmatpush1.msra.mxu0 %v309
    %461 = vmatprep.subr.mxu0 %v314
    %462 = vmatpush1.msra.mxu0 %v313
    %463 = vmatprep.subr.mxu0 %v318
    %464 = vmatpush1.msra.mxu0 %v317
    %465 = vmatprep.subr.mxu0 %v322
    %466 = vmatpush1.msra.mxu0 %v321
    %467 = vmatprep.subr.mxu0 %v326
    %468 = vmatpush1.msra.mxu0 %v325
    %469 = vmatprep.subr.mxu0 %v330
    %470 = vmatpush1.msra.mxu0 %v329
    %471 = vmatprep.subr.mxu0 %v334
    %472 = vmatpush1.msra.mxu0 %v333
    %473 = vmatprep.subr.mxu0 %v338
    %474 = vmatpush1.msra.mxu0 %v337
    %475 = vmatprep.subr.mxu0 %v342
    %476 = vmatpush1.msra.mxu0 %v341
    %477 = vmatprep.subr.mxu0 %v346
    %478 = vmatpush1.msra.mxu0 %v345
    %479 = vmatprep.subr.mxu0 %v350
    %480 = vmatpush1.msra.mxu0 %v349
    %481 = vmatprep.subr.mxu0 %v354
    %482 = vmatpush1.msra.mxu0 %v353
    %483 = vmatprep.subr.mxu0 0.0
    %484 = vmatpush1.msra.mxu0 0.0
    %485 = vmatprep.subr.mxu0 0.0
    %486 = vmatpush1.msra.mxu0 0.0
    %487 = vmatprep.subr.mxu0 0.0
    %488 = vmatpush1.msra.mxu0 0.0
    %489 = vmatprep.subr.mxu0 0.0
    %490 = vmatpush1.msra.mxu0 0.0
    %491 = vmatprep.subr.mxu0 0.0
    %492 = vmatpush1.msra.mxu0 0.0
    %493 = vmatprep.subr.mxu0 0.0
    %494 = vmatpush1.msra.mxu0 0.0
    %495 = vmatprep.subr.mxu0 0.0
    %496 = vmatpush1.msra.mxu0 0.0
    %497 = vmatprep.subr.mxu0 0.0
    %498 = vmatpush1.msra.mxu0 0.0
    %499 = vmatprep.subr.mxu0 0.0
    %500 = vmatpush1.msra.mxu0 0.0
    %501 = vmatprep.subr.mxu0 0.0
    %502 = vmatpush1.msra.mxu0 0.0
    %503 = vmatprep.subr.mxu0 0.0
    %504 = vmatpush1.msra.mxu0 0.0
    %505 = vmatprep.subr.mxu0 0.0
    %506 = vmatpush1.msra.mxu0 0.0
    %507 = vmatprep.subr.mxu0 0.0
    %508 = vmatpush1.msra.mxu0 0.0
    %509 = vmatprep.subr.mxu0 0.0
    %510 = vmatpush1.msra.mxu0 0.0
    %511 = vmatprep.subr.mxu0 0.0
    %512 = vmatpush1.msra.mxu0 0.0
    %513 = vmatprep.subr.mxu0 0.0
    %514 = vmatpush1.msra.mxu0 0.0
    %515 = vmatprep.mubr.f32.mxu0 0.0
    %516 = vmatmul.mubr.f32.gmra.mrb[0].mxu0 %v357
    %v517 = vpop.f32.mrb[0].mxu0
    %v518 = vadd.f32 %v371, %v517
    %v519 = vpop.f32.mrb[0].mxu0
    %v520 = vadd.f32 %v375, %v519
    %521 = vdwg.mxu0
    %v523 = vrot.slane %v358, 3
    %v525 = vadd.f32 %v523, %v520
    %526 = vst [vmem:[#allocation9] sm:$0x1] %v525
    %v527 = vadd.f32 %v358, %v447
    %v528 = vmul.f32 %v527, 0.5
    %v529 = vtanh.pop %v528
    %v530 = vadd.f32 %v529, 1.0
    %v531 = vmul.f32 %v530, 0.5
    %v532 = vrot.slane %v358, 1
    %v534 = vadd.f32 %v532, %v449
    %v535 = vmul.f32 %v534, 0.5
    %v536 = vtanh.pop %v535
    %v537 = vadd.f32 %v536, 1.0
    %v538 = vmul.f32 %v537, 0.5
    %v539 = vmul.f32 %v531, %v518
    %v540 = vrot.slane %v358, 2
    %v542 = vadd.f32 %v540, %v539
    %v543 = vtanh.pop %v542
    %v544 = vsub.f32 1.0, %v538
    %v545 = vmul.f32 %v544, %v543
    %v546 = vmul.f32 %v538, %v357
    %v547 = vadd.f32 %v545, %v546
    %s548 = scalar_lea.vmem [#allocation2], 1
    %v549 = vld [vmem:[%s548] ss:$8 sm:$0xf]
    %550 = vmatprep.subr.mxu0 %v292
    %551 = vmatpush1.msra.mxu0 %v291
    %552 = vmatprep.subr.mxu0 %v296
    %553 = vmatpush1.msra.mxu0 %v295
    %554 = vmatprep.subr.mxu0 %v300
    %555 = vmatpush1.msra.mxu0 %v299
    %556 = vmatprep.subr.mxu0 %v304
    %557 = vmatpush1.msra.mxu0 %v303
    %558 = vmatprep.subr.mxu0 %v308
    %559 = vmatpush1.msra.mxu0 %v307
    %560 = vmatprep.subr.mxu0 %v312
    %561 = vmatpush1.msra.mxu0 %v311
    %562 = vmatprep.subr.mxu0 %v316
    %563 = vmatpush1.msra.mxu0 %v315
    %564 = vmatprep.subr.mxu0 %v320
    %565 = vmatpush1.msra.mxu0 %v319
    %566 = vmatprep.subr.mxu0 %v324
    %567 = vmatpush1.msra.mxu0 %v323
    %568 = vmatprep.subr.mxu0 %v328
    %569 = vmatpush1.msra.mxu0 %v327
    %570 = vmatprep.subr.mxu0 %v332
    %571 = vmatpush1.msra.mxu0 %v331
    %572 = vmatprep.subr.mxu0 %v336
    %573 = vmatpush1.msra.mxu0 %v335
    %574 = vmatprep.subr.mxu0 %v340
    %575 = vmatpush1.msra.mxu0 %v339
    %576 = vmatprep.subr.mxu0 %v344
    %577 = vmatpush1.msra.mxu0 %v343
    %578 = vmatprep.subr.mxu0 %v348
    %579 = vmatpush1.msra.mxu0 %v347
    %580 = vmatprep.subr.mxu0 %v352
    %581 = vmatpush1.msra.mxu0 %v351
    %582 = vmatprep.subr.mxu0 0.0
    %583 = vmatpush1.msra.mxu0 0.0
    %584 = vmatprep.subr.mxu0 0.0
    %585 = vmatpush1.msra.mxu0 0.0
    %586 = vmatprep.subr.mxu0 0.0
    %587 = vmatpush1.msra.mxu0 0.0
    %588 = vmatprep.subr.mxu0 0.0
    %589 = vmatpush1.msra.mxu0 0.0
    %590 = vmatprep.subr.mxu0 0.0
    %591 = vmatpush1.msra.mxu0 0.0
    %592 = vmatprep.subr.mxu0 0.0
    %593 = vmatpush1.msra.mxu0 0.0
    %594 = vmatprep.subr.mxu0 0.0
    %595 = vmatpush1.msra.mxu0 0.0
    %596 = vmatprep.subr.mxu0 0.0
    %597 = vmatpush1.msra.mxu0 0.0
    %598 = vmatprep.subr.mxu0 0.0
    %599 = vmatpush1.msra.mxu0 0.0
    %600 = vmatprep.subr.mxu0 0.0
    %601 = vmatpush1.msra.mxu0 0.0
    %602 = vmatprep.subr.mxu0 0.0
    %603 = vmatpush1.msra.mxu0 0.0
    %604 = vmatprep.subr.mxu0 0.0
    %605 = vmatpush1.msra.mxu0 0.0
    %606 = vmatprep.subr.mxu0 0.0
    %607 = vmatpush1.msra.mxu0 0.0
    %608 = vmatprep.subr.mxu0 0.0
    %609 = vmatpush1.msra.mxu0 0.0
    %610 = vmatprep.subr.mxu0 0.0
    %611 = vmatpush1.msra.mxu0 0.0
    %612 = vmatprep.subr.mxu0 0.0
    %613 = vmatpush1.msra.mxu0 0.0
    %614 = vmatprep.mubr.f32.mxu0 0.0
    %615 = vmatmul.mubr.f32.gmra.mrb[0].mxu0 %v547
    %v616 = vpop.f32.mrb[0].mxu0
    %v617 = vadd.f32 %v363, %v616
    %v618 = vpop.f32.mrb[0].mxu0
    %v619 = vadd.f32 %v367, %v618
    %620 = vdwg.mxu0
    %621 = vmatprep.subr.mxu0 %v294
    %622 = vmatpush1.msra.mxu0 %v293
    %623 = vmatprep.subr.mxu0 %v298
    %624 = vmatpush1.msra.mxu0 %v297
    %625 = vmatprep.subr.mxu0 %v302
    %626 = vmatpush1.msra.mxu0 %v301
    %627 = vmatprep.subr.mxu0 %v306
    %628 = vmatpush1.msra.mxu0 %v305
    %629 = vmatprep.subr.mxu0 %v310
    %630 = vmatpush1.msra.mxu0 %v309
    %631 = vmatprep.subr.mxu0 %v314
    %632 = vmatpush1.msra.mxu0 %v313
    %633 = vmatprep.subr.mxu0 %v318
    %634 = vmatpush1.msra.mxu0 %v317
    %635 = vmatprep.subr.mxu0 %v322
    %636 = vmatpush1.msra.mxu0 %v321
    %637 = vmatprep.subr.mxu0 %v326
    %638 = vmatpush1.msra.mxu0 %v325
    %639 = vmatprep.subr.mxu0 %v330
    %640 = vmatpush1.msra.mxu0 %v329
    %641 = vmatprep.subr.mxu0 %v334
    %642 = vmatpush1.msra.mxu0 %v333
    %643 = vmatprep.subr.mxu0 %v338
    %644 = vmatpush1.msra.mxu0 %v337
    %645 = vmatprep.subr.mxu0 %v342
    %646 = vmatpush1.msra.mxu0 %v341
    %647 = vmatprep.subr.mxu0 %v346
    %648 = vmatpush1.msra.mxu0 %v345
    %649 = vmatprep.subr.mxu0 %v350
    %650 = vmatpush1.msra.mxu0 %v349
    %651 = vmatprep.subr.mxu0 %v354
    %652 = vmatpush1.msra.mxu0 %v353
    %653 = vmatprep.subr.mxu0 0.0
    %654 = vmatpush1.msra.mxu0 0.0
    %655 = vmatprep.subr.mxu0 0.0
    %656 = vmatpush1.msra.mxu0 0.0
    %657 = vmatprep.subr.mxu0 0.0
    %658 = vmatpush1.msra.mxu0 0.0
    %659 = vmatprep.subr.mxu0 0.0
    %660 = vmatpush1.msra.mxu0 0.0
    %661 = vmatprep.subr.mxu0 0.0
    %662 = vmatpush1.msra.mxu0 0.0
    %663 = vmatprep.subr.mxu0 0.0
    %664 = vmatpush1.msra.mxu0 0.0
    %665 = vmatprep.subr.mxu0 0.0
    %666 = vmatpush1.msra.mxu0 0.0
    %667 = vmatprep.subr.mxu0 0.0
    %668 = vmatpush1.msra.mxu0 0.0
    %669 = vmatprep.subr.mxu0 0.0
    %670 = vmatpush1.msra.mxu0 0.0
    %671 = vmatprep.subr.mxu0 0.0
    %672 = vmatpush1.msra.mxu0 0.0
    %673 = vmatprep.subr.mxu0 0.0
    %674 = vmatpush1.msra.mxu0 0.0
    %675 = vmatprep.subr.mxu0 0.0
    %676 = vmatpush1.msra.mxu0 0.0
    %677 = vmatprep.subr.mxu0 0.0
    %678 = vmatpush1.msra.mxu0 0.0
    %679 = vmatprep.subr.mxu0 0.0
    %680 = vmatpush1.msra.mxu0 0.0
    %681 = vmatprep.subr.mxu0 0.0
    %682 = vmatpush1.msra.mxu0 0.0
    %683 = vmatprep.subr.mxu0 0.0
    %684 = vmatpush1.msra.mxu0 0.0
    %685 = vmatprep.mubr.f32.mxu0 0.0
    %686 = vmatmul.mubr.f32.gmra.mrb[0].mxu0 %v547
    %v687 = vpop.f32.mrb[0].mxu0
    %v688 = vadd.f32 %v371, %v687
    %v689 = vpop.f32.mrb[0].mxu0
    %v690 = vadd.f32 %v375, %v689
    %691 = vdwg.mxu0
    %v693 = vrot.slane %v549, 3
    %v695 = vadd.f32 %v693, %v690
    %696 = vst [vmem:[#allocation9 + $0x1] sm:$0x1] %v695
    %v697 = vadd.f32 %v549, %v617
    %v698 = vmul.f32 %v697, 0.5
    %v699 = vtanh.pop %v698
    %v700 = vadd.f32 %v699, 1.0
    %v701 = vmul.f32 %v700, 0.5
    %v702 = vrot.slane %v549, 1
    %v704 = vadd.f32 %v702, %v619
    %v705 = vmul.f32 %v704, 0.5
    %v706 = vtanh.pop %v705
    %v707 = vadd.f32 %v706, 1.0
    %v708 = vmul.f32 %v707, 0.5
    %v709 = vmul.f32 %v701, %v688
    %v710 = vrot.slane %v549, 2
    %v712 = vadd.f32 %v710, %v709
    %v713 = vtanh.pop %v712
    %v714 = vsub.f32 1.0, %v708
    %v715 = vmul.f32 %v714, %v713
    %v716 = vmul.f32 %v708, %v547
    %v717 = vadd.f32 %v715, %v716
    %s718 = scalar_lea.vmem [#allocation2], 2
    %v719 = vld [vmem:[%s718] ss:$8 sm:$0xf]
    %720 = vmatprep.subr.mxu0 %v292
    %721 = vmatpush1.msra.mxu0 %v291
    %722 = vmatprep.subr.mxu0 %v296
    %723 = vmatpush1.msra.mxu0 %v295
    %724 = vmatprep.subr.mxu0 %v300
    %725 = vmatpush1.msra.mxu0 %v299
    %726 = vmatprep.subr.mxu0 %v304
    %727 = vmatpush1.msra.mxu0 %v303
    %728 = vmatprep.subr.mxu0 %v308
    %729 = vmatpush1.msra.mxu0 %v307
    %730 = vmatprep.subr.mxu0 %v312
    %731 = vmatpush1.msra.mxu0 %v311
    %732 = vmatprep.subr.mxu0 %v316
    %733 = vmatpush1.msra.mxu0 %v315
    %734 = vmatprep.subr.mxu0 %v320
    %735 = vmatpush1.msra.mxu0 %v319
    %736 = vmatprep.subr.mxu0 %v324
    %737 = vmatpush1.msra.mxu0 %v323
    %738 = vmatprep.subr.mxu0 %v328
    %739 = vmatpush1.msra.mxu0 %v327
    %740 = vmatprep.subr.mxu0 %v332
    %741 = vmatpush1.msra.mxu0 %v331
    %742 = vmatprep.subr.mxu0 %v336
    %743 = vmatpush1.msra.mxu0 %v335
    %744 = vmatprep.subr.mxu0 %v340
    %745 = vmatpush1.msra.mxu0 %v339
    %746 = vmatprep.subr.mxu0 %v344
    %747 = vmatpush1.msra.mxu0 %v343
    %748 = vmatprep.subr.mxu0 %v348
    %749 = vmatpush1.msra.mxu0 %v347
    %750 = vmatprep.subr.mxu0 %v352
    %751 = vmatpush1.msra.mxu0 %v351
    %752 = vmatprep.subr.mxu0 0.0
    %753 = vmatpush1.msra.mxu0 0.0
    %754 = vmatprep.subr.mxu0 0.0
    %755 = vmatpush1.msra.mxu0 0.0
    %756 = vmatprep.subr.mxu0 0.0
    %757 = vmatpush1.msra.mxu0 0.0
    %758 = vmatprep.subr.mxu0 0.0
    %759 = vmatpush1.msra.mxu0 0.0
    %760 = vmatprep.subr.mxu0 0.0
    %761 = vmatpush1.msra.mxu0 0.0
    %762 = vmatprep.subr.mxu0 0.0
    %763 = vmatpush1.msra.mxu0 0.0
    %764 = vmatprep.subr.mxu0 0.0
    %765 = vmatpush1.msra.mxu0 0.0
    %766 = vmatprep.subr.mxu0 0.0
    %767 = vmatpush1.msra.mxu0 0.0
    %768 = vmatprep.subr.mxu0 0.0
    %769 = vmatpush1.msra.mxu0 0.0
    %770 = vmatprep.subr.mxu0 0.0
    %771 = vmatpush1.msra.mxu0 0.0
    %772 = vmatprep.subr.mxu0 0.0
    %773 = vmatpush1.msra.mxu0 0.0
    %774 = vmatprep.subr.mxu0 0.0
    %775 = vmatpush1.msra.mxu0 0.0
    %776 = vmatprep.subr.mxu0 0.0
    %777 = vmatpush1.msra.mxu0 0.0
    %778 = vmatprep.subr.mxu0 0.0
    %779 = vmatpush1.msra.mxu0 0.0
    %780 = vmatprep.subr.mxu0 0.0
    %781 = vmatpush1.msra.mxu0 0.0
    %782 = vmatprep.subr.mxu0 0.0
    %783 = vmatpush1.msra.mxu0 0.0
    %784 = vmatprep.mubr.f32.mxu0 0.0
    %785 = vmatmul.mubr.f32.gmra.mrb[0].mxu0 %v717
    %v786 = vpop.f32.mrb[0].mxu0
    %v787 = vadd.f32 %v363, %v786
    %v788 = vpop.f32.mrb[0].mxu0
    %v789 = vadd.f32 %v367, %v788
    %790 = vdwg.mxu0
    %791 = vmatprep.subr.mxu0 %v294
    %792 = vmatpush1.msra.mxu0 %v293
    %793 = vmatprep.subr.mxu0 %v298
    %794 = vmatpush1.msra.mxu0 %v297
    %795 = vmatprep.subr.mxu0 %v302
    %796 = vmatpush1.msra.mxu0 %v301
    %797 = vmatprep.subr.mxu0 %v306
    %798 = vmatpush1.msra.mxu0 %v305
    %799 = vmatprep.subr.mxu0 %v310
    %800 = vmatpush1.msra.mxu0 %v309
    %801 = vmatprep.subr.mxu0 %v314
    %802 = vmatpush1.msra.mxu0 %v313
    %803 = vmatprep.subr.mxu0 %v318
    %804 = vmatpush1.msra.mxu0 %v317
    %805 = vmatprep.subr.mxu0 %v322
    %806 = vmatpush1.msra.mxu0 %v321
    %807 = vmatprep.subr.mxu0 %v326
    %808 = vmatpush1.msra.mxu0 %v325
    %809 = vmatprep.subr.mxu0 %v330
    %810 = vmatpush1.msra.mxu0 %v329
    %811 = vmatprep.subr.mxu0 %v334
    %812 = vmatpush1.msra.mxu0 %v333
    %813 = vmatprep.subr.mxu0 %v338
    %814 = vmatpush1.msra.mxu0 %v337
    %815 = vmatprep.subr.mxu0 %v342
    %816 = vmatpush1.msra.mxu0 %v341
    %817 = vmatprep.subr.mxu0 %v346
    %818 = vmatpush1.msra.mxu0 %v345
    %819 = vmatprep.subr.mxu0 %v350
    %820 = vmatpush1.msra.mxu0 %v349
    %821 = vmatprep.subr.mxu0 %v354
    %822 = vmatpush1.msra.mxu0 %v353
    %823 = vmatprep.subr.mxu0 0.0
    %824 = vmatpush1.msra.mxu0 0.0
    %825 = vmatprep.subr.mxu0 0.0
    %826 = vmatpush1.msra.mxu0 0.0
    %827 = vmatprep.subr.mxu0 0.0
    %828 = vmatpush1.msra.mxu0 0.0
    %829 = vmatprep.subr.mxu0 0.0
    %830 = vmatpush1.msra.mxu0 0.0
    %831 = vmatprep.subr.mxu0 0.0
    %832 = vmatpush1.msra.mxu0 0.0
    %833 = vmatprep.subr.mxu0 0.0
    %834 = vmatpush1.msra.mxu0 0.0
    %835 = vmatprep.subr.mxu0 0.0
    %836 = vmatpush1.msra.mxu0 0.0
    %837 = vmatprep.subr.mxu0 0.0
    %838 = vmatpush1.msra.mxu0 0.0
    %839 = vmatprep.subr.mxu0 0.0
    %840 = vmatpush1.msra.mxu0 0.0
    %841 = vmatprep.subr.mxu0 0.0
    %842 = vmatpush1.msra.mxu0 0.0
    %843 = vmatprep.subr.mxu0 0.0
    %844 = vmatpush1.msra.mxu0 0.0
    %845 = vmatprep.subr.mxu0 0.0
    %846 = vmatpush1.msra.mxu0 0.0
    %847 = vmatprep.subr.mxu0 0.0
    %848 = vmatpush1.msra.mxu0 0.0
    %849 = vmatprep.subr.mxu0 0.0
    %850 = vmatpush1.msra.mxu0 0.0
    %851 = vmatprep.subr.mxu0 0.0
    %852 = vmatpush1.msra.mxu0 0.0
    %853 = vmatprep.subr.mxu0 0.0
    %854 = vmatpush1.msra.mxu0 0.0
    %855 = vmatprep.mubr.f32.mxu0 0.0
    %856 = vmatmul.mubr.f32.gmra.mrb[0].mxu0 %v717
    %v857 = vpop.f32.mrb[0].mxu0
    %v858 = vadd.f32 %v371, %v857
    %v859 = vpop.f32.mrb[0].mxu0
    %v860 = vadd.f32 %v375, %v859
    %861 = vdwg.mxu0
    %v863 = vrot.slane %v719, 3
    %v865 = vadd.f32 %v863, %v860
    %866 = vst [vmem:[#allocation9 + $0x2] sm:$0x1] %v865
    %v867 = vadd.f32 %v719, %v787
    %v868 = vmul.f32 %v867, 0.5
    %v869 = vtanh.pop %v868
    %v870 = vadd.f32 %v869, 1.0
    %v871 = vmul.f32 %v870, 0.5
    %v872 = vrot.slane %v719, 1
    %v874 = vadd.f32 %v872, %v789
    %v875 = vmul.f32 %v874, 0.5
    %v876 = vtanh.pop %v875
    %v877 = vadd.f32 %v876, 1.0
    %v878 = vmul.f32 %v877, 0.5
    %v879 = vmul.f32 %v871, %v858
    %v880 = vrot.slane %v719, 2
    %v882 = vadd.f32 %v880, %v879
    %v883 = vtanh.pop %v882
    %v884 = vsub.f32 1.0, %v878
    %v885 = vmul.f32 %v884, %v883
    %v886 = vmul.f32 %v878, %v717
    %v887 = vadd.f32 %v885, %v886
    %s888 = scalar_lea.vmem [#allocation2], 3
    %v889 = vld [vmem:[%s888] ss:$8 sm:$0xf]
    %890 = vmatprep.subr.mxu0 %v292
    %891 = vmatpush1.msra.mxu0 %v291
    %892 = vmatprep.subr.mxu0 %v296
    %893 = vmatpush1.msra.mxu0 %v295
    %894 = vmatprep.subr.mxu0 %v300
    %895 = vmatpush1.msra.mxu0 %v299
    %896 = vmatprep.subr.mxu0 %v304
    %897 = vmatpush1.msra.mxu0 %v303
    %898 = vmatprep.subr.mxu0 %v308
    %899 = vmatpush1.msra.mxu0 %v307
    %900 = vmatprep.subr.mxu0 %v312
    %901 = vmatpush1.msra.mxu0 %v311
    %902 = vmatprep.subr.mxu0 %v316
    %903 = vmatpush1.msra.mxu0 %v315
    %904 = vmatprep.subr.mxu0 %v320
    %905 = vmatpush1.msra.mxu0 %v319
    %906 = vmatprep.subr.mxu0 %v324
    %907 = vmatpush1.msra.mxu0 %v323
    %908 = vmatprep.subr.mxu0 %v328
    %909 = vmatpush1.msra.mxu0 %v327
    %910 = vmatprep.subr.mxu0 %v332
    %911 = vmatpush1.msra.mxu0 %v331
    %912 = vmatprep.subr.mxu0 %v336
    %913 = vmatpush1.msra.mxu0 %v335
    %914 = vmatprep.subr.mxu0 %v340
    %915 = vmatpush1.msra.mxu0 %v339
    %916 = vmatprep.subr.mxu0 %v344
    %917 = vmatpush1.msra.mxu0 %v343
    %918 = vmatprep.subr.mxu0 %v348
    %919 = vmatpush1.msra.mxu0 %v347
    %920 = vmatprep.subr.mxu0 %v352
    %921 = vmatpush1.msra.mxu0 %v351
    %922 = vmatprep.subr.mxu0 0.0
    %923 = vmatpush1.msra.mxu0 0.0
    %924 = vmatprep.subr.mxu0 0.0
    %925 = vmatpush1.msra.mxu0 0.0
    %926 = vmatprep.subr.mxu0 0.0
    %927 = vmatpush1.msra.mxu0 0.0
    %928 = vmatprep.subr.mxu0 0.0
    %929 = vmatpush1.msra.mxu0 0.0
    %930 = vmatprep.subr.mxu0 0.0
    %931 = vmatpush1.msra.mxu0 0.0
    %932 = vmatprep.subr.mxu0 0.0
    %933 = vmatpush1.msra.mxu0 0.0
    %934 = vmatprep.subr.mxu0 0.0
    %935 = vmatpush1.msra.mxu0 0.0
    %936 = vmatprep.subr.mxu0 0.0
    %937 = vmatpush1.msra.mxu0 0.0
    %938 = vmatprep.subr.mxu0 0.0
    %939 = vmatpush1.msra.mxu0 0.0
    %940 = vmatprep.subr.mxu0 0.0
    %941 = vmatpush1.msra.mxu0 0.0
    %942 = vmatprep.subr.mxu0 0.0
    %943 = vmatpush1.msra.mxu0 0.0
    %944 = vmatprep.subr.mxu0 0.0
    %945 = vmatpush1.msra.mxu0 0.0
    %946 = vmatprep.subr.mxu0 0.0
    %947 = vmatpush1.msra.mxu0 0.0
    %948 = vmatprep.subr.mxu0 0.0
    %949 = vmatpush1.msra.mxu0 0.0
    %950 = vmatprep.subr.mxu0 0.0
    %951 = vmatpush1.msra.mxu0 0.0
    %952 = vmatprep.subr.mxu0 0.0
    %953 = vmatpush1.msra.mxu0 0.0
    %954 = vmatprep.mubr.f32.mxu0 0.0
    %955 = vmatmul.mubr.f32.gmra.mrb[0].mxu0 %v887
    %v956 = vpop.f32.mrb[0].mxu0
    %v957 = vadd.f32 %v363, %v956
    %v958 = vpop.f32.mrb[0].mxu0
    %v959 = vadd.f32 %v367, %v958
    %960 = vdwg.mxu0
    %961 = vmatprep.subr.mxu0 %v294
    %962 = vmatpush1.msra.mxu0 %v293
    %963 = vmatprep.subr.mxu0 %v298
    %964 = vmatpush1.msra.mxu0 %v297
    %965 = vmatprep.subr.mxu0 %v302
    %966 = vmatpush1.msra.mxu0 %v301
    %967 = vmatprep.subr.mxu0 %v306
    %968 = vmatpush1.msra.mxu0 %v305
    %969 = vmatprep.subr.mxu0 %v310
    %970 = vmatpush1.msra.mxu0 %v309
    %971 = vmatprep.subr.mxu0 %v314
    %972 = vmatpush1.msra.mxu0 %v313
    %973 = vmatprep.subr.mxu0 %v318
    %974 = vmatpush1.msra.mxu0 %v317
    %975 = vmatprep.subr.mxu0 %v322
    %976 = vmatpush1.msra.mxu0 %v321
    %977 = vmatprep.subr.mxu0 %v326
    %978 = vmatpush1.msra.mxu0 %v325
    %979 = vmatprep.subr.mxu0 %v330
    %980 = vmatpush1.msra.mxu0 %v329
    %981 = vmatprep.subr.mxu0 %v334
    %982 = vmatpush1.msra.mxu0 %v333
    %983 = vmatprep.subr.mxu0 %v338
    %984 = vmatpush1.msra.mxu0 %v337
    %985 = vmatprep.subr.mxu0 %v342
    %986 = vmatpush1.msra.mxu0 %v341
    %987 = vmatprep.subr.mxu0 %v346
    %988 = vmatpush1.msra.mxu0 %v345
    %989 = vmatprep.subr.mxu0 %v350
    %990 = vmatpush1.msra.mxu0 %v349
    %991 = vmatprep.subr.mxu0 %v354
    %992 = vmatpush1.msra.mxu0 %v353
    %993 = vmatprep.subr.mxu0 0.0
    %994 = vmatpush1.msra.mxu0 0.0
    %995 = vmatprep.subr.mxu0 0.0
    %996 = vmatpush1.msra.mxu0 0.0
    %997 = vmatprep.subr.mxu0 0.0
    %998 = vmatpush1.msra.mxu0 0.0
    %999 = vmatprep.subr.mxu0 0.0
    %1000 = vmatpush1.msra.mxu0 0.0
    %1001 = vmatprep.subr.mxu0 0.0
    %1002 = vmatpush1.msra.mxu0 0.0
    %1003 = vmatprep.subr.mxu0 0.0
    %1004 = vmatpush1.msra.mxu0 0.0
    %1005 = vmatprep.subr.mxu0 0.0
    %1006 = vmatpush1.msra.mxu0 0.0
    %1007 = vmatprep.subr.mxu0 0.0
    %1008 = vmatpush1.msra.mxu0 0.0
    %1009 = vmatprep.subr.mxu0 0.0
    %1010 = vmatpush1.msra.mxu0 0.0
    %1011 = vmatprep.subr.mxu0 0.0
    %1012 = vmatpush1.msra.mxu0 0.0
    %1013 = vmatprep.subr.mxu0 0.0
    %1014 = vmatpush1.msra.mxu0 0.0
    %1015 = vmatprep.subr.mxu0 0.0
    %1016 = vmatpush1.msra.mxu0 0.0
    %1017 = vmatprep.subr.mxu0 0.0
    %1018 = vmatpush1.msra.mxu0 0.0
    %1019 = vmatprep.subr.mxu0 0.0
    %1020 = vmatpush1.msra.mxu0 0.0
    %1021 = vmatprep.subr.mxu0 0.0
    %1022 = vmatpush1.msra.mxu0 0.0
    %1023 = vmatprep.subr.mxu0 0.0
    %1024 = vmatpush1.msra.mxu0 0.0
    %1025 = vmatprep.mubr.f32.mxu0 0.0
    %1026 = vmatmul.mubr.f32.gmra.mrb[0].mxu0 %v887
    %v1027 = vpop.f32.mrb[0].mxu0
    %v1028 = vadd.f32 %v371, %v1027
    %v1029 = vpop.f32.mrb[0].mxu0
    %v1030 = vadd.f32 %v375, %v1029
    %1031 = vdwg.mxu0
    %v1033 = vrot.slane %v889, 3
    %v1035 = vadd.f32 %v1033, %v1030
    %1036 = vst [vmem:[#allocation9 + $0x3] sm:$0x1] %v1035
    %v1037 = vadd.f32 %v889, %v957
    %v1038 = vmul.f32 %v1037, 0.5
    %v1039 = vtanh.pop %v1038
    %v1040 = vadd.f32 %v1039, 1.0
    %v1041 = vmul.f32 %v1040, 0.5
    %v1042 = vrot.slane %v889, 1
    %v1044 = vadd.f32 %v1042, %v959
    %v1045 = vmul.f32 %v1044, 0.5
    %v1046 = vtanh.pop %v1045
    %v1047 = vadd.f32 %v1046, 1.0
    %v1048 = vmul.f32 %v1047, 0.5
    %v1049 = vmul.f32 %v1041, %v1028
    %v1050 = vrot.slane %v889, 2
    %v1052 = vadd.f32 %v1050, %v1049
    %v1053 = vtanh.pop %v1052
    %v1054 = vsub.f32 1.0, %v1048
    %v1055 = vmul.f32 %v1054, %v1053
    %v1056 = vmul.f32 %v1048, %v887
    %v1057 = vadd.f32 %v1055, %v1056
    %s1058 = scalar_lea.vmem [#allocation2], 4
    %v1059 = vld [vmem:[%s1058] ss:$8 sm:$0xf]
    %1060 = vmatprep.subr.mxu0 %v292
    %1061 = vmatpush1.msra.mxu0 %v291
    %1062 = vmatprep.subr.mxu0 %v296
    %1063 = vmatpush1.msra.mxu0 %v295
    %1064 = vmatprep.subr.mxu0 %v300
    %1065 = vmatpush1.msra.mxu0 %v299
    %1066 = vmatprep.subr.mxu0 %v304
    %1067 = vmatpush1.msra.mxu0 %v303
    %1068 = vmatprep.subr.mxu0 %v308
    %1069 = vmatpush1.msra.mxu0 %v307
    %1070 = vmatprep.subr.mxu0 %v312
    %1071 = vmatpush1.msra.mxu0 %v311
    %1072 = vmatprep.subr.mxu0 %v316
    %1073 = vmatpush1.msra.mxu0 %v315
    %1074 = vmatprep.subr.mxu0 %v320
    %1075 = vmatpush1.msra.mxu0 %v319
    %1076 = vmatprep.subr.mxu0 %v324
    %1077 = vmatpush1.msra.mxu0 %v323
    %1078 = vmatprep.subr.mxu0 %v328
    %1079 = vmatpush1.msra.mxu0 %v327
    %1080 = vmatprep.subr.mxu0 %v332
    %1081 = vmatpush1.msra.mxu0 %v331
    %1082 = vmatprep.subr.mxu0 %v336
    %1083 = vmatpush1.msra.mxu0 %v335
    %1084 = vmatprep.subr.mxu0 %v340
    %1085 = vmatpush1.msra.mxu0 %v339
    %1086 = vmatprep.subr.mxu0 %v344
    %1087 = vmatpush1.msra.mxu0 %v343
    %1088 = vmatprep.subr.mxu0 %v348
    %1089 = vmatpush1.msra.mxu0 %v347
    %1090 = vmatprep.subr.mxu0 %v352
    %1091 = vmatpush1.msra.mxu0 %v351
    %1092 = vmatprep.subr.mxu0 0.0
    %1093 = vmatpush1.msra.mxu0 0.0
    %1094 = vmatprep.subr.mxu0 0.0
    %1095 = vmatpush1.msra.mxu0 0.0
    %1096 = vmatprep.subr.mxu0 0.0
    %1097 = vmatpush1.msra.mxu0 0.0
    %1098 = vmatprep.subr.mxu0 0.0
    %1099 = vmatpush1.msra.mxu0 0.0
    %1100 = vmatprep.subr.mxu0 0.0
    %1101 = vmatpush1.msra.mxu0 0.0
    %1102 = vmatprep.subr.mxu0 0.0
    %1103 = vmatpush1.msra.mxu0 0.0
    %1104 = vmatprep.subr.mxu0 0.0
    %1105 = vmatpush1.msra.mxu0 0.0
    %1106 = vmatprep.subr.mxu0 0.0
    %1107 = vmatpush1.msra.mxu0 0.0
    %1108 = vmatprep.subr.mxu0 0.0
    %1109 = vmatpush1.msra.mxu0 0.0
    %1110 = vmatprep.subr.mxu0 0.0
    %1111 = vmatpush1.msra.mxu0 0.0
    %1112 = vmatprep.subr.mxu0 0.0
    %1113 = vmatpush1.msra.mxu0 0.0
    %1114 = vmatprep.subr.mxu0 0.0
    %1115 = vmatpush1.msra.mxu0 0.0
    %1116 = vmatprep.subr.mxu0 0.0
    %1117 = vmatpush1.msra.mxu0 0.0
    %1118 = vmatprep.subr.mxu0 0.0
    %1119 = vmatpush1.msra.mxu0 0.0
    %1120 = vmatprep.subr.mxu0 0.0
    %1121 = vmatpush1.msra.mxu0 0.0
    %1122 = vmatprep.subr.mxu0 0.0
    %1123 = vmatpush1.msra.mxu0 0.0
    %1124 = vmatprep.mubr.f32.mxu0 0.0
    %1125 = vmatmul.mubr.f32.gmra.mrb[0].mxu0 %v1057
    %v1126 = vpop.f32.mrb[0].mxu0
    %v1127 = vadd.f32 %v363, %v1126
    %v1128 = vpop.f32.mrb[0].mxu0
    %v1129 = vadd.f32 %v367, %v1128
    %1130 = vdwg.mxu0
    %1131 = vmatprep.subr.mxu0 %v294
    %1132 = vmatpush1.msra.mxu0 %v293
    %1133 = vmatprep.subr.mxu0 %v298
    %1134 = vmatpush1.msra.mxu0 %v297
    %1135 = vmatprep.subr.mxu0 %v302
    %1136 = vmatpush1.msra.mxu0 %v301
    %1137 = vmatprep.subr.mxu0 %v306
    %1138 = vmatpush1.msra.mxu0 %v305
    %1139 = vmatprep.subr.mxu0 %v310
    %1140 = vmatpush1.msra.mxu0 %v309
    %1141 = vmatprep.subr.mxu0 %v314
    %1142 = vmatpush1.msra.mxu0 %v313
    %1143 = vmatprep.subr.mxu0 %v318
    %1144 = vmatpush1.msra.mxu0 %v317
    %1145 = vmatprep.subr.mxu0 %v322
    %1146 = vmatpush1.msra.mxu0 %v321
    %1147 = vmatprep.subr.mxu0 %v326
    %1148 = vmatpush1.msra.mxu0 %v325
    %1149 = vmatprep.subr.mxu0 %v330
    %1150 = vmatpush1.msra.mxu0 %v329
    %1151 = vmatprep.subr.mxu0 %v334
    %1152 = vmatpush1.msra.mxu0 %v333
    %1153 = vmatprep.subr.mxu0 %v338
    %1154 = vmatpush1.msra.mxu0 %v337
    %1155 = vmatprep.subr.mxu0 %v342
    %1156 = vmatpush1.msra.mxu0 %v341
    %1157 = vmatprep.subr.mxu0 %v346
    %1158 = vmatpush1.msra.mxu0 %v345
    %1159 = vmatprep.subr.mxu0 %v350
    %1160 = vmatpush1.msra.mxu0 %v349
    %1161 = vmatprep.subr.mxu0 %v354
    %1162 = vmatpush1.msra.mxu0 %v353
    %1163 = vmatprep.subr.mxu0 0.0
    %1164 = vmatpush1.msra.mxu0 0.0
    %1165 = vmatprep.subr.mxu0 0.0
    %1166 = vmatpush1.msra.mxu0 0.0
    %1167 = vmatprep.subr.mxu0 0.0
    %1168 = vmatpush1.msra.mxu0 0.0
    %1169 = vmatprep.subr.mxu0 0.0
    %1170 = vmatpush1.msra.mxu0 0.0
    %1171 = vmatprep.subr.mxu0 0.0
    %1172 = vmatpush1.msra.mxu0 0.0
    %1173 = vmatprep.subr.mxu0 0.0
    %1174 = vmatpush1.msra.mxu0 0.0
    %1175 = vmatprep.subr.mxu0 0.0
    %1176 = vmatpush1.msra.mxu0 0.0
    %1177 = vmatprep.subr.mxu0 0.0
    %1178 = vmatpush1.msra.mxu0 0.0
    %1179 = vmatprep.subr.mxu0 0.0
    %1180 = vmatpush1.msra.mxu0 0.0
    %1181 = vmatprep.subr.mxu0 0.0
    %1182 = vmatpush1.msra.mxu0 0.0
    %1183 = vmatprep.subr.mxu0 0.0
    %1184 = vmatpush1.msra.mxu0 0.0
    %1185 = vmatprep.subr.mxu0 0.0
    %1186 = vmatpush1.msra.mxu0 0.0
    %1187 = vmatprep.subr.mxu0 0.0
    %1188 = vmatpush1.msra.mxu0 0.0
    %1189 = vmatprep.subr.mxu0 0.0
    %1190 = vmatpush1.msra.mxu0 0.0
    %1191 = vmatprep.subr.mxu0 0.0
    %1192 = vmatpush1.msra.mxu0 0.0
    %1193 = vmatprep.subr.mxu0 0.0
    %1194 = vmatpush1.msra.mxu0 0.0
    %1195 = vmatprep.mubr.f32.mxu0 0.0
    %1196 = vmatmul.mubr.f32.gmra.mrb[0].mxu0 %v1057
    %v1197 = vpop.f32.mrb[0].mxu0
    %v1198 = vadd.f32 %v371, %v1197
    %v1199 = vpop.f32.mrb[0].mxu0
    %v1200 = vadd.f32 %v375, %v1199
    %1201 = vdwg.mxu0
    %v1203 = vrot.slane %v1059, 3
    %v1205 = vadd.f32 %v1203, %v1200
    %1206 = vst [vmem:[#allocation9 + $0x4] sm:$0x1] %v1205
    %v1207 = vadd.f32 %v1059, %v1127
    %v1208 = vmul.f32 %v1207, 0.5
    %v1209 = vtanh.pop %v1208
    %v1210 = vadd.f32 %v1209, 1.0
    %v1211 = vmul.f32 %v1210, 0.5
    %v1212 = vrot.slane %v1059, 1
    %v1214 = vadd.f32 %v1212, %v1129
    %v1215 = vmul.f32 %v1214, 0.5
    %v1216 = vtanh.pop %v1215
    %v1217 = vadd.f32 %v1216, 1.0
    %v1218 = vmul.f32 %v1217, 0.5
    %v1219 = vmul.f32 %v1211, %v1198
    %v1220 = vrot.slane %v1059, 2
    %v1222 = vadd.f32 %v1220, %v1219
    %v1223 = vtanh.pop %v1222
    %v1224 = vsub.f32 1.0, %v1218
    %v1225 = vmul.f32 %v1224, %v1223
    %v1226 = vmul.f32 %v1218, %v1057
    %v1227 = vadd.f32 %v1225, %v1226
    %s1228 = scalar_lea.vmem [#allocation2], 5
    %v1229 = vld [vmem:[%s1228] ss:$8 sm:$0xf]
    %1230 = vmatprep.subr.mxu0 %v292
    %1231 = vmatpush1.msra.mxu0 %v291
    %1232 = vmatprep.subr.mxu0 %v296
    %1233 = vmatpush1.msra.mxu0 %v295
    %1234 = vmatprep.subr.mxu0 %v300
    %1235 = vmatpush1.msra.mxu0 %v299
    %1236 = vmatprep.subr.mxu0 %v304
    %1237 = vmatpush1.msra.mxu0 %v303
    %1238 = vmatprep.subr.mxu0 %v308
    %1239 = vmatpush1.msra.mxu0 %v307
    %1240 = vmatprep.subr.mxu0 %v312
    %1241 = vmatpush1.msra.mxu0 %v311
    %1242 = vmatprep.subr.mxu0 %v316
    %1243 = vmatpush1.msra.mxu0 %v315
    %1244 = vmatprep.subr.mxu0 %v320
    %1245 = vmatpush1.msra.mxu0 %v319
    %1246 = vmatprep.subr.mxu0 %v324
    %1247 = vmatpush1.msra.mxu0 %v323
    %1248 = vmatprep.subr.mxu0 %v328
    %1249 = vmatpush1.msra.mxu0 %v327
    %1250 = vmatprep.subr.mxu0 %v332
    %1251 = vmatpush1.msra.mxu0 %v331
    %1252 = vmatprep.subr.mxu0 %v336
    %1253 = vmatpush1.msra.mxu0 %v335
    %1254 = vmatprep.subr.mxu0 %v340
    %1255 = vmatpush1.msra.mxu0 %v339
    %1256 = vmatprep.subr.mxu0 %v344
    %1257 = vmatpush1.msra.mxu0 %v343
    %1258 = vmatprep.subr.mxu0 %v348
    %1259 = vmatpush1.msra.mxu0 %v347
    %1260 = vmatprep.subr.mxu0 %v352
    %1261 = vmatpush1.msra.mxu0 %v351
    %1262 = vmatprep.subr.mxu0 0.0
    %1263 = vmatpush1.msra.mxu0 0.0
    %1264 = vmatprep.subr.mxu0 0.0
    %1265 = vmatpush1.msra.mxu0 0.0
    %1266 = vmatprep.subr.mxu0 0.0
    %1267 = vmatpush1.msra.mxu0 0.0
    %1268 = vmatprep.subr.mxu0 0.0
    %1269 = vmatpush1.msra.mxu0 0.0
    %1270 = vmatprep.subr.mxu0 0.0
    %1271 = vmatpush1.msra.mxu0 0.0
    %1272 = vmatprep.subr.mxu0 0.0
    %1273 = vmatpush1.msra.mxu0 0.0
    %1274 = vmatprep.subr.mxu0 0.0
    %1275 = vmatpush1.msra.mxu0 0.0
    %1276 = vmatprep.subr.mxu0 0.0
    %1277 = vmatpush1.msra.mxu0 0.0
    %1278 = vmatprep.subr.mxu0 0.0
    %1279 = vmatpush1.msra.mxu0 0.0
    %1280 = vmatprep.subr.mxu0 0.0
    %1281 = vmatpush1.msra.mxu0 0.0
    %1282 = vmatprep.subr.mxu0 0.0
    %1283 = vmatpush1.msra.mxu0 0.0
    %1284 = vmatprep.subr.mxu0 0.0
    %1285 = vmatpush1.msra.mxu0 0.0
    %1286 = vmatprep.subr.mxu0 0.0
    %1287 = vmatpush1.msra.mxu0 0.0
    %1288 = vmatprep.subr.mxu0 0.0
    %1289 = vmatpush1.msra.mxu0 0.0
    %1290 = vmatprep.subr.mxu0 0.0
    %1291 = vmatpush1.msra.mxu0 0.0
    %1292 = vmatprep.subr.mxu0 0.0
    %1293 = vmatpush1.msra.mxu0 0.0
    %1294 = vmatprep.mubr.f32.mxu0 0.0
    %1295 = vmatmul.mubr.f32.gmra.mrb[0].mxu0 %v1227
    %v1296 = vpop.f32.mrb[0].mxu0
    %v1297 = vadd.f32 %v363, %v1296
    %v1298 = vpop.f32.mrb[0].mxu0
    %v1299 = vadd.f32 %v367, %v1298
    %1300 = vdwg.mxu0
    %1301 = vmatprep.subr.mxu0 %v294
    %1302 = vmatpush1.msra.mxu0 %v293
    %1303 = vmatprep.subr.mxu0 %v298
    %1304 = vmatpush1.msra.mxu0 %v297
    %1305 = vmatprep.subr.mxu0 %v302
    %1306 = vmatpush1.msra.mxu0 %v301
    %1307 = vmatprep.subr.mxu0 %v306
    %1308 = vmatpush1.msra.mxu0 %v305
    %1309 = vmatprep.subr.mxu0 %v310
    %1310 = vmatpush1.msra.mxu0 %v309
    %1311 = vmatprep.subr.mxu0 %v314
    %1312 = vmatpush1.msra.mxu0 %v313
    %1313 = vmatprep.subr.mxu0 %v318
    %1314 = vmatpush1.msra.mxu0 %v317
    %1315 = vmatprep.subr.mxu0 %v322
    %1316 = vmatpush1.msra.mxu0 %v321
    %1317 = vmatprep.subr.mxu0 %v326
    %1318 = vmatpush1.msra.mxu0 %v325
    %1319 = vmatprep.subr.mxu0 %v330
    %1320 = vmatpush1.msra.mxu0 %v329
    %1321 = vmatprep.subr.mxu0 %v334
    %1322 = vmatpush1.msra.mxu0 %v333
    %1323 = vmatprep.subr.mxu0 %v338
    %1324 = vmatpush1.msra.mxu0 %v337
    %1325 = vmatprep.subr.mxu0 %v342
    %1326 = vmatpush1.msra.mxu0 %v341
    %1327 = vmatprep.subr.mxu0 %v346
    %1328 = vmatpush1.msra.mxu0 %v345
    %1329 = vmatprep.subr.mxu0 %v350
    %1330 = vmatpush1.msra.mxu0 %v349
    %1331 = vmatprep.subr.mxu0 %v354
    %1332 = vmatpush1.msra.mxu0 %v353
    %1333 = vmatprep.subr.mxu0 0.0
    %1334 = vmatpush1.msra.mxu0 0.0
    %1335 = vmatprep.subr.mxu0 0.0
    %1336 = vmatpush1.msra.mxu0 0.0
    %1337 = vmatprep.subr.mxu0 0.0
    %1338 = vmatpush1.msra.mxu0 0.0
    %1339 = vmatprep.subr.mxu0 0.0
    %1340 = vmatpush1.msra.mxu0 0.0
    %1341 = vmatprep.subr.mxu0 0.0
    %1342 = vmatpush1.msra.mxu0 0.0
    %1343 = vmatprep.subr.mxu0 0.0
    %1344 = vmatpush1.msra.mxu0 0.0
    %1345 = vmatprep.subr.mxu0 0.0
    %1346 = vmatpush1.msra.mxu0 0.0
    %1347 = vmatprep.subr.mxu0 0.0
    %1348 = vmatpush1.msra.mxu0 0.0
    %1349 = vmatprep.subr.mxu0 0.0
    %1350 = vmatpush1.msra.mxu0 0.0
    %1351 = vmatprep.subr.mxu0 0.0
    %1352 = vmatpush1.msra.mxu0 0.0
    %1353 = vmatprep.subr.mxu0 0.0
    %1354 = vmatpush1.msra.mxu0 0.0
    %1355 = vmatprep.subr.mxu0 0.0
    %1356 = vmatpush1.msra.mxu0 0.0
    %1357 = vmatprep.subr.mxu0 0.0
    %1358 = vmatpush1.msra.mxu0 0.0
    %1359 = vmatprep.subr.mxu0 0.0
    %1360 = vmatpush1.msra.mxu0 0.0
    %1361 = vmatprep.subr.mxu0 0.0
    %1362 = vmatpush1.msra.mxu0 0.0
    %1363 = vmatprep.subr.mxu0 0.0
    %1364 = vmatpush1.msra.mxu0 0.0
    %1365 = vmatprep.mubr.f32.mxu0 0.0
    %1366 = vmatmul.mubr.f32.gmra.mrb[0].mxu0 %v1227
    %v1367 = vpop.f32.mrb[0].mxu0
    %v1368 = vadd.f32 %v371, %v1367
    %v1369 = vpop.f32.mrb[0].mxu0
    %v1370 = vadd.f32 %v375, %v1369
    %1371 = vdwg.mxu0
    %v1373 = vrot.slane %v1229, 3
    %v1375 = vadd.f32 %v1373, %v1370
    %1376 = vst [vmem:[#allocation9 + $0x5] sm:$0x1] %v1375
    %v1377 = vadd.f32 %v1229, %v1297
    %v1378 = vmul.f32 %v1377, 0.5
    %v1379 = vtanh.pop %v1378
    %v1380 = vadd.f32 %v1379, 1.0
    %v1381 = vmul.f32 %v1380, 0.5
    %v1382 = vrot.slane %v1229, 1
    %v1384 = vadd.f32 %v1382, %v1299
    %v1385 = vmul.f32 %v1384, 0.5
    %v1386 = vtanh.pop %v1385
    %v1387 = vadd.f32 %v1386, 1.0
    %v1388 = vmul.f32 %v1387, 0.5
    %v1389 = vmul.f32 %v1381, %v1368
    %v1390 = vrot.slane %v1229, 2
    %v1392 = vadd.f32 %v1390, %v1389
    %v1393 = vtanh.pop %v1392
    %v1394 = vsub.f32 1.0, %v1388
    %v1395 = vmul.f32 %v1394, %v1393
    %v1396 = vmul.f32 %v1388, %v1227
    %v1397 = vadd.f32 %v1395, %v1396
    %s1398 = scalar_lea.vmem [#allocation2], 6
    %v1399 = vld [vmem:[%s1398] ss:$8 sm:$0xf]
    %1400 = vmatprep.subr.mxu0 %v292
    %1401 = vmatpush1.msra.mxu0 %v291
    %1402 = vmatprep.subr.mxu0 %v296
    %1403 = vmatpush1.msra.mxu0 %v295
    %1404 = vmatprep.subr.mxu0 %v300
    %1405 = vmatpush1.msra.mxu0 %v299
    %1406 = vmatprep.subr.mxu0 %v304
    %1407 = vmatpush1.msra.mxu0 %v303
    %1408 = vmatprep.subr.mxu0 %v308
    %1409 = vmatpush1.msra.mxu0 %v307
    %1410 = vmatprep.subr.mxu0 %v312
    %1411 = vmatpush1.msra.mxu0 %v311
    %1412 = vmatprep.subr.mxu0 %v316
    %1413 = vmatpush1.msra.mxu0 %v315
    %1414 = vmatprep.subr.mxu0 %v320
    %1415 = vmatpush1.msra.mxu0 %v319
    %1416 = vmatprep.subr.mxu0 %v324
    %1417 = vmatpush1.msra.mxu0 %v323
    %1418 = vmatprep.subr.mxu0 %v328
    %1419 = vmatpush1.msra.mxu0 %v327
    %1420 = vmatprep.subr.mxu0 %v332
    %1421 = vmatpush1.msra.mxu0 %v331
    %1422 = vmatprep.subr.mxu0 %v336
    %1423 = vmatpush1.msra.mxu0 %v335
    %1424 = vmatprep.subr.mxu0 %v340
    %1425 = vmatpush1.msra.mxu0 %v339
    %1426 = vmatprep.subr.mxu0 %v344
    %1427 = vmatpush1.msra.mxu0 %v343
    %1428 = vmatprep.subr.mxu0 %v348
    %1429 = vmatpush1.msra.mxu0 %v347
    %1430 = vmatprep.subr.mxu0 %v352
    %1431 = vmatpush1.msra.mxu0 %v351
    %1432 = vmatprep.subr.mxu0 0.0
    %1433 = vmatpush1.msra.mxu0 0.0
    %1434 = vmatprep.subr.mxu0 0.0
    %1435 = vmatpush1.msra.mxu0 0.0
    %1436 = vmatprep.subr.mxu0 0.0
    %1437 = vmatpush1.msra.mxu0 0.0
    %1438 = vmatprep.subr.mxu0 0.0
    %1439 = vmatpush1.msra.mxu0 0.0
    %1440 = vmatprep.subr.mxu0 0.0
    %1441 = vmatpush1.msra.mxu0 0.0
    %1442 = vmatprep.subr.mxu0 0.0
    %1443 = vmatpush1.msra.mxu0 0.0
    %1444 = vmatprep.subr.mxu0 0.0
    %1445 = vmatpush1.msra.mxu0 0.0
    %1446 = vmatprep.subr.mxu0 0.0
    %1447 = vmatpush1.msra.mxu0 0.0
    %1448 = vmatprep.subr.mxu0 0.0
    %1449 = vmatpush1.msra.mxu0 0.0
    %1450 = vmatprep.subr.mxu0 0.0
    %1451 = vmatpush1.msra.mxu0 0.0
    %1452 = vmatprep.subr.mxu0 0.0
    %1453 = vmatpush1.msra.mxu0 0.0
    %1454 = vmatprep.subr.mxu0 0.0
    %1455 = vmatpush1.msra.mxu0 0.0
    %1456 = vmatprep.subr.mxu0 0.0
    %1457 = vmatpush1.msra.mxu0 0.0
    %1458 = vmatprep.subr.mxu0 0.0
    %1459 = vmatpush1.msra.mxu0 0.0
    %1460 = vmatprep.subr.mxu0 0.0
    %1461 = vmatpush1.msra.mxu0 0.0
    %1462 = vmatprep.subr.mxu0 0.0
    %1463 = vmatpush1.msra.mxu0 0.0
    %1464 = vmatprep.mubr.f32.mxu0 0.0
    %1465 = vmatmul.mubr.f32.gmra.mrb[0].mxu0 %v1397
    %v1466 = vpop.f32.mrb[0].mxu0
    %v1467 = vadd.f32 %v363, %v1466
    %v1468 = vpop.f32.mrb[0].mxu0
    %v1469 = vadd.f32 %v367, %v1468
    %1470 = vdwg.mxu0
    %1471 = vmatprep.subr.mxu0 %v294
    %1472 = vmatpush1.msra.mxu0 %v293
    %1473 = vmatprep.subr.mxu0 %v298
    %1474 = vmatpush1.msra.mxu0 %v297
    %1475 = vmatprep.subr.mxu0 %v302
    %1476 = vmatpush1.msra.mxu0 %v301
    %1477 = vmatprep.subr.mxu0 %v306
    %1478 = vmatpush1.msra.mxu0 %v305
    %1479 = vmatprep.subr.mxu0 %v310
    %1480 = vmatpush1.msra.mxu0 %v309
    %1481 = vmatprep.subr.mxu0 %v314
    %1482 = vmatpush1.msra.mxu0 %v313
    %1483 = vmatprep.subr.mxu0 %v318
    %1484 = vmatpush1.msra.mxu0 %v317
    %1485 = vmatprep.subr.mxu0 %v322
    %1486 = vmatpush1.msra.mxu0 %v321
    %1487 = vmatprep.subr.mxu0 %v326
    %1488 = vmatpush1.msra.mxu0 %v325
    %1489 = vmatprep.subr.mxu0 %v330
    %1490 = vmatpush1.msra.mxu0 %v329
    %1491 = vmatprep.subr.mxu0 %v334
    %1492 = vmatpush1.msra.mxu0 %v333
    %1493 = vmatprep.subr.mxu0 %v338
    %1494 = vmatpush1.msra.mxu0 %v337
    %1495 = vmatprep.subr.mxu0 %v342
    %1496 = vmatpush1.msra.mxu0 %v341
    %1497 = vmatprep.subr.mxu0 %v346
    %1498 = vmatpush1.msra.mxu0 %v345
    %1499 = vmatprep.subr.mxu0 %v350
    %1500 = vmatpush1.msra.mxu0 %v349
    %1501 = vmatprep.subr.mxu0 %v354
    %1502 = vmatpush1.msra.mxu0 %v353
    %1503 = vmatprep.subr.mxu0 0.0
    %1504 = vmatpush1.msra.mxu0 0.0
    %1505 = vmatprep.subr.mxu0 0.0
    %1506 = vmatpush1.msra.mxu0 0.0
    %1507 = vmatprep.subr.mxu0 0.0
    %1508 = vmatpush1.msra.mxu0 0.0
    %1509 = vmatprep.subr.mxu0 0.0
    %1510 = vmatpush1.msra.mxu0 0.0
    %1511 = vmatprep.subr.mxu0 0.0
    %1512 = vmatpush1.msra.mxu0 0.0
    %1513 = vmatprep.subr.mxu0 0.0
    %1514 = vmatpush1.msra.mxu0 0.0
    %1515 = vmatprep.subr.mxu0 0.0
    %1516 = vmatpush1.msra.mxu0 0.0
    %1517 = vmatprep.subr.mxu0 0.0
    %1518 = vmatpush1.msra.mxu0 0.0
    %1519 = vmatprep.subr.mxu0 0.0
    %1520 = vmatpush1.msra.mxu0 0.0
    %1521 = vmatprep.subr.mxu0 0.0
    %1522 = vmatpush1.msra.mxu0 0.0
    %1523 = vmatprep.subr.mxu0 0.0
    %1524 = vmatpush1.msra.mxu0 0.0
    %1525 = vmatprep.subr.mxu0 0.0
    %1526 = vmatpush1.msra.mxu0 0.0
    %1527 = vmatprep.subr.mxu0 0.0
    %1528 = vmatpush1.msra.mxu0 0.0
    %1529 = vmatprep.subr.mxu0 0.0
    %1530 = vmatpush1.msra.mxu0 0.0
    %1531 = vmatprep.subr.mxu0 0.0
    %1532 = vmatpush1.msra.mxu0 0.0
    %1533 = vmatprep.subr.mxu0 0.0
    %1534 = vmatpush1.msra.mxu0 0.0
    %1535 = vmatprep.mubr.f32.mxu0 0.0
    %1536 = vmatmul.mubr.f32.gmra.mrb[0].mxu0 %v1397
    %v1537 = vpop.f32.mrb[0].mxu0
    %v1538 = vadd.f32 %v371, %v1537
    %v1539 = vpop.f32.mrb[0].mxu0
    %v1540 = vadd.f32 %v375, %v1539
    %1541 = vdwg.mxu0
    %v1543 = vrot.slane %v1399, 3
    %v1545 = vadd.f32 %v1543, %v1540
    %1546 = vst [vmem:[#allocation9 + $0x6] sm:$0x1] %v1545
    %v1547 = vadd.f32 %v1399, %v1467
    %v1548 = vmul.f32 %v1547, 0.5
    %v1549 = vtanh.pop %v1548
    %v1550 = vadd.f32 %v1549, 1.0
    %v1551 = vmul.f32 %v1550, 0.5
    %v1552 = vrot.slane %v1399, 1
    %v1554 = vadd.f32 %v1552, %v1469
    %v1555 = vmul.f32 %v1554, 0.5
    %v1556 = vtanh.pop %v1555
    %v1557 = vadd.f32 %v1556, 1.0
    %v1558 = vmul.f32 %v1557, 0.5
    %v1559 = vmul.f32 %v1551, %v1538
    %v1560 = vrot.slane %v1399, 2
    %v1562 = vadd.f32 %v1560, %v1559
    %v1563 = vtanh.pop %v1562
    %v1564 = vsub.f32 1.0, %v1558
    %v1565 = vmul.f32 %v1564, %v1563
    %v1566 = vmul.f32 %v1558, %v1397
    %v1567 = vadd.f32 %v1565, %v1566
    %s1568 = scalar_lea.vmem [#allocation2], 7
    %v1569 = vld [vmem:[%s1568] ss:$8 sm:$0xf]
    %1570 = vmatprep.subr.mxu0 %v292
    %1571 = vmatpush1.msra.mxu0 %v291
    %1572 = vmatprep.subr.mxu0 %v296
    %1573 = vmatpush1.msra.mxu0 %v295
    %1574 = vmatprep.subr.mxu0 %v300
    %1575 = vmatpush1.msra.mxu0 %v299
    %1576 = vmatprep.subr.mxu0 %v304
    %1577 = vmatpush1.msra.mxu0 %v303
    %1578 = vmatprep.subr.mxu0 %v308
    %1579 = vmatpush1.msra.mxu0 %v307
    %1580 = vmatprep.subr.mxu0 %v312
    %1581 = vmatpush1.msra.mxu0 %v311
    %1582 = vmatprep.subr.mxu0 %v316
    %1583 = vmatpush1.msra.mxu0 %v315
    %1584 = vmatprep.subr.mxu0 %v320
    %1585 = vmatpush1.msra.mxu0 %v319
    %1586 = vmatprep.subr.mxu0 %v324
    %1587 = vmatpush1.msra.mxu0 %v323
    %1588 = vmatprep.subr.mxu0 %v328
    %1589 = vmatpush1.msra.mxu0 %v327
    %1590 = vmatprep.subr.mxu0 %v332
    %1591 = vmatpush1.msra.mxu0 %v331
    %1592 = vmatprep.subr.mxu0 %v336
    %1593 = vmatpush1.msra.mxu0 %v335
    %1594 = vmatprep.subr.mxu0 %v340
    %1595 = vmatpush1.msra.mxu0 %v339
    %1596 = vmatprep.subr.mxu0 %v344
    %1597 = vmatpush1.msra.mxu0 %v343
    %1598 = vmatprep.subr.mxu0 %v348
    %1599 = vmatpush1.msra.mxu0 %v347
    %1600 = vmatprep.subr.mxu0 %v352
    %1601 = vmatpush1.msra.mxu0 %v351
    %1602 = vmatprep.subr.mxu0 0.0
    %1603 = vmatpush1.msra.mxu0 0.0
    %1604 = vmatprep.subr.mxu0 0.0
    %1605 = vmatpush1.msra.mxu0 0.0
    %1606 = vmatprep.subr.mxu0 0.0
    %1607 = vmatpush1.msra.mxu0 0.0
    %1608 = vmatprep.subr.mxu0 0.0
    %1609 = vmatpush1.msra.mxu0 0.0
    %1610 = vmatprep.subr.mxu0 0.0
    %1611 = vmatpush1.msra.mxu0 0.0
    %1612 = vmatprep.subr.mxu0 0.0
    %1613 = vmatpush1.msra.mxu0 0.0
    %1614 = vmatprep.subr.mxu0 0.0
    %1615 = vmatpush1.msra.mxu0 0.0
    %1616 = vmatprep.subr.mxu0 0.0
    %1617 = vmatpush1.msra.mxu0 0.0
    %1618 = vmatprep.subr.mxu0 0.0
    %1619 = vmatpush1.msra.mxu0 0.0
    %1620 = vmatprep.subr.mxu0 0.0
    %1621 = vmatpush1.msra.mxu0 0.0
    %1622 = vmatprep.subr.mxu0 0.0
    %1623 = vmatpush1.msra.mxu0 0.0
    %1624 = vmatprep.subr.mxu0 0.0
    %1625 = vmatpush1.msra.mxu0 0.0
    %1626 = vmatprep.subr.mxu0 0.0
    %1627 = vmatpush1.msra.mxu0 0.0
    %1628 = vmatprep.subr.mxu0 0.0
    %1629 = vmatpush1.msra.mxu0 0.0
    %1630 = vmatprep.subr.mxu0 0.0
    %1631 = vmatpush1.msra.mxu0 0.0
    %1632 = vmatprep.subr.mxu0 0.0
    %1633 = vmatpush1.msra.mxu0 0.0
    %1634 = vmatprep.mubr.f32.mxu0 0.0
    %1635 = vmatmul.mubr.f32.gmra.mrb[0].mxu0 %v1567
    %v1636 = vpop.f32.mrb[0].mxu0
    %v1637 = vadd.f32 %v363, %v1636
    %v1638 = vpop.f32.mrb[0].mxu0
    %v1639 = vadd.f32 %v367, %v1638
    %1640 = vdwg.mxu0
    %1641 = vmatprep.subr.mxu0 %v294
    %1642 = vmatpush1.msra.mxu0 %v293
    %1643 = vmatprep.subr.mxu0 %v298
    %1644 = vmatpush1.msra.mxu0 %v297
    %1645 = vmatprep.subr.mxu0 %v302
    %1646 = vmatpush1.msra.mxu0 %v301
    %1647 = vmatprep.subr.mxu0 %v306
    %1648 = vmatpush1.msra.mxu0 %v305
    %1649 = vmatprep.subr.mxu0 %v310
    %1650 = vmatpush1.msra.mxu0 %v309
    %1651 = vmatprep.subr.mxu0 %v314
    %1652 = vmatpush1.msra.mxu0 %v313
    %1653 = vmatprep.subr.mxu0 %v318
    %1654 = vmatpush1.msra.mxu0 %v317
    %1655 = vmatprep.subr.mxu0 %v322
    %1656 = vmatpush1.msra.mxu0 %v321
    %1657 = vmatprep.subr.mxu0 %v326
    %1658 = vmatpush1.msra.mxu0 %v325
    %1659 = vmatprep.subr.mxu0 %v330
    %1660 = vmatpush1.msra.mxu0 %v329
    %1661 = vmatprep.subr.mxu0 %v334
    %1662 = vmatpush1.msra.mxu0 %v333
    %1663 = vmatprep.subr.mxu0 %v338
    %1664 = vmatpush1.msra.mxu0 %v337
    %1665 = vmatprep.subr.mxu0 %v342
    %1666 = vmatpush1.msra.mxu0 %v341
    %1667 = vmatprep.subr.mxu0 %v346
    %1668 = vmatpush1.msra.mxu0 %v345
    %1669 = vmatprep.subr.mxu0 %v350
    %1670 = vmatpush1.msra.mxu0 %v349
    %1671 = vmatprep.subr.mxu0 %v354
    %1672 = vmatpush1.msra.mxu0 %v353
    %1673 = vmatprep.subr.mxu0 0.0
    %1674 = vmatpush1.msra.mxu0 0.0
    %1675 = vmatprep.subr.mxu0 0.0
    %1676 = vmatpush1.msra.mxu0 0.0
    %1677 = vmatprep.subr.mxu0 0.0
    %1678 = vmatpush1.msra.mxu0 0.0
    %1679 = vmatprep.subr.mxu0 0.0
    %1680 = vmatpush1.msra.mxu0 0.0
    %1681 = vmatprep.subr.mxu0 0.0
    %1682 = vmatpush1.msra.mxu0 0.0
    %1683 = vmatprep.subr.mxu0 0.0
    %1684 = vmatpush1.msra.mxu0 0.0
    %1685 = vmatprep.subr.mxu0 0.0
    %1686 = vmatpush1.msra.mxu0 0.0
    %1687 = vmatprep.subr.mxu0 0.0
    %1688 = vmatpush1.msra.mxu0 0.0
    %1689 = vmatprep.subr.mxu0 0.0
    %1690 = vmatpush1.msra.mxu0 0.0
    %1691 = vmatprep.subr.mxu0 0.0
    %1692 = vmatpush1.msra.mxu0 0.0
    %1693 = vmatprep.subr.mxu0 0.0
    %1694 = vmatpush1.msra.mxu0 0.0
    %1695 = vmatprep.subr.mxu0 0.0
    %1696 = vmatpush1.msra.mxu0 0.0
    %1697 = vmatprep.subr.mxu0 0.0
    %1698 = vmatpush1.msra.mxu0 0.0
    %1699 = vmatprep.subr.mxu0 0.0
    %1700 = vmatpush1.msra.mxu0 0.0
    %1701 = vmatprep.subr.mxu0 0.0
    %1702 = vmatpush1.msra.mxu0 0.0
    %1703 = vmatprep.subr.mxu0 0.0
    %1704 = vmatpush1.msra.mxu0 0.0
    %1705 = vmatprep.mubr.f32.mxu0 0.0
    %1706 = vmatmul.mubr.f32.gmra.mrb[0].mxu0 %v1567
    %v1707 = vpop.f32.mrb[0].mxu0
    %v1708 = vadd.f32 %v371, %v1707
    %v1709 = vpop.f32.mrb[0].mxu0
    %v1710 = vadd.f32 %v375, %v1709
    %1711 = vdwg.mxu0
    %v1713 = vrot.slane %v1569, 3
    %v1715 = vadd.f32 %v1713, %v1710
    %1716 = vst [vmem:[#allocation9 + $0x7] sm:$0x1] %v1715
    %v1717 = vadd.f32 %v1569, %v1637
    %v1718 = vmul.f32 %v1717, 0.5
    %v1719 = vtanh.pop %v1718
    %v1720 = vadd.f32 %v1719, 1.0
    %v1721 = vmul.f32 %v1720, 0.5
    %v1722 = vrot.slane %v1569, 1
    %v1724 = vadd.f32 %v1722, %v1639
    %v1725 = vmul.f32 %v1724, 0.5
    %v1726 = vtanh.pop %v1725
    %v1727 = vadd.f32 %v1726, 1.0
    %v1728 = vmul.f32 %v1727, 0.5
    %v1729 = vmul.f32 %v1721, %v1708
    %v1730 = vrot.slane %v1569, 2
    %v1732 = vadd.f32 %v1730, %v1729
    %v1733 = vtanh.pop %v1732
    %v1734 = vsub.f32 1.0, %v1728
    %v1735 = vmul.f32 %v1734, %v1733
    %v1736 = vmul.f32 %v1728, %v1567
    %v1737 = vadd.f32 %v1735, %v1736
    %s1738 = scalar_lea.vmem [#allocation2], 32
    %v1739 = vld [vmem:[%s1738] ss:$8 sm:$0xf]
    %1740 = vmatprep.subr.mxu0 %v292
    %1741 = vmatpush1.msra.mxu0 %v291
    %1742 = vmatprep.subr.mxu0 %v296
    %1743 = vmatpush1.msra.mxu0 %v295
    %1744 = vmatprep.subr.mxu0 %v300
    %1745 = vmatpush1.msra.mxu0 %v299
    %1746 = vmatprep.subr.mxu0 %v304
    %1747 = vmatpush1.msra.mxu0 %v303
    %1748 = vmatprep.subr.mxu0 %v308
    %1749 = vmatpush1.msra.mxu0 %v307
    %1750 = vmatprep.subr.mxu0 %v312
    %1751 = vmatpush1.msra.mxu0 %v311
    %1752 = vmatprep.subr.mxu0 %v316
    %1753 = vmatpush1.msra.mxu0 %v315
    %1754 = vmatprep.subr.mxu0 %v320
    %1755 = vmatpush1.msra.mxu0 %v319
    %1756 = vmatprep.subr.mxu0 %v324
    %1757 = vmatpush1.msra.mxu0 %v323
    %1758 = vmatprep.subr.mxu0 %v328
    %1759 = vmatpush1.msra.mxu0 %v327
    %1760 = vmatprep.subr.mxu0 %v332
    %1761 = vmatpush1.msra.mxu0 %v331
    %1762 = vmatprep.subr.mxu0 %v336
    %1763 = vmatpush1.msra.mxu0 %v335
    %1764 = vmatprep.subr.mxu0 %v340
    %1765 = vmatpush1.msra.mxu0 %v339
    %1766 = vmatprep.subr.mxu0 %v344
    %1767 = vmatpush1.msra.mxu0 %v343
    %1768 = vmatprep.subr.mxu0 %v348
    %1769 = vmatpush1.msra.mxu0 %v347
    %1770 = vmatprep.subr.mxu0 %v352
    %1771 = vmatpush1.msra.mxu0 %v351
    %1772 = vmatprep.subr.mxu0 0.0
    %1773 = vmatpush1.msra.mxu0 0.0
    %1774 = vmatprep.subr.mxu0 0.0
    %1775 = vmatpush1.msra.mxu0 0.0
    %1776 = vmatprep.subr.mxu0 0.0
    %1777 = vmatpush1.msra.mxu0 0.0
    %1778 = vmatprep.subr.mxu0 0.0
    %1779 = vmatpush1.msra.mxu0 0.0
    %1780 = vmatprep.subr.mxu0 0.0
    %1781 = vmatpush1.msra.mxu0 0.0
    %1782 = vmatprep.subr.mxu0 0.0
    %1783 = vmatpush1.msra.mxu0 0.0
    %1784 = vmatprep.subr.mxu0 0.0
    %1785 = vmatpush1.msra.mxu0 0.0
    %1786 = vmatprep.subr.mxu0 0.0
    %1787 = vmatpush1.msra.mxu0 0.0
    %1788 = vmatprep.subr.mxu0 0.0
    %1789 = vmatpush1.msra.mxu0 0.0
    %1790 = vmatprep.subr.mxu0 0.0
    %1791 = vmatpush1.msra.mxu0 0.0
    %1792 = vmatprep.subr.mxu0 0.0
    %1793 = vmatpush1.msra.mxu0 0.0
    %1794 = vmatprep.subr.mxu0 0.0
    %1795 = vmatpush1.msra.mxu0 0.0
    %1796 = vmatprep.subr.mxu0 0.0
    %1797 = vmatpush1.msra.mxu0 0.0
    %1798 = vmatprep.subr.mxu0 0.0
    %1799 = vmatpush1.msra.mxu0 0.0
    %1800 = vmatprep.subr.mxu0 0.0
    %1801 = vmatpush1.msra.mxu0 0.0
    %1802 = vmatprep.subr.mxu0 0.0
    %1803 = vmatpush1.msra.mxu0 0.0
    %1804 = vmatprep.mubr.f32.mxu0 0.0
    %1805 = vmatmul.mubr.f32.gmra.mrb[0].mxu0 %v1737
    %v1806 = vpop.f32.mrb[0].mxu0
    %v1807 = vadd.f32 %v363, %v1806
    %v1808 = vpop.f32.mrb[0].mxu0
    %v1809 = vadd.f32 %v367, %v1808
    %1810 = vdwg.mxu0
    %1811 = vmatprep.subr.mxu0 %v294
    %1812 = vmatpush1.msra.mxu0 %v293
    %1813 = vmatprep.subr.mxu0 %v298
    %1814 = vmatpush1.msra.mxu0 %v297
    %1815 = vmatprep.subr.mxu0 %v302
    %1816 = vmatpush1.msra.mxu0 %v301
    %1817 = vmatprep.subr.mxu0 %v306
    %1818 = vmatpush1.msra.mxu0 %v305
    %1819 = vmatprep.subr.mxu0 %v310
    %1820 = vmatpush1.msra.mxu0 %v309
    %1821 = vmatprep.subr.mxu0 %v314
    %1822 = vmatpush1.msra.mxu0 %v313
    %1823 = vmatprep.subr.mxu0 %v318
    %1824 = vmatpush1.msra.mxu0 %v317
    %1825 = vmatprep.subr.mxu0 %v322
    %1826 = vmatpush1.msra.mxu0 %v321
    %1827 = vmatprep.subr.mxu0 %v326
    %1828 = vmatpush1.msra.mxu0 %v325
    %1829 = vmatprep.subr.mxu0 %v330
    %1830 = vmatpush1.msra.mxu0 %v329
    %1831 = vmatprep.subr.mxu0 %v334
    %1832 = vmatpush1.msra.mxu0 %v333
    %1833 = vmatprep.subr.mxu0 %v338
    %1834 = vmatpush1.msra.mxu0 %v337
    %1835 = vmatprep.subr.mxu0 %v342
    %1836 = vmatpush1.msra.mxu0 %v341
    %1837 = vmatprep.subr.mxu0 %v346
    %1838 = vmatpush1.msra.mxu0 %v345
    %1839 = vmatprep.subr.mxu0 %v350
    %1840 = vmatpush1.msra.mxu0 %v349
    %1841 = vmatprep.subr.mxu0 %v354
    %1842 = vmatpush1.msra.mxu0 %v353
    %1843 = vmatprep.subr.mxu0 0.0
    %1844 = vmatpush1.msra.mxu0 0.0
    %1845 = vmatprep.subr.mxu0 0.0
    %1846 = vmatpush1.msra.mxu0 0.0
    %1847 = vmatprep.subr.mxu0 0.0
    %1848 = vmatpush1.msra.mxu0 0.0
    %1849 = vmatprep.subr.mxu0 0.0
    %1850 = vmatpush1.msra.mxu0 0.0
    %1851 = vmatprep.subr.mxu0 0.0
    %1852 = vmatpush1.msra.mxu0 0.0
    %1853 = vmatprep.subr.mxu0 0.0
    %1854 = vmatpush1.msra.mxu0 0.0
    %1855 = vmatprep.subr.mxu0 0.0
    %1856 = vmatpush1.msra.mxu0 0.0
    %1857 = vmatprep.subr.mxu0 0.0
    %1858 = vmatpush1.msra.mxu0 0.0
    %1859 = vmatprep.subr.mxu0 0.0
    %1860 = vmatpush1.msra.mxu0 0.0
    %1861 = vmatprep.subr.mxu0 0.0
    %1862 = vmatpush1.msra.mxu0 0.0
    %1863 = vmatprep.subr.mxu0 0.0
    %1864 = vmatpush1.msra.mxu0 0.0
    %1865 = vmatprep.subr.mxu0 0.0
    %1866 = vmatpush1.msra.mxu0 0.0
    %1867 = vmatprep.subr.mxu0 0.0
    %1868 = vmatpush1.msra.mxu0 0.0
    %1869 = vmatprep.subr.mxu0 0.0
    %1870 = vmatpush1.msra.mxu0 0.0
    %1871 = vmatprep.subr.mxu0 0.0
    %1872 = vmatpush1.msra.mxu0 0.0
    %1873 = vmatprep.subr.mxu0 0.0
    %1874 = vmatpush1.msra.mxu0 0.0
    %1875 = vmatprep.mubr.f32.mxu0 0.0
    %1876 = vmatmul.mubr.f32.gmra.mrb[0].mxu0 %v1737
    %v1877 = vpop.f32.mrb[0].mxu0
    %v1878 = vadd.f32 %v371, %v1877
    %v1879 = vpop.f32.mrb[0].mxu0
    %v1880 = vadd.f32 %v375, %v1879
    %1881 = vdwg.mxu0
    %v1883 = vrot.slane %v1739, 3
    %v1885 = vadd.f32 %v1883, %v1880
    %1886 = vst [vmem:[#allocation9 + $0x8] sm:$0x1] %v1885
    %v1887 = vadd.f32 %v1739, %v1807
    %v1888 = vmul.f32 %v1887, 0.5
    %v1889 = vtanh.pop %v1888
    %v1890 = vadd.f32 %v1889, 1.0
    %v1891 = vmul.f32 %v1890, 0.5
    %v1892 = vrot.slane %v1739, 1
    %v1894 = vadd.f32 %v1892, %v1809
    %v1895 = vmul.f32 %v1894, 0.5
    %v1896 = vtanh.pop %v1895
    %v1897 = vadd.f32 %v1896, 1.0
    %v1898 = vmul.f32 %v1897, 0.5
    %v1899 = vmul.f32 %v1891, %v1878
    %v1900 = vrot.slane %v1739, 2
    %v1902 = vadd.f32 %v1900, %v1899
    %v1903 = vtanh.pop %v1902
    %v1904 = vsub.f32 1.0, %v1898
    %v1905 = vmul.f32 %v1904, %v1903
    %v1906 = vmul.f32 %v1898, %v1737
    %v1907 = vadd.f32 %v1905, %v1906
    %s1908 = scalar_lea.vmem [#allocation2], 33
    %v1909 = vld [vmem:[%s1908] ss:$8 sm:$0xf]
    %1910 = vmatprep.subr.mxu0 %v292
    %1911 = vmatpush1.msra.mxu0 %v291
    %1912 = vmatprep.subr.mxu0 %v296
    %1913 = vmatpush1.msra.mxu0 %v295
    %1914 = vmatprep.subr.mxu0 %v300
    %1915 = vmatpush1.msra.mxu0 %v299
    %1916 = vmatprep.subr.mxu0 %v304
    %1917 = vmatpush1.msra.mxu0 %v303
    %1918 = vmatprep.subr.mxu0 %v308
    %1919 = vmatpush1.msra.mxu0 %v307
    %1920 = vmatprep.subr.mxu0 %v312
    %1921 = vmatpush1.msra.mxu0 %v311
    %1922 = vmatprep.subr.mxu0 %v316
    %1923 = vmatpush1.msra.mxu0 %v315
    %1924 = vmatprep.subr.mxu0 %v320
    %1925 = vmatpush1.msra.mxu0 %v319
    %1926 = vmatprep.subr.mxu0 %v324
    %1927 = vmatpush1.msra.mxu0 %v323
    %1928 = vmatprep.subr.mxu0 %v328
    %1929 = vmatpush1.msra.mxu0 %v327
    %1930 = vmatprep.subr.mxu0 %v332
    %1931 = vmatpush1.msra.mxu0 %v331
    %1932 = vmatprep.subr.mxu0 %v336
    %1933 = vmatpush1.msra.mxu0 %v335
    %1934 = vmatprep.subr.mxu0 %v340
    %1935 = vmatpush1.msra.mxu0 %v339
    %1936 = vmatprep.subr.mxu0 %v344
    %1937 = vmatpush1.msra.mxu0 %v343
    %1938 = vmatprep.subr.mxu0 %v348
    %1939 = vmatpush1.msra.mxu0 %v347
    %1940 = vmatprep.subr.mxu0 %v352
    %1941 = vmatpush1.msra.mxu0 %v351
    %1942 = vmatprep.subr.mxu0 0.0
    %1943 = vmatpush1.msra.mxu0 0.0
    %1944 = vmatprep.subr.mxu0 0.0
    %1945 = vmatpush1.msra.mxu0 0.0
    %1946 = vmatprep.subr.mxu0 0.0
    %1947 = vmatpush1.msra.mxu0 0.0
    %1948 = vmatprep.subr.mxu0 0.0
    %1949 = vmatpush1.msra.mxu0 0.0
    %1950 = vmatprep.subr.mxu0 0.0
    %1951 = vmatpush1.msra.mxu0 0.0
    %1952 = vmatprep.subr.mxu0 0.0
    %1953 = vmatpush1.msra.mxu0 0.0
    %1954 = vmatprep.subr.mxu0 0.0
    %1955 = vmatpush1.msra.mxu0 0.0
    %1956 = vmatprep.subr.mxu0 0.0
    %1957 = vmatpush1.msra.mxu0 0.0
    %1958 = vmatprep.subr.mxu0 0.0
    %1959 = vmatpush1.msra.mxu0 0.0
    %1960 = vmatprep.subr.mxu0 0.0
    %1961 = vmatpush1.msra.mxu0 0.0
    %1962 = vmatprep.subr.mxu0 0.0
    %1963 = vmatpush1.msra.mxu0 0.0
    %1964 = vmatprep.subr.mxu0 0.0
    %1965 = vmatpush1.msra.mxu0 0.0
    %1966 = vmatprep.subr.mxu0 0.0
    %1967 = vmatpush1.msra.mxu0 0.0
    %1968 = vmatprep.subr.mxu0 0.0
    %1969 = vmatpush1.msra.mxu0 0.0
    %1970 = vmatprep.subr.mxu0 0.0
    %1971 = vmatpush1.msra.mxu0 0.0
    %1972 = vmatprep.subr.mxu0 0.0
    %1973 = vmatpush1.msra.mxu0 0.0
    %1974 = vmatprep.mubr.f32.mxu0 0.0
    %1975 = vmatmul.mubr.f32.gmra.mrb[0].mxu0 %v1907
    %v1976 = vpop.f32.mrb[0].mxu0
    %v1977 = vadd.f32 %v363, %v1976
    %v1978 = vpop.f32.mrb[0].mxu0
    %v1979 = vadd.f32 %v367, %v1978
    %1980 = vdwg.mxu0
    %1981 = vmatprep.subr.mxu0 %v294
    %1982 = vmatpush1.msra.mxu0 %v293
    %1983 = vmatprep.subr.mxu0 %v298
    %1984 = vmatpush1.msra.mxu0 %v297
    %1985 = vmatprep.subr.mxu0 %v302
    %1986 = vmatpush1.msra.mxu0 %v301
    %1987 = vmatprep.subr.mxu0 %v306
    %1988 = vmatpush1.msra.mxu0 %v305
    %1989 = vmatprep.subr.mxu0 %v310
    %1990 = vmatpush1.msra.mxu0 %v309
    %1991 = vmatprep.subr.mxu0 %v314
    %1992 = vmatpush1.msra.mxu0 %v313
    %1993 = vmatprep.subr.mxu0 %v318
    %1994 = vmatpush1.msra.mxu0 %v317
    %1995 = vmatprep.subr.mxu0 %v322
    %1996 = vmatpush1.msra.mxu0 %v321
    %1997 = vmatprep.subr.mxu0 %v326
    %1998 = vmatpush1.msra.mxu0 %v325
    %1999 = vmatprep.subr.mxu0 %v330
    %2000 = vmatpush1.msra.mxu0 %v329
    %2001 = vmatprep.subr.mxu0 %v334
    %2002 = vmatpush1.msra.mxu0 %v333
    %2003 = vmatprep.subr.mxu0 %v338
    %2004 = vmatpush1.msra.mxu0 %v337
    %2005 = vmatprep.subr.mxu0 %v342
    %2006 = vmatpush1.msra.mxu0 %v341
    %2007 = vmatprep.subr.mxu0 %v346
    %2008 = vmatpush1.msra.mxu0 %v345
    %2009 = vmatprep.subr.mxu0 %v350
    %2010 = vmatpush1.msra.mxu0 %v349
    %2011 = vmatprep.subr.mxu0 %v354
    %2012 = vmatpush1.msra.mxu0 %v353
    %2013 = vmatprep.subr.mxu0 0.0
    %2014 = vmatpush1.msra.mxu0 0.0
    %2015 = vmatprep.subr.mxu0 0.0
    %2016 = vmatpush1.msra.mxu0 0.0
    %2017 = vmatprep.subr.mxu0 0.0
    %2018 = vmatpush1.msra.mxu0 0.0
    %2019 = vmatprep.subr.mxu0 0.0
    %2020 = vmatpush1.msra.mxu0 0.0
    %2021 = vmatprep.subr.mxu0 0.0
    %2022 = vmatpush1.msra.mxu0 0.0
    %2023 = vmatprep.subr.mxu0 0.0
    %2024 = vmatpush1.msra.mxu0 0.0
    %2025 = vmatprep.subr.mxu0 0.0
    %2026 = vmatpush1.msra.mxu0 0.0
    %2027 = vmatprep.subr.mxu0 0.0
    %2028 = vmatpush1.msra.mxu0 0.0
    %2029 = vmatprep.subr.mxu0 0.0
    %2030 = vmatpush1.msra.mxu0 0.0
    %2031 = vmatprep.subr.mxu0 0.0
    %2032 = vmatpush1.msra.mxu0 0.0
    %2033 = vmatprep.subr.mxu0 0.0
    %2034 = vmatpush1.msra.mxu0 0.0
    %2035 = vmatprep.subr.mxu0 0.0
    %2036 = vmatpush1.msra.mxu0 0.0
    %2037 = vmatprep.subr.mxu0 0.0
    %2038 = vmatpush1.msra.mxu0 0.0
    %2039 = vmatprep.subr.mxu0 0.0
    %2040 = vmatpush1.msra.mxu0 0.0
    %2041 = vmatprep.subr.mxu0 0.0
    %2042 = vmatpush1.msra.mxu0 0.0
    %2043 = vmatprep.subr.mxu0 0.0
    %2044 = vmatpush1.msra.mxu0 0.0
    %2045 = vmatprep.mubr.f32.mxu0 0.0
    %2046 = vmatmul.mubr.f32.gmra.mrb[0].mxu0 %v1907
    %v2047 = vpop.f32.mrb[0].mxu0
    %v2048 = vadd.f32 %v371, %v2047
    %v2049 = vpop.f32.mrb[0].mxu0
    %v2050 = vadd.f32 %v375, %v2049
    %2051 = vdwg.mxu0
    %v2053 = vrot.slane %v1909, 3
    %v2055 = vadd.f32 %v2053, %v2050
    %2056 = vst [vmem:[#allocation9 + $0x9] sm:$0x1] %v2055
    %v2057 = vadd.f32 %v1909, %v1977
    %v2058 = vmul.f32 %v2057, 0.5
    %v2059 = vtanh.pop %v2058
    %v2060 = vadd.f32 %v2059, 1.0
    %v2061 = vmul.f32 %v2060, 0.5
    %v2062 = vrot.slane %v1909, 1
    %v2064 = vadd.f32 %v2062, %v1979
    %v2065 = vmul.f32 %v2064, 0.5
    %v2066 = vtanh.pop %v2065
    %v2067 = vadd.f32 %v2066, 1.0
    %v2068 = vmul.f32 %v2067, 0.5
    %v2069 = vmul.f32 %v2061, %v2048
    %v2070 = vrot.slane %v1909, 2
    %v2072 = vadd.f32 %v2070, %v2069
    %v2073 = vtanh.pop %v2072
    %v2074 = vsub.f32 1.0, %v2068
    %v2075 = vmul.f32 %v2074, %v2073
    %v2076 = vmul.f32 %v2068, %v1907
    %v2077 = vadd.f32 %v2075, %v2076
    %s2078 = scalar_lea.vmem [#allocation2], 34
    %v2079 = vld [vmem:[%s2078] ss:$8 sm:$0xf]
    %2080 = vmatprep.subr.mxu0 %v292
    %2081 = vmatpush1.msra.mxu0 %v291
    %2082 = vmatprep.subr.mxu0 %v296
    %2083 = vmatpush1.msra.mxu0 %v295
    %2084 = vmatprep.subr.mxu0 %v300
    %2085 = vmatpush1.msra.mxu0 %v299
    %2086 = vmatprep.subr.mxu0 %v304
    %2087 = vmatpush1.msra.mxu0 %v303
    %2088 = vmatprep.subr.mxu0 %v308
    %2089 = vmatpush1.msra.mxu0 %v307
    %2090 = vmatprep.subr.mxu0 %v312
    %2091 = vmatpush1.msra.mxu0 %v311
    %2092 = vmatprep.subr.mxu0 %v316
    %2093 = vmatpush1.msra.mxu0 %v315
    %2094 = vmatprep.subr.mxu0 %v320
    %2095 = vmatpush1.msra.mxu0 %v319
    %2096 = vmatprep.subr.mxu0 %v324
    %2097 = vmatpush1.msra.mxu0 %v323
    %2098 = vmatprep.subr.mxu0 %v328
    %2099 = vmatpush1.msra.mxu0 %v327
    %2100 = vmatprep.subr.mxu0 %v332
    %2101 = vmatpush1.msra.mxu0 %v331
    %2102 = vmatprep.subr.mxu0 %v336
    %2103 = vmatpush1.msra.mxu0 %v335
    %2104 = vmatprep.subr.mxu0 %v340
    %2105 = vmatpush1.msra.mxu0 %v339
    %2106 = vmatprep.subr.mxu0 %v344
    %2107 = vmatpush1.msra.mxu0 %v343
    %2108 = vmatprep.subr.mxu0 %v348
    %2109 = vmatpush1.msra.mxu0 %v347
    %2110 = vmatprep.subr.mxu0 %v352
    %2111 = vmatpush1.msra.mxu0 %v351
    %2112 = vmatprep.subr.mxu0 0.0
    %2113 = vmatpush1.msra.mxu0 0.0
    %2114 = vmatprep.subr.mxu0 0.0
    %2115 = vmatpush1.msra.mxu0 0.0
    %2116 = vmatprep.subr.mxu0 0.0
    %2117 = vmatpush1.msra.mxu0 0.0
    %2118 = vmatprep.subr.mxu0 0.0
    %2119 = vmatpush1.msra.mxu0 0.0
    %2120 = vmatprep.subr.mxu0 0.0
    %2121 = vmatpush1.msra.mxu0 0.0
    %2122 = vmatprep.subr.mxu0 0.0
    %2123 = vmatpush1.msra.mxu0 0.0
    %2124 = vmatprep.subr.mxu0 0.0
    %2125 = vmatpush1.msra.mxu0 0.0
    %2126 = vmatprep.subr.mxu0 0.0
    %2127 = vmatpush1.msra.mxu0 0.0
    %2128 = vmatprep.subr.mxu0 0.0
    %2129 = vmatpush1.msra.mxu0 0.0
    %2130 = vmatprep.subr.mxu0 0.0
    %2131 = vmatpush1.msra.mxu0 0.0
    %2132 = vmatprep.subr.mxu0 0.0
    %2133 = vmatpush1.msra.mxu0 0.0
    %2134 = vmatprep.subr.mxu0 0.0
    %2135 = vmatpush1.msra.mxu0 0.0
    %2136 = vmatprep.subr.mxu0 0.0
    %2137 = vmatpush1.msra.mxu0 0.0
    %2138 = vmatprep.subr.mxu0 0.0
    %2139 = vmatpush1.msra.mxu0 0.0
    %2140 = vmatprep.subr.mxu0 0.0
    %2141 = vmatpush1.msra.mxu0 0.0
    %2142 = vmatprep.subr.mxu0 0.0
    %2143 = vmatpush1.msra.mxu0 0.0
    %2144 = vmatprep.mubr.f32.mxu0 0.0
    %2145 = vmatmul.mubr.f32.gmra.mrb[0].mxu0 %v2077
    %v2146 = vpop.f32.mrb[0].mxu0
    %v2147 = vadd.f32 %v363, %v2146
    %v2148 = vpop.f32.mrb[0].mxu0
    %v2149 = vadd.f32 %v367, %v2148
    %2150 = vdwg.mxu0
    %2151 = vmatprep.subr.mxu0 %v294
    %2152 = vmatpush1.msra.mxu0 %v293
    %2153 = vmatprep.subr.mxu0 %v298
    %2154 = vmatpush1.msra.mxu0 %v297
    %2155 = vmatprep.subr.mxu0 %v302
    %2156 = vmatpush1.msra.mxu0 %v301
    %2157 = vmatprep.subr.mxu0 %v306
    %2158 = vmatpush1.msra.mxu0 %v305
    %2159 = vmatprep.subr.mxu0 %v310
    %2160 = vmatpush1.msra.mxu0 %v309
    %2161 = vmatprep.subr.mxu0 %v314
    %2162 = vmatpush1.msra.mxu0 %v313
    %2163 = vmatprep.subr.mxu0 %v318
    %2164 = vmatpush1.msra.mxu0 %v317
    %2165 = vmatprep.subr.mxu0 %v322
    %2166 = vmatpush1.msra.mxu0 %v321
    %2167 = vmatprep.subr.mxu0 %v326
    %2168 = vmatpush1.msra.mxu0 %v325
    %2169 = vmatprep.subr.mxu0 %v330
    %2170 = vmatpush1.msra.mxu0 %v329
    %2171 = vmatprep.subr.mxu0 %v334
    %2172 = vmatpush1.msra.mxu0 %v333
    %2173 = vmatprep.subr.mxu0 %v338
    %2174 = vmatpush1.msra.mxu0 %v337
    %2175 = vmatprep.subr.mxu0 %v342
    %2176 = vmatpush1.msra.mxu0 %v341
    %2177 = vmatprep.subr.mxu0 %v346
    %2178 = vmatpush1.msra.mxu0 %v345
    %2179 = vmatprep.subr.mxu0 %v350
    %2180 = vmatpush1.msra.mxu0 %v349
    %2181 = vmatprep.subr.mxu0 %v354
    %2182 = vmatpush1.msra.mxu0 %v353
    %2183 = vmatprep.subr.mxu0 0.0
    %2184 = vmatpush1.msra.mxu0 0.0
    %2185 = vmatprep.subr.mxu0 0.0
    %2186 = vmatpush1.msra.mxu0 0.0
    %2187 = vmatprep.subr.mxu0 0.0
    %2188 = vmatpush1.msra.mxu0 0.0
    %2189 = vmatprep.subr.mxu0 0.0
    %2190 = vmatpush1.msra.mxu0 0.0
    %2191 = vmatprep.subr.mxu0 0.0
    %2192 = vmatpush1.msra.mxu0 0.0
    %2193 = vmatprep.subr.mxu0 0.0
    %2194 = vmatpush1.msra.mxu0 0.0
    %2195 = vmatprep.subr.mxu0 0.0
    %2196 = vmatpush1.msra.mxu0 0.0
    %2197 = vmatprep.subr.mxu0 0.0
    %2198 = vmatpush1.msra.mxu0 0.0
    %2199 = vmatprep.subr.mxu0 0.0
    %2200 = vmatpush1.msra.mxu0 0.0
    %2201 = vmatprep.subr.mxu0 0.0
    %2202 = vmatpush1.msra.mxu0 0.0
    %2203 = vmatprep.subr.mxu0 0.0
    %2204 = vmatpush1.msra.mxu0 0.0
    %2205 = vmatprep.subr.mxu0 0.0
    %2206 = vmatpush1.msra.mxu0 0.0
    %2207 = vmatprep.subr.mxu0 0.0
    %2208 = vmatpush1.msra.mxu0 0.0
    %2209 = vmatprep.subr.mxu0 0.0
    %2210 = vmatpush1.msra.mxu0 0.0
    %2211 = vmatprep.subr.mxu0 0.0
    %2212 = vmatpush1.msra.mxu0 0.0
    %2213 = vmatprep.subr.mxu0 0.0
    %2214 = vmatpush1.msra.mxu0 0.0
    %2215 = vmatprep.mubr.f32.mxu0 0.0
    %2216 = vmatmul.mubr.f32.gmra.mrb[0].mxu0 %v2077
    %v2217 = vpop.f32.mrb[0].mxu0
    %v2218 = vadd.f32 %v371, %v2217
    %v2219 = vpop.f32.mrb[0].mxu0
    %v2220 = vadd.f32 %v375, %v2219
    %2221 = vdwg.mxu0
    %v2223 = vrot.slane %v2079, 3
    %v2225 = vadd.f32 %v2223, %v2220
    %2226 = vst [vmem:[#allocation9 + $0xa] sm:$0x1] %v2225
    %v2227 = vadd.f32 %v2079, %v2147
    %v2228 = vmul.f32 %v2227, 0.5
    %v2229 = vtanh.pop %v2228
    %v2230 = vadd.f32 %v2229, 1.0
    %v2231 = vmul.f32 %v2230, 0.5
    %v2232 = vrot.slane %v2079, 1
    %v2234 = vadd.f32 %v2232, %v2149
    %v2235 = vmul.f32 %v2234, 0.5
    %v2236 = vtanh.pop %v2235
    %v2237 = vadd.f32 %v2236, 1.0
    %v2238 = vmul.f32 %v2237, 0.5
    %v2239 = vmul.f32 %v2231, %v2218
    %v2240 = vrot.slane %v2079, 2
    %v2242 = vadd.f32 %v2240, %v2239
    %v2243 = vtanh.pop %v2242
    %v2244 = vsub.f32 1.0, %v2238
    %v2245 = vmul.f32 %v2244, %v2243
    %v2246 = vmul.f32 %v2238, %v2077
    %v2247 = vadd.f32 %v2245, %v2246
    %s2248 = scalar_lea.vmem [#allocation2], 35
    %v2249 = vld [vmem:[%s2248] ss:$8 sm:$0xf]
    %2250 = vmatprep.subr.mxu0 %v292
    %2251 = vmatpush1.msra.mxu0 %v291
    %2252 = vmatprep.subr.mxu0 %v296
    %2253 = vmatpush1.msra.mxu0 %v295
    %2254 = vmatprep.subr.mxu0 %v300
    %2255 = vmatpush1.msra.mxu0 %v299
    %2256 = vmatprep.subr.mxu0 %v304
    %2257 = vmatpush1.msra.mxu0 %v303
    %2258 = vmatprep.subr.mxu0 %v308
    %2259 = vmatpush1.msra.mxu0 %v307
    %2260 = vmatprep.subr.mxu0 %v312
    %2261 = vmatpush1.msra.mxu0 %v311
    %2262 = vmatprep.subr.mxu0 %v316
    %2263 = vmatpush1.msra.mxu0 %v315
    %2264 = vmatprep.subr.mxu0 %v320
    %2265 = vmatpush1.msra.mxu0 %v319
    %2266 = vmatprep.subr.mxu0 %v324
    %2267 = vmatpush1.msra.mxu0 %v323
    %2268 = vmatprep.subr.mxu0 %v328
    %2269 = vmatpush1.msra.mxu0 %v327
    %2270 = vmatprep.subr.mxu0 %v332
    %2271 = vmatpush1.msra.mxu0 %v331
    %2272 = vmatprep.subr.mxu0 %v336
    %2273 = vmatpush1.msra.mxu0 %v335
    %2274 = vmatprep.subr.mxu0 %v340
    %2275 = vmatpush1.msra.mxu0 %v339
    %2276 = vmatprep.subr.mxu0 %v344
    %2277 = vmatpush1.msra.mxu0 %v343
    %2278 = vmatprep.subr.mxu0 %v348
    %2279 = vmatpush1.msra.mxu0 %v347
    %2280 = vmatprep.subr.mxu0 %v352
    %2281 = vmatpush1.msra.mxu0 %v351
    %2282 = vmatprep.subr.mxu0 0.0
    %2283 = vmatpush1.msra.mxu0 0.0
    %2284 = vmatprep.subr.mxu0 0.0
    %2285 = vmatpush1.msra.mxu0 0.0
    %2286 = vmatprep.subr.mxu0 0.0
    %2287 = vmatpush1.msra.mxu0 0.0
    %2288 = vmatprep.subr.mxu0 0.0
    %2289 = vmatpush1.msra.mxu0 0.0
    %2290 = vmatprep.subr.mxu0 0.0
    %2291 = vmatpush1.msra.mxu0 0.0
    %2292 = vmatprep.subr.mxu0 0.0
    %2293 = vmatpush1.msra.mxu0 0.0
    %2294 = vmatprep.subr.mxu0 0.0
    %2295 = vmatpush1.msra.mxu0 0.0
    %2296 = vmatprep.subr.mxu0 0.0
    %2297 = vmatpush1.msra.mxu0 0.0
    %2298 = vmatprep.subr.mxu0 0.0
    %2299 = vmatpush1.msra.mxu0 0.0
    %2300 = vmatprep.subr.mxu0 0.0
    %2301 = vmatpush1.msra.mxu0 0.0
    %2302 = vmatprep.subr.mxu0 0.0
    %2303 = vmatpush1.msra.mxu0 0.0
    %2304 = vmatprep.subr.mxu0 0.0
    %2305 = vmatpush1.msra.mxu0 0.0
    %2306 = vmatprep.subr.mxu0 0.0
    %2307 = vmatpush1.msra.mxu0 0.0
    %2308 = vmatprep.subr.mxu0 0.0
    %2309 = vmatpush1.msra.mxu0 0.0
    %2310 = vmatprep.subr.mxu0 0.0
    %2311 = vmatpush1.msra.mxu0 0.0
    %2312 = vmatprep.subr.mxu0 0.0
    %2313 = vmatpush1.msra.mxu0 0.0
    %2314 = vmatprep.mubr.f32.mxu0 0.0
    %2315 = vmatmul.mubr.f32.gmra.mrb[0].mxu0 %v2247
    %v2316 = vpop.f32.mrb[0].mxu0
    %v2317 = vadd.f32 %v363, %v2316
    %v2318 = vpop.f32.mrb[0].mxu0
    %v2319 = vadd.f32 %v367, %v2318
    %2320 = vdwg.mxu0
    %2321 = vmatprep.subr.mxu0 %v294
    %2322 = vmatpush1.msra.mxu0 %v293
    %2323 = vmatprep.subr.mxu0 %v298
    %2324 = vmatpush1.msra.mxu0 %v297
    %2325 = vmatprep.subr.mxu0 %v302
    %2326 = vmatpush1.msra.mxu0 %v301
    %2327 = vmatprep.subr.mxu0 %v306
    %2328 = vmatpush1.msra.mxu0 %v305
    %2329 = vmatprep.subr.mxu0 %v310
    %2330 = vmatpush1.msra.mxu0 %v309
    %2331 = vmatprep.subr.mxu0 %v314
    %2332 = vmatpush1.msra.mxu0 %v313
    %2333 = vmatprep.subr.mxu0 %v318
    %2334 = vmatpush1.msra.mxu0 %v317
    %2335 = vmatprep.subr.mxu0 %v322
    %2336 = vmatpush1.msra.mxu0 %v321
    %2337 = vmatprep.subr.mxu0 %v326
    %2338 = vmatpush1.msra.mxu0 %v325
    %2339 = vmatprep.subr.mxu0 %v330
    %2340 = vmatpush1.msra.mxu0 %v329
    %2341 = vmatprep.subr.mxu0 %v334
    %2342 = vmatpush1.msra.mxu0 %v333
    %2343 = vmatprep.subr.mxu0 %v338
    %2344 = vmatpush1.msra.mxu0 %v337
    %2345 = vmatprep.subr.mxu0 %v342
    %2346 = vmatpush1.msra.mxu0 %v341
    %2347 = vmatprep.subr.mxu0 %v346
    %2348 = vmatpush1.msra.mxu0 %v345
    %2349 = vmatprep.subr.mxu0 %v350
    %2350 = vmatpush1.msra.mxu0 %v349
    %2351 = vmatprep.subr.mxu0 %v354
    %2352 = vmatpush1.msra.mxu0 %v353
    %2353 = vmatprep.subr.mxu0 0.0
    %2354 = vmatpush1.msra.mxu0 0.0
    %2355 = vmatprep.subr.mxu0 0.0
    %2356 = vmatpush1.msra.mxu0 0.0
    %2357 = vmatprep.subr.mxu0 0.0
    %2358 = vmatpush1.msra.mxu0 0.0
    %2359 = vmatprep.subr.mxu0 0.0
    %2360 = vmatpush1.msra.mxu0 0.0
    %2361 = vmatprep.subr.mxu0 0.0
    %2362 = vmatpush1.msra.mxu0 0.0
    %2363 = vmatprep.subr.mxu0 0.0
    %2364 = vmatpush1.msra.mxu0 0.0
    %2365 = vmatprep.subr.mxu0 0.0
    %2366 = vmatpush1.msra.mxu0 0.0
    %2367 = vmatprep.subr.mxu0 0.0
    %2368 = vmatpush1.msra.mxu0 0.0
    %2369 = vmatprep.subr.mxu0 0.0
    %2370 = vmatpush1.msra.mxu0 0.0
    %2371 = vmatprep.subr.mxu0 0.0
    %2372 = vmatpush1.msra.mxu0 0.0
    %2373 = vmatprep.subr.mxu0 0.0
    %2374 = vmatpush1.msra.mxu0 0.0
    %2375 = vmatprep.subr.mxu0 0.0
    %2376 = vmatpush1.msra.mxu0 0.0
    %2377 = vmatprep.subr.mxu0 0.0
    %2378 = vmatpush1.msra.mxu0 0.0
    %2379 = vmatprep.subr.mxu0 0.0
    %2380 = vmatpush1.msra.mxu0 0.0
    %2381 = vmatprep.subr.mxu0 0.0
    %2382 = vmatpush1.msra.mxu0 0.0
    %2383 = vmatprep.subr.mxu0 0.0
    %2384 = vmatpush1.msra.mxu0 0.0
    %2385 = vmatprep.mubr.f32.mxu0 0.0
    %2386 = vmatmul.mubr.f32.gmra.mrb[0].mxu0 %v2247
    %v2387 = vpop.f32.mrb[0].mxu0
    %v2388 = vadd.f32 %v371, %v2387
    %v2389 = vpop.f32.mrb[0].mxu0
    %v2390 = vadd.f32 %v375, %v2389
    %2391 = vdwg.mxu0
    %v2393 = vrot.slane %v2249, 3
    %v2395 = vadd.f32 %v2393, %v2390
    %2396 = vst [vmem:[#allocation9 + $0xb] sm:$0x1] %v2395
    %v2397 = vadd.f32 %v2249, %v2317
    %v2398 = vmul.f32 %v2397, 0.5
    %v2399 = vtanh.pop %v2398
    %v2400 = vadd.f32 %v2399, 1.0
    %v2401 = vmul.f32 %v2400, 0.5
    %v2402 = vrot.slane %v2249, 1
    %v2404 = vadd.f32 %v2402, %v2319
    %v2405 = vmul.f32 %v2404, 0.5
    %v2406 = vtanh.pop %v2405
    %v2407 = vadd.f32 %v2406, 1.0
    %v2408 = vmul.f32 %v2407, 0.5
    %v2409 = vmul.f32 %v2401, %v2388
    %v2410 = vrot.slane %v2249, 2
    %v2412 = vadd.f32 %v2410, %v2409
    %v2413 = vtanh.pop %v2412
    %v2414 = vsub.f32 1.0, %v2408
    %v2415 = vmul.f32 %v2414, %v2413
    %v2416 = vmul.f32 %v2408, %v2247
    %v2417 = vadd.f32 %v2415, %v2416
    %s2418 = scalar_lea.vmem [#allocation2], 36
    %v2419 = vld [vmem:[%s2418] ss:$8 sm:$0xf]
    %2420 = vmatprep.subr.mxu0 %v292
    %2421 = vmatpush1.msra.mxu0 %v291
    %2422 = vmatprep.subr.mxu0 %v296
    %2423 = vmatpush1.msra.mxu0 %v295
    %2424 = vmatprep.subr.mxu0 %v300
    %2425 = vmatpush1.msra.mxu0 %v299
    %2426 = vmatprep.subr.mxu0 %v304
    %2427 = vmatpush1.msra.mxu0 %v303
    %2428 = vmatprep.subr.mxu0 %v308
    %2429 = vmatpush1.msra.mxu0 %v307
    %2430 = vmatprep.subr.mxu0 %v312
    %2431 = vmatpush1.msra.mxu0 %v311
    %2432 = vmatprep.subr.mxu0 %v316
    %2433 = vmatpush1.msra.mxu0 %v315
    %2434 = vmatprep.subr.mxu0 %v320
    %2435 = vmatpush1.msra.mxu0 %v319
    %2436 = vmatprep.subr.mxu0 %v324
    %2437 = vmatpush1.msra.mxu0 %v323
    %2438 = vmatprep.subr.mxu0 %v328
    %2439 = vmatpush1.msra.mxu0 %v327
    %2440 = vmatprep.subr.mxu0 %v332
    %2441 = vmatpush1.msra.mxu0 %v331
    %2442 = vmatprep.subr.mxu0 %v336
    %2443 = vmatpush1.msra.mxu0 %v335
    %2444 = vmatprep.subr.mxu0 %v340
    %2445 = vmatpush1.msra.mxu0 %v339
    %2446 = vmatprep.subr.mxu0 %v344
    %2447 = vmatpush1.msra.mxu0 %v343
    %2448 = vmatprep.subr.mxu0 %v348
    %2449 = vmatpush1.msra.mxu0 %v347
    %2450 = vmatprep.subr.mxu0 %v352
    %2451 = vmatpush1.msra.mxu0 %v351
    %2452 = vmatprep.subr.mxu0 0.0
    %2453 = vmatpush1.msra.mxu0 0.0
    %2454 = vmatprep.subr.mxu0 0.0
    %2455 = vmatpush1.msra.mxu0 0.0
    %2456 = vmatprep.subr.mxu0 0.0
    %2457 = vmatpush1.msra.mxu0 0.0
    %2458 = vmatprep.subr.mxu0 0.0
    %2459 = vmatpush1.msra.mxu0 0.0
    %2460 = vmatprep.subr.mxu0 0.0
    %2461 = vmatpush1.msra.mxu0 0.0
    %2462 = vmatprep.subr.mxu0 0.0
    %2463 = vmatpush1.msra.mxu0 0.0
    %2464 = vmatprep.subr.mxu0 0.0
    %2465 = vmatpush1.msra.mxu0 0.0
    %2466 = vmatprep.subr.mxu0 0.0
    %2467 = vmatpush1.msra.mxu0 0.0
    %2468 = vmatprep.subr.mxu0 0.0
    %2469 = vmatpush1.msra.mxu0 0.0
    %2470 = vmatprep.subr.mxu0 0.0
    %2471 = vmatpush1.msra.mxu0 0.0
    %2472 = vmatprep.subr.mxu0 0.0
    %2473 = vmatpush1.msra.mxu0 0.0
    %2474 = vmatprep.subr.mxu0 0.0
    %2475 = vmatpush1.msra.mxu0 0.0
    %2476 = vmatprep.subr.mxu0 0.0
    %2477 = vmatpush1.msra.mxu0 0.0
    %2478 = vmatprep.subr.mxu0 0.0
    %2479 = vmatpush1.msra.mxu0 0.0
    %2480 = vmatprep.subr.mxu0 0.0
    %2481 = vmatpush1.msra.mxu0 0.0
    %2482 = vmatprep.subr.mxu0 0.0
    %2483 = vmatpush1.msra.mxu0 0.0
    %2484 = vmatprep.mubr.f32.mxu0 0.0
    %2485 = vmatmul.mubr.f32.gmra.mrb[0].mxu0 %v2417
    %v2486 = vpop.f32.mrb[0].mxu0
    %v2487 = vadd.f32 %v363, %v2486
    %v2488 = vpop.f32.mrb[0].mxu0
    %v2489 = vadd.f32 %v367, %v2488
    %2490 = vdwg.mxu0
    %2491 = vmatprep.subr.mxu0 %v294
    %2492 = vmatpush1.msra.mxu0 %v293
    %2493 = vmatprep.subr.mxu0 %v298
    %2494 = vmatpush1.msra.mxu0 %v297
    %2495 = vmatprep.subr.mxu0 %v302
    %2496 = vmatpush1.msra.mxu0 %v301
    %2497 = vmatprep.subr.mxu0 %v306
    %2498 = vmatpush1.msra.mxu0 %v305
    %2499 = vmatprep.subr.mxu0 %v310
    %2500 = vmatpush1.msra.mxu0 %v309
    %2501 = vmatprep.subr.mxu0 %v314
    %2502 = vmatpush1.msra.mxu0 %v313
    %2503 = vmatprep.subr.mxu0 %v318
    %2504 = vmatpush1.msra.mxu0 %v317
    %2505 = vmatprep.subr.mxu0 %v322
    %2506 = vmatpush1.msra.mxu0 %v321
    %2507 = vmatprep.subr.mxu0 %v326
    %2508 = vmatpush1.msra.mxu0 %v325
    %2509 = vmatprep.subr.mxu0 %v330
    %2510 = vmatpush1.msra.mxu0 %v329
    %2511 = vmatprep.subr.mxu0 %v334
    %2512 = vmatpush1.msra.mxu0 %v333
    %2513 = vmatprep.subr.mxu0 %v338
    %2514 = vmatpush1.msra.mxu0 %v337
    %2515 = vmatprep.subr.mxu0 %v342
    %2516 = vmatpush1.msra.mxu0 %v341
    %2517 = vmatprep.subr.mxu0 %v346
    %2518 = vmatpush1.msra.mxu0 %v345
    %2519 = vmatprep.subr.mxu0 %v350
    %2520 = vmatpush1.msra.mxu0 %v349
    %2521 = vmatprep.subr.mxu0 %v354
    %2522 = vmatpush1.msra.mxu0 %v353
    %2523 = vmatprep.subr.mxu0 0.0
    %2524 = vmatpush1.msra.mxu0 0.0
    %2525 = vmatprep.subr.mxu0 0.0
    %2526 = vmatpush1.msra.mxu0 0.0
    %2527 = vmatprep.subr.mxu0 0.0
    %2528 = vmatpush1.msra.mxu0 0.0
    %2529 = vmatprep.subr.mxu0 0.0
    %2530 = vmatpush1.msra.mxu0 0.0
    %2531 = vmatprep.subr.mxu0 0.0
    %2532 = vmatpush1.msra.mxu0 0.0
    %2533 = vmatprep.subr.mxu0 0.0
    %2534 = vmatpush1.msra.mxu0 0.0
    %2535 = vmatprep.subr.mxu0 0.0
    %2536 = vmatpush1.msra.mxu0 0.0
    %2537 = vmatprep.subr.mxu0 0.0
    %2538 = vmatpush1.msra.mxu0 0.0
    %2539 = vmatprep.subr.mxu0 0.0
    %2540 = vmatpush1.msra.mxu0 0.0
    %2541 = vmatprep.subr.mxu0 0.0
    %2542 = vmatpush1.msra.mxu0 0.0
    %2543 = vmatprep.subr.mxu0 0.0
    %2544 = vmatpush1.msra.mxu0 0.0
    %2545 = vmatprep.subr.mxu0 0.0
    %2546 = vmatpush1.msra.mxu0 0.0
    %2547 = vmatprep.subr.mxu0 0.0
    %2548 = vmatpush1.msra.mxu0 0.0
    %2549 = vmatprep.subr.mxu0 0.0
    %2550 = vmatpush1.msra.mxu0 0.0
    %2551 = vmatprep.subr.mxu0 0.0
    %2552 = vmatpush1.msra.mxu0 0.0
    %2553 = vmatprep.subr.mxu0 0.0
    %2554 = vmatpush1.msra.mxu0 0.0
    %2555 = vmatprep.mubr.f32.mxu0 0.0
    %2556 = vmatmul.mubr.f32.gmra.mrb[0].mxu0 %v2417
    %v2557 = vpop.f32.mrb[0].mxu0
    %v2558 = vadd.f32 %v371, %v2557
    %v2559 = vpop.f32.mrb[0].mxu0
    %v2560 = vadd.f32 %v375, %v2559
    %2561 = vdwg.mxu0
    %v2563 = vrot.slane %v2419, 3
    %v2565 = vadd.f32 %v2563, %v2560
    %2566 = vst [vmem:[#allocation9 + $0xc] sm:$0x1] %v2565
    %v2567 = vadd.f32 %v2419, %v2487
    %v2568 = vmul.f32 %v2567, 0.5
    %v2569 = vtanh.pop %v2568
    %v2570 = vadd.f32 %v2569, 1.0
    %v2571 = vmul.f32 %v2570, 0.5
    %v2572 = vrot.slane %v2419, 1
    %v2574 = vadd.f32 %v2572, %v2489
    %v2575 = vmul.f32 %v2574, 0.5
    %v2576 = vtanh.pop %v2575
    %v2577 = vadd.f32 %v2576, 1.0
    %v2578 = vmul.f32 %v2577, 0.5
    %v2579 = vmul.f32 %v2571, %v2558
    %v2580 = vrot.slane %v2419, 2
    %v2582 = vadd.f32 %v2580, %v2579
    %v2583 = vtanh.pop %v2582
    %v2584 = vsub.f32 1.0, %v2578
    %v2585 = vmul.f32 %v2584, %v2583
    %v2586 = vmul.f32 %v2578, %v2417
    %v2587 = vadd.f32 %v2585, %v2586
    %s2588 = scalar_lea.vmem [#allocation2], 37
    %v2589 = vld [vmem:[%s2588] ss:$8 sm:$0xf]
    %2590 = vmatprep.subr.mxu0 %v292
    %2591 = vmatpush1.msra.mxu0 %v291
    %2592 = vmatprep.subr.mxu0 %v296
    %2593 = vmatpush1.msra.mxu0 %v295
    %2594 = vmatprep.subr.mxu0 %v300
    %2595 = vmatpush1.msra.mxu0 %v299
    %2596 = vmatprep.subr.mxu0 %v304
    %2597 = vmatpush1.msra.mxu0 %v303
    %2598 = vmatprep.subr.mxu0 %v308
    %2599 = vmatpush1.msra.mxu0 %v307
    %2600 = vmatprep.subr.mxu0 %v312
    %2601 = vmatpush1.msra.mxu0 %v311
    %2602 = vmatprep.subr.mxu0 %v316
    %2603 = vmatpush1.msra.mxu0 %v315
    %2604 = vmatprep.subr.mxu0 %v320
    %2605 = vmatpush1.msra.mxu0 %v319
    %2606 = vmatprep.subr.mxu0 %v324
    %2607 = vmatpush1.msra.mxu0 %v323
    %2608 = vmatprep.subr.mxu0 %v328
    %2609 = vmatpush1.msra.mxu0 %v327
    %2610 = vmatprep.subr.mxu0 %v332
    %2611 = vmatpush1.msra.mxu0 %v331
    %2612 = vmatprep.subr.mxu0 %v336
    %2613 = vmatpush1.msra.mxu0 %v335
    %2614 = vmatprep.subr.mxu0 %v340
    %2615 = vmatpush1.msra.mxu0 %v339
    %2616 = vmatprep.subr.mxu0 %v344
    %2617 = vmatpush1.msra.mxu0 %v343
    %2618 = vmatprep.subr.mxu0 %v348
    %2619 = vmatpush1.msra.mxu0 %v347
    %2620 = vmatprep.subr.mxu0 %v352
    %2621 = vmatpush1.msra.mxu0 %v351
    %2622 = vmatprep.subr.mxu0 0.0
    %2623 = vmatpush1.msra.mxu0 0.0
    %2624 = vmatprep.subr.mxu0 0.0
    %2625 = vmatpush1.msra.mxu0 0.0
    %2626 = vmatprep.subr.mxu0 0.0
    %2627 = vmatpush1.msra.mxu0 0.0
    %2628 = vmatprep.subr.mxu0 0.0
    %2629 = vmatpush1.msra.mxu0 0.0
    %2630 = vmatprep.subr.mxu0 0.0
    %2631 = vmatpush1.msra.mxu0 0.0
    %2632 = vmatprep.subr.mxu0 0.0
    %2633 = vmatpush1.msra.mxu0 0.0
    %2634 = vmatprep.subr.mxu0 0.0
    %2635 = vmatpush1.msra.mxu0 0.0
    %2636 = vmatprep.subr.mxu0 0.0
    %2637 = vmatpush1.msra.mxu0 0.0
    %2638 = vmatprep.subr.mxu0 0.0
    %2639 = vmatpush1.msra.mxu0 0.0
    %2640 = vmatprep.subr.mxu0 0.0
    %2641 = vmatpush1.msra.mxu0 0.0
    %2642 = vmatprep.subr.mxu0 0.0
    %2643 = vmatpush1.msra.mxu0 0.0
    %2644 = vmatprep.subr.mxu0 0.0
    %2645 = vmatpush1.msra.mxu0 0.0
    %2646 = vmatprep.subr.mxu0 0.0
    %2647 = vmatpush1.msra.mxu0 0.0
    %2648 = vmatprep.subr.mxu0 0.0
    %2649 = vmatpush1.msra.mxu0 0.0
    %2650 = vmatprep.subr.mxu0 0.0
    %2651 = vmatpush1.msra.mxu0 0.0
    %2652 = vmatprep.subr.mxu0 0.0
    %2653 = vmatpush1.msra.mxu0 0.0
    %2654 = vmatprep.mubr.f32.mxu0 0.0
    %2655 = vmatmul.mubr.f32.gmra.mrb[0].mxu0 %v2587
    %v2656 = vpop.f32.mrb[0].mxu0
    %v2657 = vadd.f32 %v363, %v2656
    %v2658 = vpop.f32.mrb[0].mxu0
    %v2659 = vadd.f32 %v367, %v2658
    %2660 = vdwg.mxu0
    %2661 = vmatprep.subr.mxu0 %v294
    %2662 = vmatpush1.msra.mxu0 %v293
    %2663 = vmatprep.subr.mxu0 %v298
    %2664 = vmatpush1.msra.mxu0 %v297
    %2665 = vmatprep.subr.mxu0 %v302
    %2666 = vmatpush1.msra.mxu0 %v301
    %2667 = vmatprep.subr.mxu0 %v306
    %2668 = vmatpush1.msra.mxu0 %v305
    %2669 = vmatprep.subr.mxu0 %v310
    %2670 = vmatpush1.msra.mxu0 %v309
    %2671 = vmatprep.subr.mxu0 %v314
    %2672 = vmatpush1.msra.mxu0 %v313
    %2673 = vmatprep.subr.mxu0 %v318
    %2674 = vmatpush1.msra.mxu0 %v317
    %2675 = vmatprep.subr.mxu0 %v322
    %2676 = vmatpush1.msra.mxu0 %v321
    %2677 = vmatprep.subr.mxu0 %v326
    %2678 = vmatpush1.msra.mxu0 %v325
    %2679 = vmatprep.subr.mxu0 %v330
    %2680 = vmatpush1.msra.mxu0 %v329
    %2681 = vmatprep.subr.mxu0 %v334
    %2682 = vmatpush1.msra.mxu0 %v333
    %2683 = vmatprep.subr.mxu0 %v338
    %2684 = vmatpush1.msra.mxu0 %v337
    %2685 = vmatprep.subr.mxu0 %v342
    %2686 = vmatpush1.msra.mxu0 %v341
    %2687 = vmatprep.subr.mxu0 %v346
    %2688 = vmatpush1.msra.mxu0 %v345
    %2689 = vmatprep.subr.mxu0 %v350
    %2690 = vmatpush1.msra.mxu0 %v349
    %2691 = vmatprep.subr.mxu0 %v354
    %2692 = vmatpush1.msra.mxu0 %v353
    %2693 = vmatprep.subr.mxu0 0.0
    %2694 = vmatpush1.msra.mxu0 0.0
    %2695 = vmatprep.subr.mxu0 0.0
    %2696 = vmatpush1.msra.mxu0 0.0
    %2697 = vmatprep.subr.mxu0 0.0
    %2698 = vmatpush1.msra.mxu0 0.0
    %2699 = vmatprep.subr.mxu0 0.0
    %2700 = vmatpush1.msra.mxu0 0.0
    %2701 = vmatprep.subr.mxu0 0.0
    %2702 = vmatpush1.msra.mxu0 0.0
    %2703 = vmatprep.subr.mxu0 0.0
    %2704 = vmatpush1.msra.mxu0 0.0
    %2705 = vmatprep.subr.mxu0 0.0
    %2706 = vmatpush1.msra.mxu0 0.0
    %2707 = vmatprep.subr.mxu0 0.0
    %2708 = vmatpush1.msra.mxu0 0.0
    %2709 = vmatprep.subr.mxu0 0.0
    %2710 = vmatpush1.msra.mxu0 0.0
    %2711 = vmatprep.subr.mxu0 0.0
    %2712 = vmatpush1.msra.mxu0 0.0
    %2713 = vmatprep.subr.mxu0 0.0
    %2714 = vmatpush1.msra.mxu0 0.0
    %2715 = vmatprep.subr.mxu0 0.0
    %2716 = vmatpush1.msra.mxu0 0.0
    %2717 = vmatprep.subr.mxu0 0.0
    %2718 = vmatpush1.msra.mxu0 0.0
    %2719 = vmatprep.subr.mxu0 0.0
    %2720 = vmatpush1.msra.mxu0 0.0
    %2721 = vmatprep.subr.mxu0 0.0
    %2722 = vmatpush1.msra.mxu0 0.0
    %2723 = vmatprep.subr.mxu0 0.0
    %2724 = vmatpush1.msra.mxu0 0.0
    %2725 = vmatprep.mubr.f32.mxu0 0.0
    %2726 = vmatmul.mubr.f32.gmra.mrb[0].mxu0 %v2587
    %v2727 = vpop.f32.mrb[0].mxu0
    %v2728 = vadd.f32 %v371, %v2727
    %v2729 = vpop.f32.mrb[0].mxu0
    %v2730 = vadd.f32 %v375, %v2729
    %2731 = vdwg.mxu0
    %v2733 = vrot.slane %v2589, 3
    %v2735 = vadd.f32 %v2733, %v2730
    %2736 = vst [vmem:[#allocation9 + $0xd] sm:$0x1] %v2735
    %v2737 = vadd.f32 %v2589, %v2657
    %v2738 = vmul.f32 %v2737, 0.5
    %v2739 = vtanh.pop %v2738
    %v2740 = vadd.f32 %v2739, 1.0
    %v2741 = vmul.f32 %v2740, 0.5
    %v2742 = vrot.slane %v2589, 1
    %v2744 = vadd.f32 %v2742, %v2659
    %v2745 = vmul.f32 %v2744, 0.5
    %v2746 = vtanh.pop %v2745
    %v2747 = vadd.f32 %v2746, 1.0
    %v2748 = vmul.f32 %v2747, 0.5
    %v2749 = vmul.f32 %v2741, %v2728
    %v2750 = vrot.slane %v2589, 2
    %v2752 = vadd.f32 %v2750, %v2749
    %v2753 = vtanh.pop %v2752
    %v2754 = vsub.f32 1.0, %v2748
    %v2755 = vmul.f32 %v2754, %v2753
    %v2756 = vmul.f32 %v2748, %v2587
    %v2757 = vadd.f32 %v2755, %v2756
    %s2758 = scalar_lea.vmem [#allocation2], 38
    %v2759 = vld [vmem:[%s2758] ss:$8 sm:$0xf]
    %2760 = vmatprep.subr.mxu0 %v292
    %2761 = vmatpush1.msra.mxu0 %v291
    %2762 = vmatprep.subr.mxu0 %v296
    %2763 = vmatpush1.msra.mxu0 %v295
    %2764 = vmatprep.subr.mxu0 %v300
    %2765 = vmatpush1.msra.mxu0 %v299
    %2766 = vmatprep.subr.mxu0 %v304
    %2767 = vmatpush1.msra.mxu0 %v303
    %2768 = vmatprep.subr.mxu0 %v308
    %2769 = vmatpush1.msra.mxu0 %v307
    %2770 = vmatprep.subr.mxu0 %v312
    %2771 = vmatpush1.msra.mxu0 %v311
    %2772 = vmatprep.subr.mxu0 %v316
    %2773 = vmatpush1.msra.mxu0 %v315
    %2774 = vmatprep.subr.mxu0 %v320
    %2775 = vmatpush1.msra.mxu0 %v319
    %2776 = vmatprep.subr.mxu0 %v324
    %2777 = vmatpush1.msra.mxu0 %v323
    %2778 = vmatprep.subr.mxu0 %v328
    %2779 = vmatpush1.msra.mxu0 %v327
    %2780 = vmatprep.subr.mxu0 %v332
    %2781 = vmatpush1.msra.mxu0 %v331
    %2782 = vmatprep.subr.mxu0 %v336
    %2783 = vmatpush1.msra.mxu0 %v335
    %2784 = vmatprep.subr.mxu0 %v340
    %2785 = vmatpush1.msra.mxu0 %v339
    %2786 = vmatprep.subr.mxu0 %v344
    %2787 = vmatpush1.msra.mxu0 %v343
    %2788 = vmatprep.subr.mxu0 %v348
    %2789 = vmatpush1.msra.mxu0 %v347
    %2790 = vmatprep.subr.mxu0 %v352
    %2791 = vmatpush1.msra.mxu0 %v351
    %2792 = vmatprep.subr.mxu0 0.0
    %2793 = vmatpush1.msra.mxu0 0.0
    %2794 = vmatprep.subr.mxu0 0.0
    %2795 = vmatpush1.msra.mxu0 0.0
    %2796 = vmatprep.subr.mxu0 0.0
    %2797 = vmatpush1.msra.mxu0 0.0
    %2798 = vmatprep.subr.mxu0 0.0
    %2799 = vmatpush1.msra.mxu0 0.0
    %2800 = vmatprep.subr.mxu0 0.0
    %2801 = vmatpush1.msra.mxu0 0.0
    %2802 = vmatprep.subr.mxu0 0.0
    %2803 = vmatpush1.msra.mxu0 0.0
    %2804 = vmatprep.subr.mxu0 0.0
    %2805 = vmatpush1.msra.mxu0 0.0
    %2806 = vmatprep.subr.mxu0 0.0
    %2807 = vmatpush1.msra.mxu0 0.0
    %2808 = vmatprep.subr.mxu0 0.0
    %2809 = vmatpush1.msra.mxu0 0.0
    %2810 = vmatprep.subr.mxu0 0.0
    %2811 = vmatpush1.msra.mxu0 0.0
    %2812 = vmatprep.subr.mxu0 0.0
    %2813 = vmatpush1.msra.mxu0 0.0
    %2814 = vmatprep.subr.mxu0 0.0
    %2815 = vmatpush1.msra.mxu0 0.0
    %2816 = vmatprep.subr.mxu0 0.0
    %2817 = vmatpush1.msra.mxu0 0.0
    %2818 = vmatprep.subr.mxu0 0.0
    %2819 = vmatpush1.msra.mxu0 0.0
    %2820 = vmatprep.subr.mxu0 0.0
    %2821 = vmatpush1.msra.mxu0 0.0
    %2822 = vmatprep.subr.mxu0 0.0
    %2823 = vmatpush1.msra.mxu0 0.0
    %2824 = vmatprep.mubr.f32.mxu0 0.0
    %2825 = vmatmul.mubr.f32.gmra.mrb[0].mxu0 %v2757
    %v2826 = vpop.f32.mrb[0].mxu0
    %v2827 = vadd.f32 %v363, %v2826
    %v2828 = vpop.f32.mrb[0].mxu0
    %v2829 = vadd.f32 %v367, %v2828
    %2830 = vdwg.mxu0
    %2831 = vmatprep.subr.mxu0 %v294
    %2832 = vmatpush1.msra.mxu0 %v293
    %2833 = vmatprep.subr.mxu0 %v298
    %2834 = vmatpush1.msra.mxu0 %v297
    %2835 = vmatprep.subr.mxu0 %v302
    %2836 = vmatpush1.msra.mxu0 %v301
    %2837 = vmatprep.subr.mxu0 %v306
    %2838 = vmatpush1.msra.mxu0 %v305
    %2839 = vmatprep.subr.mxu0 %v310
    %2840 = vmatpush1.msra.mxu0 %v309
    %2841 = vmatprep.subr.mxu0 %v314
    %2842 = vmatpush1.msra.mxu0 %v313
    %2843 = vmatprep.subr.mxu0 %v318
    %2844 = vmatpush1.msra.mxu0 %v317
    %2845 = vmatprep.subr.mxu0 %v322
    %2846 = vmatpush1.msra.mxu0 %v321
    %2847 = vmatprep.subr.mxu0 %v326
    %2848 = vmatpush1.msra.mxu0 %v325
    %2849 = vmatprep.subr.mxu0 %v330
    %2850 = vmatpush1.msra.mxu0 %v329
    %2851 = vmatprep.subr.mxu0 %v334
    %2852 = vmatpush1.msra.mxu0 %v333
    %2853 = vmatprep.subr.mxu0 %v338
    %2854 = vmatpush1.msra.mxu0 %v337
    %2855 = vmatprep.subr.mxu0 %v342
    %2856 = vmatpush1.msra.mxu0 %v341
    %2857 = vmatprep.subr.mxu0 %v346
    %2858 = vmatpush1.msra.mxu0 %v345
    %2859 = vmatprep.subr.mxu0 %v350
    %2860 = vmatpush1.msra.mxu0 %v349
    %2861 = vmatprep.subr.mxu0 %v354
    %2862 = vmatpush1.msra.mxu0 %v353
    %2863 = vmatprep.subr.mxu0 0.0
    %2864 = vmatpush1.msra.mxu0 0.0
    %2865 = vmatprep.subr.mxu0 0.0
    %2866 = vmatpush1.msra.mxu0 0.0
    %2867 = vmatprep.subr.mxu0 0.0
    %2868 = vmatpush1.msra.mxu0 0.0
    %2869 = vmatprep.subr.mxu0 0.0
    %2870 = vmatpush1.msra.mxu0 0.0
    %2871 = vmatprep.subr.mxu0 0.0
    %2872 = vmatpush1.msra.mxu0 0.0
    %2873 = vmatprep.subr.mxu0 0.0
    %2874 = vmatpush1.msra.mxu0 0.0
    %2875 = vmatprep.subr.mxu0 0.0
    %2876 = vmatpush1.msra.mxu0 0.0
    %2877 = vmatprep.subr.mxu0 0.0
    %2878 = vmatpush1.msra.mxu0 0.0
    %2879 = vmatprep.subr.mxu0 0.0
    %2880 = vmatpush1.msra.mxu0 0.0
    %2881 = vmatprep.subr.mxu0 0.0
    %2882 = vmatpush1.msra.mxu0 0.0
    %2883 = vmatprep.subr.mxu0 0.0
    %2884 = vmatpush1.msra.mxu0 0.0
    %2885 = vmatprep.subr.mxu0 0.0
    %2886 = vmatpush1.msra.mxu0 0.0
    %2887 = vmatprep.subr.mxu0 0.0
    %2888 = vmatpush1.msra.mxu0 0.0
    %2889 = vmatprep.subr.mxu0 0.0
    %2890 = vmatpush1.msra.mxu0 0.0
    %2891 = vmatprep.subr.mxu0 0.0
    %2892 = vmatpush1.msra.mxu0 0.0
    %2893 = vmatprep.subr.mxu0 0.0
    %2894 = vmatpush1.msra.mxu0 0.0
    %2895 = vmatprep.mubr.f32.mxu0 0.0
    %2896 = vmatmul.mubr.f32.gmra.mrb[0].mxu0 %v2757
    %v2897 = vpop.f32.mrb[0].mxu0
    %v2898 = vadd.f32 %v371, %v2897
    %v2899 = vpop.f32.mrb[0].mxu0
    %v2900 = vadd.f32 %v375, %v2899
    %2901 = vdwg.mxu0
    %v2903 = vrot.slane %v2759, 3
    %v2905 = vadd.f32 %v2903, %v2900
    %2906 = vst [vmem:[#allocation9 + $0xe] sm:$0x1] %v2905
    %v2907 = vadd.f32 %v2759, %v2827
    %v2908 = vmul.f32 %v2907, 0.5
    %v2909 = vtanh.pop %v2908
    %v2910 = vadd.f32 %v2909, 1.0
    %v2911 = vmul.f32 %v2910, 0.5
    %v2912 = vrot.slane %v2759, 1
    %v2914 = vadd.f32 %v2912, %v2829
    %v2915 = vmul.f32 %v2914, 0.5
    %v2916 = vtanh.pop %v2915
    %v2917 = vadd.f32 %v2916, 1.0
    %v2918 = vmul.f32 %v2917, 0.5
    %v2919 = vmul.f32 %v2911, %v2898
    %v2920 = vrot.slane %v2759, 2
    %v2922 = vadd.f32 %v2920, %v2919
    %v2923 = vtanh.pop %v2922
    %v2924 = vsub.f32 1.0, %v2918
    %v2925 = vmul.f32 %v2924, %v2923
    %v2926 = vmul.f32 %v2918, %v2757
    %v2927 = vadd.f32 %v2925, %v2926
    %s2928 = scalar_lea.vmem [#allocation2], 39
    %v2929 = vld [vmem:[%s2928] ss:$8 sm:$0xf]
    %2930 = vmatprep.subr.mxu0 %v292
    %2931 = vmatpush1.msra.mxu0 %v291
    %2932 = vmatprep.subr.mxu0 %v296
    %2933 = vmatpush1.msra.mxu0 %v295
    %2934 = vmatprep.subr.mxu0 %v300
    %2935 = vmatpush1.msra.mxu0 %v299
    %2936 = vmatprep.subr.mxu0 %v304
    %2937 = vmatpush1.msra.mxu0 %v303
    %2938 = vmatprep.subr.mxu0 %v308
    %2939 = vmatpush1.msra.mxu0 %v307
    %2940 = vmatprep.subr.mxu0 %v312
    %2941 = vmatpush1.msra.mxu0 %v311
    %2942 = vmatprep.subr.mxu0 %v316
    %2943 = vmatpush1.msra.mxu0 %v315
    %2944 = vmatprep.subr.mxu0 %v320
    %2945 = vmatpush1.msra.mxu0 %v319
    %2946 = vmatprep.subr.mxu0 %v324
    %2947 = vmatpush1.msra.mxu0 %v323
    %2948 = vmatprep.subr.mxu0 %v328
    %2949 = vmatpush1.msra.mxu0 %v327
    %2950 = vmatprep.subr.mxu0 %v332
    %2951 = vmatpush1.msra.mxu0 %v331
    %2952 = vmatprep.subr.mxu0 %v336
    %2953 = vmatpush1.msra.mxu0 %v335
    %2954 = vmatprep.subr.mxu0 %v340
    %2955 = vmatpush1.msra.mxu0 %v339
    %2956 = vmatprep.subr.mxu0 %v344
    %2957 = vmatpush1.msra.mxu0 %v343
    %2958 = vmatprep.subr.mxu0 %v348
    %2959 = vmatpush1.msra.mxu0 %v347
    %2960 = vmatprep.subr.mxu0 %v352
    %2961 = vmatpush1.msra.mxu0 %v351
    %2962 = vmatprep.subr.mxu0 0.0
    %2963 = vmatpush1.msra.mxu0 0.0
    %2964 = vmatprep.subr.mxu0 0.0
    %2965 = vmatpush1.msra.mxu0 0.0
    %2966 = vmatprep.subr.mxu0 0.0
    %2967 = vmatpush1.msra.mxu0 0.0
    %2968 = vmatprep.subr.mxu0 0.0
    %2969 = vmatpush1.msra.mxu0 0.0
    %2970 = vmatprep.subr.mxu0 0.0
    %2971 = vmatpush1.msra.mxu0 0.0
    %2972 = vmatprep.subr.mxu0 0.0
    %2973 = vmatpush1.msra.mxu0 0.0
    %2974 = vmatprep.subr.mxu0 0.0
    %2975 = vmatpush1.msra.mxu0 0.0
    %2976 = vmatprep.subr.mxu0 0.0
    %2977 = vmatpush1.msra.mxu0 0.0
    %2978 = vmatprep.subr.mxu0 0.0
    %2979 = vmatpush1.msra.mxu0 0.0
    %2980 = vmatprep.subr.mxu0 0.0
    %2981 = vmatpush1.msra.mxu0 0.0
    %2982 = vmatprep.subr.mxu0 0.0
    %2983 = vmatpush1.msra.mxu0 0.0
    %2984 = vmatprep.subr.mxu0 0.0
    %2985 = vmatpush1.msra.mxu0 0.0
    %2986 = vmatprep.subr.mxu0 0.0
    %2987 = vmatpush1.msra.mxu0 0.0
    %2988 = vmatprep.subr.mxu0 0.0
    %2989 = vmatpush1.msra.mxu0 0.0
    %2990 = vmatprep.subr.mxu0 0.0
    %2991 = vmatpush1.msra.mxu0 0.0
    %2992 = vmatprep.subr.mxu0 0.0
    %2993 = vmatpush1.msra.mxu0 0.0
    %2994 = vmatprep.mubr.f32.mxu0 0.0
    %2995 = vmatmul.mubr.f32.gmra.mrb[0].mxu0 %v2927
    %v2996 = vpop.f32.mrb[0].mxu0
    %v2997 = vadd.f32 %v363, %v2996
    %v2998 = vpop.f32.mrb[0].mxu0
    %v2999 = vadd.f32 %v367, %v2998
    %3000 = vdwg.mxu0
    %3001 = vmatprep.subr.mxu0 %v294
    %3002 = vmatpush1.msra.mxu0 %v293
    %3003 = vmatprep.subr.mxu0 %v298
    %3004 = vmatpush1.msra.mxu0 %v297
    %3005 = vmatprep.subr.mxu0 %v302
    %3006 = vmatpush1.msra.mxu0 %v301
    %3007 = vmatprep.subr.mxu0 %v306
    %3008 = vmatpush1.msra.mxu0 %v305
    %3009 = vmatprep.subr.mxu0 %v310
    %3010 = vmatpush1.msra.mxu0 %v309
    %3011 = vmatprep.subr.mxu0 %v314
    %3012 = vmatpush1.msra.mxu0 %v313
    %3013 = vmatprep.subr.mxu0 %v318
    %3014 = vmatpush1.msra.mxu0 %v317
    %3015 = vmatprep.subr.mxu0 %v322
    %3016 = vmatpush1.msra.mxu0 %v321
    %3017 = vmatprep.subr.mxu0 %v326
    %3018 = vmatpush1.msra.mxu0 %v325
    %3019 = vmatprep.subr.mxu0 %v330
    %3020 = vmatpush1.msra.mxu0 %v329
    %3021 = vmatprep.subr.mxu0 %v334
    %3022 = vmatpush1.msra.mxu0 %v333
    %3023 = vmatprep.subr.mxu0 %v338
    %3024 = vmatpush1.msra.mxu0 %v337
    %3025 = vmatprep.subr.mxu0 %v342
    %3026 = vmatpush1.msra.mxu0 %v341
    %3027 = vmatprep.subr.mxu0 %v346
    %3028 = vmatpush1.msra.mxu0 %v345
    %3029 = vmatprep.subr.mxu0 %v350
    %3030 = vmatpush1.msra.mxu0 %v349
    %3031 = vmatprep.subr.mxu0 %v354
    %3032 = vmatpush1.msra.mxu0 %v353
    %3033 = vmatprep.subr.mxu0 0.0
    %3034 = vmatpush1.msra.mxu0 0.0
    %3035 = vmatprep.subr.mxu0 0.0
    %3036 = vmatpush1.msra.mxu0 0.0
    %3037 = vmatprep.subr.mxu0 0.0
    %3038 = vmatpush1.msra.mxu0 0.0
    %3039 = vmatprep.subr.mxu0 0.0
    %3040 = vmatpush1.msra.mxu0 0.0
    %3041 = vmatprep.subr.mxu0 0.0
    %3042 = vmatpush1.msra.mxu0 0.0
    %3043 = vmatprep.subr.mxu0 0.0
    %3044 = vmatpush1.msra.mxu0 0.0
    %3045 = vmatprep.subr.mxu0 0.0
    %3046 = vmatpush1.msra.mxu0 0.0
    %3047 = vmatprep.subr.mxu0 0.0
    %3048 = vmatpush1.msra.mxu0 0.0
    %3049 = vmatprep.subr.mxu0 0.0
    %3050 = vmatpush1.msra.mxu0 0.0
    %3051 = vmatprep.subr.mxu0 0.0
    %3052 = vmatpush1.msra.mxu0 0.0
    %3053 = vmatprep.subr.mxu0 0.0
    %3054 = vmatpush1.msra.mxu0 0.0
    %3055 = vmatprep.subr.mxu0 0.0
    %3056 = vmatpush1.msra.mxu0 0.0
    %3057 = vmatprep.subr.mxu0 0.0
    %3058 = vmatpush1.msra.mxu0 0.0
    %3059 = vmatprep.subr.mxu0 0.0
    %3060 = vmatpush1.msra.mxu0 0.0
    %3061 = vmatprep.subr.mxu0 0.0
    %3062 = vmatpush1.msra.mxu0 0.0
    %3063 = vmatprep.subr.mxu0 0.0
    %3064 = vmatpush1.msra.mxu0 0.0
    %3065 = vmatprep.mubr.f32.mxu0 0.0
    %3066 = vmatmul.mubr.f32.gmra.mrb[0].mxu0 %v2927
    %v3067 = vpop.f32.mrb[0].mxu0
    %v3068 = vadd.f32 %v371, %v3067
    %v3069 = vpop.f32.mrb[0].mxu0
    %v3070 = vadd.f32 %v375, %v3069
    %3071 = vdwg.mxu0
    %v3073 = vrot.slane %v2929, 3
    %v3075 = vadd.f32 %v3073, %v3070
    %3076 = vst [vmem:[#allocation9 + $0xf] sm:$0x1] %v3075
    %v3077 = vadd.f32 %v2929, %v2997
    %v3078 = vmul.f32 %v3077, 0.5
    %v3079 = vtanh.pop %v3078
    %v3080 = vadd.f32 %v3079, 1.0
    %v3081 = vmul.f32 %v3080, 0.5
    %v3082 = vrot.slane %v2929, 1
    %v3084 = vadd.f32 %v3082, %v2999
    %v3085 = vmul.f32 %v3084, 0.5
    %v3086 = vtanh.pop %v3085
    %v3087 = vadd.f32 %v3086, 1.0
    %v3088 = vmul.f32 %v3087, 0.5
    %v3089 = vmul.f32 %v3081, %v3068
    %v3090 = vrot.slane %v2929, 2
    %v3092 = vadd.f32 %v3090, %v3089
    %v3093 = vtanh.pop %v3092
    %v3094 = vsub.f32 1.0, %v3088
    %v3095 = vmul.f32 %v3094, %v3093
    %v3096 = vmul.f32 %v3088, %v2927
    %v3097 = vadd.f32 %v3095, %v3096
    %3098 = vst [vmem:[#allocation10] sm:$0x1] %v3097
    // Predicated region
    $region34: #{tpu_custom_call.1} parent=1 // pred_check
      _
    $region35: #{tpu_custom_call.1} parent=1 // pred_check_branch
      %3100 = sbr.rel (0) target = $region37
    $region36: #{tpu_custom_call.1} parent=1 // pred_region
      %s3102 = ssub.s32 256, 256
      %3103 = vsyncadd [#allocation5], %s3102
      %s3104 = sshll.u32 [#allocation9], 4
      %s3105 = int_to_ptr.vmem [resolvable:$true] %s3104
      %3110 = dma.vmem_to_hbm [thread:$0]  %s3105, 256, %s5, [#allocation5], 128, 128, 8
    $region37: #{tpu_custom_call.1} parent=1 // pred_fallthru
      _
    // Predicated region
    $region38: #{tpu_custom_call.1} parent=1 // pred_check
      _
    $region39: #{tpu_custom_call.1} parent=1 // pred_check_branch
      %3112 = sbr.rel (0) target = $region41
    $region40: #{tpu_custom_call.1} parent=1 // pred_region
      %s3114 = ssub.s32 16, 16
      %3115 = vsyncadd [#allocation11], %s3114
      %s3117 = sshll.u32 [#allocation10], 4
      %s3118 = int_to_ptr.vmem [resolvable:$true] %s3117
      %3120 = dma.vmem_to_hbm [thread:$0]  %s3118, 16, %s6, [#allocation11]
    $region41: #{tpu_custom_call.1} parent=1 // pred_fallthru
      _
    // Predicated region
    $region42: #{tpu_custom_call.1} parent=1 // pred_check
      _
    $region43: #{tpu_custom_call.1} parent=1 // pred_check_branch
      %3122 = sbr.rel (0) target = $region45
    $region44: #{tpu_custom_call.1} parent=1 // pred_region
      %3123 = dma.done [#allocation5], 256
    $region45: #{tpu_custom_call.1} parent=1 // pred_fallthru
      _
    // Predicated region
    $region46: #{tpu_custom_call.1} parent=1 // pred_check
      _
    $region47: #{tpu_custom_call.1} parent=1 // pred_check_branch
      %3125 = sbr.rel (0) target = $region49
    $region48: #{tpu_custom_call.1} parent=1 // pred_region
      %3126 = dma.done [#allocation11], 16
    $region49: #{tpu_custom_call.1} parent=1 // pred_fallthru
      _
    %3127 = vsyncpa [#allocation4], 1
    %3128 = vsyncpa [#allocation7], 1
    %3129 = vsyncpa [#allocation5], 1
    %3130 = vsyncpa [#allocation11], 1

</llo_original>
